<compile_context>
chip_gen: v7x
topology: tpu7x:2x2x1
jax: 0.10.0
libtpu: 0.0.40
codegen_flags: <defaults>
</compile_context>

<pallas_src>
import jax
import jax.numpy as jnp
from jax import lax
from jax.experimental import pallas as pl
from jax.experimental.pallas import tpu as pltpu


# --------------------------------------------------------------------------------------
# Fused per-batch kernel (one grid program per batch element b):
#   x_ref   : (1, N*T, D)  rows ordered n*T + t (contiguous reshape of x[b])
#   wih     : (D, 4H)   whh : (H, 4H)   b_lstm : (1, 4H)   (g-gate columns pre-scaled by 2)
#   wvec    : (3H+2, 1) = [wa^T | wp_old | wp_new | ba | bp]
#   wfb     : (N+1, K)  = [wf ; bf]
#   cw      : (N, N)    = LeakyReLU(A·wg + bg) * valid / deg   (precomputed in wrapper)
#   scores_ref : (1, 1, N)   mean_ref : (1, 1, K)
# --------------------------------------------------------------------------------------
def make_actor_kernel(N, T, D, H, K):
    def kernel(x_ref, wih_ref, whh_ref, b_ref, wvec_ref, wfb_ref, cw_ref,
               scores_ref, mean_ref):
        f32 = jnp.float32

        # ---------------- LSTM: hoisted input projection (one dense MXU matmul) --------
        x = x_ref[0]                                                # (N*T, D)
        gx = (jnp.dot(x, wih_ref[...], preferred_element_type=f32)
              + b_ref[...]).reshape(N, T, 4 * H)                    # gx[n, t]
        whh = whh_ref[...]                                          # hoisted recurrent W

        # Full-width gate nonlinearity: g-gate columns were pre-scaled by 2 at param-prep
        # time, so tanh(z_g) == 2*sigmoid(2*z_g) - 1; one 128-lane sigmoid + full-width FMA.
        lane = lax.broadcasted_iota(jnp.int32, (N, 4 * H), 1)
        is_g = jnp.logical_and(lane >= 2 * H, lane < 3 * H)
        g_scale = jnp.where(is_g, 2.0, 1.0).astype(f32)
        g_shift = jnp.where(is_g, -1.0, 0.0).astype(f32)

        h = jnp.zeros((N, H), f32)
        c = jnp.zeros((N, H), f32)
        hs_list = []
        # ---------------- unrolled recurrence (T is a trace-time constant) -------------
        for t in range(T):
            z = gx[:, t, :] + jnp.dot(h, whh, preferred_element_type=f32)   # (N, 4H)
            act = jax.nn.sigmoid(z) * g_scale + g_shift
            i_g = act[:, 0:H]
            f_g = act[:, H:2 * H]
            g_g = act[:, 2 * H:3 * H]
            o_g = act[:, 3 * H:4 * H]
            c = f_g * c + i_g * g_g
            h = o_g * jnp.tanh(c)
            hs_list.append(h)                        # kept live in registers (~2 vregs)
        hs = jnp.stack(hs_list, axis=0)              # (T, N, H)

        # ---------------- temporal attention (scores on MXU, softmax over T) -----------
        wa = wvec_ref[0:H, :]                                        # (H, 1)
        ba = wvec_ref[3 * H:3 * H + 1, :]                            # (1, 1)
        sc = jnp.tanh(jnp.dot(hs.reshape(T * N, H), wa,
                              preferred_element_type=f32) + ba).reshape(T, N, 1)
        m = jnp.max(sc, axis=0, keepdims=True)
        p = jnp.exp(sc - m)
        attn = p * pl.reciprocal(jnp.sum(p, axis=0, keepdims=True), approx=False)
        e = jnp.sum(attn * hs, axis=0)                               # (N, H) == e_old[b]

        # ---------------- GNN message passing (coefficients precomputed) ---------------
        dots = jnp.einsum('ih,jh->ij', e, e, preferred_element_type=f32)   # (N, N)
        e_new = jnp.dot(dots * cw_ref[...], e, preferred_element_type=f32) # (N, H)

        # ---------------- pred head on concat([e_old, e_new]) without concat -----------
        wp1 = wvec_ref[H:2 * H, :]
        wp2 = wvec_ref[2 * H:3 * H, :]
        bp = wvec_ref[3 * H + 1:3 * H + 2, :]
        s = (jnp.dot(e, wp1, preferred_element_type=f32)
             + jnp.dot(e_new, wp2, preferred_element_type=f32) + bp)        # (N, 1)
        s_row = s.reshape(1, N)                                      # lane-major row
        scores_ref[...] = s_row.reshape(1, 1, N)

        # ---------------- top-k mask (rank of strictly-greater) + final linear ---------
        rank = jnp.sum((s > s_row).astype(f32), axis=0, keepdims=True)      # (1, N)
        final_in = jnp.where(rank < K, s_row, 0.0)
        mean_ref[...] = (jnp.dot(final_in, wfb_ref[0:N, :],
                                 preferred_element_type=f32)
                         + wfb_ref[N:N + 1, :]).reshape(1, 1, K)

    return kernel


# --------------------------------------------------------------------------------------
# Wrappers
# --------------------------------------------------------------------------------------
def prepare_actor_params(p):
    """One-time param prep: scale g-gate columns by 2 (tanh-as-sigmoid trick) and pack
    the small parameters into dense slabs so the kernel takes few, dense VMEM inputs."""
    H = p["whh"].shape[0]
    gate_scale = jnp.concatenate([jnp.ones((2 * H,), jnp.float32),
                                  jnp.full((H,), 2.0, jnp.float32),
                                  jnp.ones((H,), jnp.float32)])[None, :]
    kp = {
        "wih": p["wih"] * gate_scale,
        "whh": p["whh"] * gate_scale,
        "b_lstm": p["b_lstm"] * gate_scale,
        # [wa^T (H,1) | wp (2H,1) | ba (1,1) | bp (1,1)] -> (3H+2, 1)
        "wvec": jnp.concatenate([p["wa"].T, p["wp"],
                                 p["ba"].reshape(1, 1), p["bp"].reshape(1, 1)], axis=0),
        # [wf (N,K) ; bf (1,K)] -> (N+1, K)
        "wfb": jnp.concatenate([p["wf"], p["bf"]], axis=0),
        "wg": p["wg"],
        "bg": p["bg"],
    }
    return kp


def actor_forward(x, A, kp, num_sel):
    B, N, T, D = x.shape
    H = (kp["wvec"].shape[0] - 2) // 3
    K = num_sel
    hp = jax.lax.Precision.HIGHEST

    # A-dependent GNN precompute (batch-independent, runs once per call outside the
    # kernel): relation scorer + LeakyReLU + valid mask + 1/deg row scaling folded into
    # a single (N, N) coefficient matrix.
    valid = (jnp.sum(A, axis=-1) > 0).astype(jnp.float32)
    lin = jnp.einsum('ijr,r->ij', A, kp["wg"][0], precision=hp) + kp["bg"][0, 0]
    coeff = jnp.where(lin > 0, lin, 0.2 * lin)                       # LeakyReLU(0.2)
    deg = jnp.sum(valid, axis=1, keepdims=True)
    # deg clamped to >=1: isolated nodes give e_new = 0 instead of NaN/error.
    cw = coeff * valid / jnp.maximum(deg, 1.0)                       # (N, N)

    x3 = x.reshape(B, N * T, D)          # contiguous collapse: no transpose op emitted
    kernel = make_actor_kernel(N, T, D, H, K)
    scores3, mean3 = pl.pallas_call(
        kernel,
        out_shape=(jax.ShapeDtypeStruct((B, 1, N), jnp.float32),
                   jax.ShapeDtypeStruct((B, 1, K), jnp.float32)),
        grid=(B,),
        in_specs=[
            pl.BlockSpec((1, N * T, D), lambda b: (b, 0, 0)),        # per-batch x slice
            pl.BlockSpec((D, 4 * H), lambda b: (0, 0)),              # resident weights
            pl.BlockSpec((H, 4 * H), lambda b: (0, 0)),
            pl.BlockSpec((1, 4 * H), lambda b: (0, 0)),
            pl.BlockSpec((3 * H + 2, 1), lambda b: (0, 0)),
            pl.BlockSpec((N + 1, K), lambda b: (0, 0)),
            pl.BlockSpec((N, N), lambda b: (0, 0)),
        ],
        out_specs=(pl.BlockSpec((1, 1, N), lambda b: (b, 0, 0)),
                   pl.BlockSpec((1, 1, K), lambda b: (b, 0, 0))),
        compiler_params=pltpu.CompilerParams(dimension_semantics=("parallel",)),
    )(x3, kp["wih"], kp["whh"], kp["b_lstm"], kp["wvec"], kp["wfb"], cw)
    return mean3.reshape(B, K), scores3.reshape(B, N)


# --------------------------------------------------------------------------------------
# Pure-JAX reference (mirrors the PyTorch forward semantics), using the ORIGINAL params.
# --------------------------------------------------------------------------------------
def reference_actor(x, A, params, num_sel):
    B, N, T, D = x.shape
    H = params["whh"].shape[0]
    hp = jax.lax.Precision.HIGHEST
    e_list = []
    for n in range(N):
        h = jnp.zeros((B, H), jnp.float32)
        c = jnp.zeros((B, H), jnp.float32)
        hs = []
        for t in range(T):
            xt = x[:, n, t, :]
            gates = (jnp.dot(xt, params["wih"], precision=hp)
                     + jnp.dot(h, params["whh"], precision=hp) + params["b_lstm"])
            i_g = jax.nn.sigmoid(gates[:, :H])
            f_g = jax.nn.sigmoid(gates[:, H:2 * H])
            g_g = jnp.tanh(gates[:, 2 * H:3 * H])
            o_g = jax.nn.sigmoid(gates[:, 3 * H:])
            c = f_g * c + i_g * g_g
            h = o_g * jnp.tanh(c)
            hs.append(h)
        hs = jnp.stack(hs, axis=1)                                       # (B, T, H)
        sc = jnp.tanh(jnp.einsum('bth,h->bt', hs, params["wa"][0], precision=hp)
                      + params["ba"][0, 0])
        attn = jax.nn.softmax(sc, axis=1)
        e_list.append(jnp.sum(hs * attn[:, :, None], axis=1))
    e_old = jnp.stack(e_list, axis=1)                                    # (B, N, H)

    valid = (jnp.sum(A, axis=-1) > 0).astype(jnp.float32)
    lin = jnp.einsum('ijr,r->ij', A, params["wg"][0], precision=hp) + params["bg"][0, 0]
    coeff = jnp.where(lin > 0, lin, 0.2 * lin)
    deg = jnp.sum(valid, axis=1)
    dots = jnp.einsum('bih,bjh->bij', e_old, e_old, precision=hp)
    wmat = dots * (coeff * valid)[None]
    e_new = jnp.einsum('bij,bjh->bih', wmat, e_old, precision=hp) / deg[None, :, None]
    e_final = jnp.concatenate([e_old, e_new], axis=-1)
    scores = (jnp.einsum('bnf,fo->bno', e_final, params["wp"], precision=hp)
              + params["bp"][0, 0])[..., 0]                              # (B, N)

    vals, idx = jax.lax.top_k(scores, num_sel)
    final_in = jnp.zeros_like(scores).at[jnp.arange(B)[:, None], idx].set(vals)
    mean = jnp.dot(final_in, params["wf"], precision=hp) + params["bf"]  # (B, K)
    return mean, scores


if __name__ == "__main__":
    B, N, T, D = 2, 8, 8, 4       # batch, num_stocks, seq_len, input_size
    H, R, K = 32, 3, 3            # hid_dim, num_relations, num_sel_stocks

    key = jax.random.PRNGKey(0)
    keys = jax.random.split(key, 12)
    params = {
        "wih":    0.2 * jax.random.normal(keys[0], (D, 4 * H), jnp.float32),
        "whh":    0.2 * jax.random.normal(keys[1], (H, 4 * H), jnp.float32),
        "b_lstm": 0.1 * jax.random.normal(keys[2], (1, 4 * H), jnp.float32),
        "wa":     0.3 * jax.random.normal(keys[3], (1, H), jnp.float32),
        "ba":     0.1 * jax.random.normal(keys[4], (1, 1), jnp.float32),
        "wg":     0.5 * jax.random.normal(keys[5], (1, R), jnp.float32),
        "bg":     0.1 * jax.random.normal(keys[6], (1, 1), jnp.float32),
        "wp":     0.3 * jax.random.normal(keys[7], (2 * H, 1), jnp.float32),
        "bp":     0.1 * jax.random.normal(keys[8], (1, 1), jnp.float32),
        "wf":     0.3 * jax.random.normal(keys[9], (N, K), jnp.float32),
        "bf":     0.1 * jax.random.normal(keys[10], (1, K), jnp.float32),
    }

    x = jax.random.normal(keys[11], (B, N, T, D), jnp.float32)

    kA1, kA2 = jax.random.split(jax.random.PRNGKey(42))
    mask = (jax.random.uniform(kA1, (N, N, 1)) < 0.5).astype(jnp.float32)
    A = jax.random.uniform(kA2, (N, N, R), dtype=jnp.float32) * mask
    A = A.at[jnp.arange(N), jnp.arange(N), 0].set(1.0)   # every node has a valid neighbor

    kparams = prepare_actor_params(params)               # one-time weight prep / packing

    run = jax.jit(actor_forward, static_argnums=(3,))
    mean_vec, scores = run(x, A, kparams, K)
    jax.block_until_ready((mean_vec, scores))

    ref_mean, ref_scores = reference_actor(x, A, params, K)
    assert mean_vec.shape == (B, K) and scores.shape == (B, N)
    assert jnp.allclose(scores, ref_scores, atol=5e-3, rtol=5e-3), "stock_scores mismatch"
    assert jnp.allclose(mean_vec, ref_mean, atol=5e-3, rtol=5e-3), "mean_vector mismatch"

    print("KERNEL_OK")
</pallas_src>

<mosaic_0001>
module attributes {stable_mosaic.version = 11 : i64} {
  func.func @kernel(%arg0: i32, %arg1: memref<1x64x4xf32, #tpu.memory_space<vmem>>, %arg2: memref<4x128xf32, #tpu.memory_space<vmem>>, %arg3: memref<32x128xf32, #tpu.memory_space<vmem>>, %arg4: memref<1x128xf32, #tpu.memory_space<vmem>>, %arg5: memref<98x1xf32, #tpu.memory_space<vmem>>, %arg6: memref<9x3xf32, #tpu.memory_space<vmem>>, %arg7: memref<8x8xf32, #tpu.memory_space<vmem>>, %arg8: memref<1x1x8xf32, #tpu.memory_space<vmem>>, %arg9: memref<1x1x3xf32, #tpu.memory_space<vmem>>) attributes {dimension_semantics = [#tpu.dimension_semantics<parallel>], iteration_bounds = array<i64: 2>, scalar_prefetch = 0 : i64, scratch_operands = 0 : i64, tpu.core_type = #tpu.core_type<tc>, window_params = [{transform_indices = @transform_0, window_bounds = array<i64: 1, 64, 4>}, {pipeline_mode = #tpu.pipeline_mode<synchronous>, transform_indices = @transform_1, window_bounds = array<i64: 4, 128>}, {pipeline_mode = #tpu.pipeline_mode<synchronous>, transform_indices = @transform_2, window_bounds = array<i64: 32, 128>}, {pipeline_mode = #tpu.pipeline_mode<synchronous>, transform_indices = @transform_3, window_bounds = array<i64: 1, 128>}, {pipeline_mode = #tpu.pipeline_mode<synchronous>, transform_indices = @transform_4, window_bounds = array<i64: 98, 1>}, {pipeline_mode = #tpu.pipeline_mode<synchronous>, transform_indices = @transform_5, window_bounds = array<i64: 9, 3>}, {pipeline_mode = #tpu.pipeline_mode<synchronous>, transform_indices = @transform_6, window_bounds = array<i64: 8, 8>}, {transform_indices = @transform_7, window_bounds = array<i64: 1, 1, 8>}, {transform_indices = @transform_8, window_bounds = array<i64: 1, 1, 3>}]} {
    %c0 = arith.constant 0 : index
    %c0_0 = arith.constant 0 : index
    %c0_1 = arith.constant 0 : index
    %0 = vector.load %arg1[%c0, %c0_0, %c0_1] : memref<1x64x4xf32, #tpu.memory_space<vmem>>, vector<1x64x4xf32>
    %1 = vector.shape_cast %0 : vector<1x64x4xf32> to vector<64x4xf32>
    %c0_2 = arith.constant 0 : index
    %c0_3 = arith.constant 0 : index
    %2 = vector.load %arg2[%c0_2, %c0_3] : memref<4x128xf32, #tpu.memory_space<vmem>>, vector<4x128xf32>
    %cst = arith.constant dense<0.000000e+00> : vector<64x128xf32>
    %3 = tpu.matmul %1, %2, %cst {dimension_numbers = #tpu.dot_dimension_numbers<[1], [0], [0], [1], [0, 0, 1, 1], [], []>} : vector<64x4xf32>, vector<4x128xf32>, vector<64x128xf32> -> vector<64x128xf32>
    %c0_4 = arith.constant 0 : index
    %c0_5 = arith.constant 0 : index
    %4 = vector.load %arg4[%c0_4, %c0_5] : memref<1x128xf32, #tpu.memory_space<vmem>>, vector<1x128xf32>
    %5 = vector.broadcast %4 : vector<1x128xf32> to vector<64x128xf32>
    %6 = arith.addf %3, %5 : vector<64x128xf32>
    %7 = vector.shape_cast %6 : vector<64x128xf32> to vector<8x8x128xf32>
    %c0_6 = arith.constant 0 : index
    %c0_7 = arith.constant 0 : index
    %8 = vector.load %arg3[%c0_6, %c0_7] : memref<32x128xf32, #tpu.memory_space<vmem>>, vector<32x128xf32>
    %9 = tpu.iota {dimensions = array<i32: 1>} : vector<8x128xi32>
    %c64_i32 = arith.constant 64 : i32
    %10 = vector.broadcast %c64_i32 : i32 to vector<8x128xi32>
    %11 = arith.cmpi sge, %9, %10 : vector<8x128xi32>
    %c96_i32 = arith.constant 96 : i32
    %12 = vector.broadcast %c96_i32 : i32 to vector<8x128xi32>
    %13 = arith.cmpi slt, %9, %12 : vector<8x128xi32>
    %14 = arith.andi %11, %13 : vector<8x128xi1>
    %cst_8 = arith.constant 2.000000e+00 : f32
    %cst_9 = arith.constant 1.000000e+00 : f32
    %15 = vector.broadcast %cst_8 : f32 to vector<8x128xf32>
    %16 = vector.broadcast %cst_9 : f32 to vector<8x128xf32>
    %17 = arith.select %14, %15, %16 : vector<8x128xi1>, vector<8x128xf32>
    %cst_10 = arith.constant -1.000000e+00 : f32
    %cst_11 = arith.constant 0.000000e+00 : f32
    %18 = vector.broadcast %cst_10 : f32 to vector<8x128xf32>
    %19 = vector.broadcast %cst_11 : f32 to vector<8x128xf32>
    %20 = arith.select %14, %18, %19 : vector<8x128xi1>, vector<8x128xf32>
    %cst_12 = arith.constant 0.000000e+00 : f32
    %21 = vector.broadcast %cst_12 : f32 to vector<8x32xf32>
    %cst_13 = arith.constant 0.000000e+00 : f32
    %22 = vector.broadcast %cst_13 : f32 to vector<8x32xf32>
    %23 = vector.extract_strided_slice %7 {offsets = [0, 0, 0], sizes = [8, 1, 128], strides = [1, 1, 1]} : vector<8x8x128xf32> to vector<8x1x128xf32>
    %24 = vector.shape_cast %23 : vector<8x1x128xf32> to vector<8x128xf32>
    %cst_14 = arith.constant dense<0.000000e+00> : vector<8x128xf32>
    %25 = tpu.matmul %21, %8, %cst_14 {dimension_numbers = #tpu.dot_dimension_numbers<[1], [0], [0], [1], [0, 0, 1, 1], [], []>} : vector<8x32xf32>, vector<32x128xf32>, vector<8x128xf32> -> vector<8x128xf32>
    %26 = arith.addf %24, %25 : vector<8x128xf32>
    %27 = arith.negf %26 : vector<8x128xf32>
    %28 = math.exp %27 : vector<8x128xf32>
    %cst_15 = arith.constant 1.000000e+00 : f32
    %29 = vector.broadcast %cst_15 : f32 to vector<8x128xf32>
    %30 = arith.addf %29, %28 : vector<8x128xf32>
    %31 = arith.divf %29, %30 : vector<8x128xf32>
    %32 = arith.mulf %31, %17 : vector<8x128xf32>
    %33 = arith.addf %32, %20 : vector<8x128xf32>
    %34 = vector.extract_strided_slice %33 {offsets = [0, 0], sizes = [8, 32], strides = [1, 1]} : vector<8x128xf32> to vector<8x32xf32>
    %35 = vector.extract_strided_slice %33 {offsets = [0, 32], sizes = [8, 32], strides = [1, 1]} : vector<8x128xf32> to vector<8x32xf32>
    %36 = vector.extract_strided_slice %33 {offsets = [0, 64], sizes = [8, 32], strides = [1, 1]} : vector<8x128xf32> to vector<8x32xf32>
    %37 = vector.extract_strided_slice %33 {offsets = [0, 96], sizes = [8, 32], strides = [1, 1]} : vector<8x128xf32> to vector<8x32xf32>
    %38 = arith.mulf %35, %22 : vector<8x32xf32>
    %39 = arith.mulf %34, %36 : vector<8x32xf32>
    %40 = arith.addf %38, %39 : vector<8x32xf32>
    %41 = math.tanh %40 : vector<8x32xf32>
    %42 = arith.mulf %37, %41 : vector<8x32xf32>
    %43 = vector.extract_strided_slice %7 {offsets = [0, 1, 0], sizes = [8, 1, 128], strides = [1, 1, 1]} : vector<8x8x128xf32> to vector<8x1x128xf32>
    %44 = vector.shape_cast %43 : vector<8x1x128xf32> to vector<8x128xf32>
    %cst_16 = arith.constant dense<0.000000e+00> : vector<8x128xf32>
    %45 = tpu.matmul %42, %8, %cst_16 {dimension_numbers = #tpu.dot_dimension_numbers<[1], [0], [0], [1], [0, 0, 1, 1], [], []>} : vector<8x32xf32>, vector<32x128xf32>, vector<8x128xf32> -> vector<8x128xf32>
    %46 = arith.addf %44, %45 : vector<8x128xf32>
    %47 = arith.negf %46 : vector<8x128xf32>
    %48 = math.exp %47 : vector<8x128xf32>
    %cst_17 = arith.constant 1.000000e+00 : f32
    %49 = vector.broadcast %cst_17 : f32 to vector<8x128xf32>
    %50 = arith.addf %49, %48 : vector<8x128xf32>
    %51 = arith.divf %49, %50 : vector<8x128xf32>
    %52 = arith.mulf %51, %17 : vector<8x128xf32>
    %53 = arith.addf %52, %20 : vector<8x128xf32>
    %54 = vector.extract_strided_slice %53 {offsets = [0, 0], sizes = [8, 32], strides = [1, 1]} : vector<8x128xf32> to vector<8x32xf32>
    %55 = vector.extract_strided_slice %53 {offsets = [0, 32], sizes = [8, 32], strides = [1, 1]} : vector<8x128xf32> to vector<8x32xf32>
    %56 = vector.extract_strided_slice %53 {offsets = [0, 64], sizes = [8, 32], strides = [1, 1]} : vector<8x128xf32> to vector<8x32xf32>
    %57 = vector.extract_strided_slice %53 {offsets = [0, 96], sizes = [8, 32], strides = [1, 1]} : vector<8x128xf32> to vector<8x32xf32>
    %58 = arith.mulf %55, %40 : vector<8x32xf32>
    %59 = arith.mulf %54, %56 : vector<8x32xf32>
    %60 = arith.addf %58, %59 : vector<8x32xf32>
    %61 = math.tanh %60 : vector<8x32xf32>
    %62 = arith.mulf %57, %61 : vector<8x32xf32>
    %63 = vector.extract_strided_slice %7 {offsets = [0, 2, 0], sizes = [8, 1, 128], strides = [1, 1, 1]} : vector<8x8x128xf32> to vector<8x1x128xf32>
    %64 = vector.shape_cast %63 : vector<8x1x128xf32> to vector<8x128xf32>
    %cst_18 = arith.constant dense<0.000000e+00> : vector<8x128xf32>
    %65 = tpu.matmul %62, %8, %cst_18 {dimension_numbers = #tpu.dot_dimension_numbers<[1], [0], [0], [1], [0, 0, 1, 1], [], []>} : vector<8x32xf32>, vector<32x128xf32>, vector<8x128xf32> -> vector<8x128xf32>
    %66 = arith.addf %64, %65 : vector<8x128xf32>
    %67 = arith.negf %66 : vector<8x128xf32>
    %68 = math.exp %67 : vector<8x128xf32>
    %cst_19 = arith.constant 1.000000e+00 : f32
    %69 = vector.broadcast %cst_19 : f32 to vector<8x128xf32>
    %70 = arith.addf %69, %68 : vector<8x128xf32>
    %71 = arith.divf %69, %70 : vector<8x128xf32>
    %72 = arith.mulf %71, %17 : vector<8x128xf32>
    %73 = arith.addf %72, %20 : vector<8x128xf32>
    %74 = vector.extract_strided_slice %73 {offsets = [0, 0], sizes = [8, 32], strides = [1, 1]} : vector<8x128xf32> to vector<8x32xf32>
    %75 = vector.extract_strided_slice %73 {offsets = [0, 32], sizes = [8, 32], strides = [1, 1]} : vector<8x128xf32> to vector<8x32xf32>
    %76 = vector.extract_strided_slice %73 {offsets = [0, 64], sizes = [8, 32], strides = [1, 1]} : vector<8x128xf32> to vector<8x32xf32>
    %77 = vector.extract_strided_slice %73 {offsets = [0, 96], sizes = [8, 32], strides = [1, 1]} : vector<8x128xf32> to vector<8x32xf32>
    %78 = arith.mulf %75, %60 : vector<8x32xf32>
    %79 = arith.mulf %74, %76 : vector<8x32xf32>
    %80 = arith.addf %78, %79 : vector<8x32xf32>
    %81 = math.tanh %80 : vector<8x32xf32>
    %82 = arith.mulf %77, %81 : vector<8x32xf32>
    %83 = vector.extract_strided_slice %7 {offsets = [0, 3, 0], sizes = [8, 1, 128], strides = [1, 1, 1]} : vector<8x8x128xf32> to vector<8x1x128xf32>
    %84 = vector.shape_cast %83 : vector<8x1x128xf32> to vector<8x128xf32>
    %cst_20 = arith.constant dense<0.000000e+00> : vector<8x128xf32>
    %85 = tpu.matmul %82, %8, %cst_20 {dimension_numbers = #tpu.dot_dimension_numbers<[1], [0], [0], [1], [0, 0, 1, 1], [], []>} : vector<8x32xf32>, vector<32x128xf32>, vector<8x128xf32> -> vector<8x128xf32>
    %86 = arith.addf %84, %85 : vector<8x128xf32>
    %87 = arith.negf %86 : vector<8x128xf32>
    %88 = math.exp %87 : vector<8x128xf32>
    %cst_21 = arith.constant 1.000000e+00 : f32
    %89 = vector.broadcast %cst_21 : f32 to vector<8x128xf32>
    %90 = arith.addf %89, %88 : vector<8x128xf32>
    %91 = arith.divf %89, %90 : vector<8x128xf32>
    %92 = arith.mulf %91, %17 : vector<8x128xf32>
    %93 = arith.addf %92, %20 : vector<8x128xf32>
    %94 = vector.extract_strided_slice %93 {offsets = [0, 0], sizes = [8, 32], strides = [1, 1]} : vector<8x128xf32> to vector<8x32xf32>
    %95 = vector.extract_strided_slice %93 {offsets = [0, 32], sizes = [8, 32], strides = [1, 1]} : vector<8x128xf32> to vector<8x32xf32>
    %96 = vector.extract_strided_slice %93 {offsets = [0, 64], sizes = [8, 32], strides = [1, 1]} : vector<8x128xf32> to vector<8x32xf32>
    %97 = vector.extract_strided_slice %93 {offsets = [0, 96], sizes = [8, 32], strides = [1, 1]} : vector<8x128xf32> to vector<8x32xf32>
    %98 = arith.mulf %95, %80 : vector<8x32xf32>
    %99 = arith.mulf %94, %96 : vector<8x32xf32>
    %100 = arith.addf %98, %99 : vector<8x32xf32>
    %101 = math.tanh %100 : vector<8x32xf32>
    %102 = arith.mulf %97, %101 : vector<8x32xf32>
    %103 = vector.extract_strided_slice %7 {offsets = [0, 4, 0], sizes = [8, 1, 128], strides = [1, 1, 1]} : vector<8x8x128xf32> to vector<8x1x128xf32>
    %104 = vector.shape_cast %103 : vector<8x1x128xf32> to vector<8x128xf32>
    %cst_22 = arith.constant dense<0.000000e+00> : vector<8x128xf32>
    %105 = tpu.matmul %102, %8, %cst_22 {dimension_numbers = #tpu.dot_dimension_numbers<[1], [0], [0], [1], [0, 0, 1, 1], [], []>} : vector<8x32xf32>, vector<32x128xf32>, vector<8x128xf32> -> vector<8x128xf32>
    %106 = arith.addf %104, %105 : vector<8x128xf32>
    %107 = arith.negf %106 : vector<8x128xf32>
    %108 = math.exp %107 : vector<8x128xf32>
    %cst_23 = arith.constant 1.000000e+00 : f32
    %109 = vector.broadcast %cst_23 : f32 to vector<8x128xf32>
    %110 = arith.addf %109, %108 : vector<8x128xf32>
    %111 = arith.divf %109, %110 : vector<8x128xf32>
    %112 = arith.mulf %111, %17 : vector<8x128xf32>
    %113 = arith.addf %112, %20 : vector<8x128xf32>
    %114 = vector.extract_strided_slice %113 {offsets = [0, 0], sizes = [8, 32], strides = [1, 1]} : vector<8x128xf32> to vector<8x32xf32>
    %115 = vector.extract_strided_slice %113 {offsets = [0, 32], sizes = [8, 32], strides = [1, 1]} : vector<8x128xf32> to vector<8x32xf32>
    %116 = vector.extract_strided_slice %113 {offsets = [0, 64], sizes = [8, 32], strides = [1, 1]} : vector<8x128xf32> to vector<8x32xf32>
    %117 = vector.extract_strided_slice %113 {offsets = [0, 96], sizes = [8, 32], strides = [1, 1]} : vector<8x128xf32> to vector<8x32xf32>
    %118 = arith.mulf %115, %100 : vector<8x32xf32>
    %119 = arith.mulf %114, %116 : vector<8x32xf32>
    %120 = arith.addf %118, %119 : vector<8x32xf32>
    %121 = math.tanh %120 : vector<8x32xf32>
    %122 = arith.mulf %117, %121 : vector<8x32xf32>
    %123 = vector.extract_strided_slice %7 {offsets = [0, 5, 0], sizes = [8, 1, 128], strides = [1, 1, 1]} : vector<8x8x128xf32> to vector<8x1x128xf32>
    %124 = vector.shape_cast %123 : vector<8x1x128xf32> to vector<8x128xf32>
    %cst_24 = arith.constant dense<0.000000e+00> : vector<8x128xf32>
    %125 = tpu.matmul %122, %8, %cst_24 {dimension_numbers = #tpu.dot_dimension_numbers<[1], [0], [0], [1], [0, 0, 1, 1], [], []>} : vector<8x32xf32>, vector<32x128xf32>, vector<8x128xf32> -> vector<8x128xf32>
    %126 = arith.addf %124, %125 : vector<8x128xf32>
    %127 = arith.negf %126 : vector<8x128xf32>
    %128 = math.exp %127 : vector<8x128xf32>
    %cst_25 = arith.constant 1.000000e+00 : f32
    %129 = vector.broadcast %cst_25 : f32 to vector<8x128xf32>
    %130 = arith.addf %129, %128 : vector<8x128xf32>
    %131 = arith.divf %129, %130 : vector<8x128xf32>
    %132 = arith.mulf %131, %17 : vector<8x128xf32>
    %133 = arith.addf %132, %20 : vector<8x128xf32>
    %134 = vector.extract_strided_slice %133 {offsets = [0, 0], sizes = [8, 32], strides = [1, 1]} : vector<8x128xf32> to vector<8x32xf32>
    %135 = vector.extract_strided_slice %133 {offsets = [0, 32], sizes = [8, 32], strides = [1, 1]} : vector<8x128xf32> to vector<8x32xf32>
    %136 = vector.extract_strided_slice %133 {offsets = [0, 64], sizes = [8, 32], strides = [1, 1]} : vector<8x128xf32> to vector<8x32xf32>
    %137 = vector.extract_strided_slice %133 {offsets = [0, 96], sizes = [8, 32], strides = [1, 1]} : vector<8x128xf32> to vector<8x32xf32>
    %138 = arith.mulf %135, %120 : vector<8x32xf32>
    %139 = arith.mulf %134, %136 : vector<8x32xf32>
    %140 = arith.addf %138, %139 : vector<8x32xf32>
    %141 = math.tanh %140 : vector<8x32xf32>
    %142 = arith.mulf %137, %141 : vector<8x32xf32>
    %143 = vector.extract_strided_slice %7 {offsets = [0, 6, 0], sizes = [8, 1, 128], strides = [1, 1, 1]} : vector<8x8x128xf32> to vector<8x1x128xf32>
    %144 = vector.shape_cast %143 : vector<8x1x128xf32> to vector<8x128xf32>
    %cst_26 = arith.constant dense<0.000000e+00> : vector<8x128xf32>
    %145 = tpu.matmul %142, %8, %cst_26 {dimension_numbers = #tpu.dot_dimension_numbers<[1], [0], [0], [1], [0, 0, 1, 1], [], []>} : vector<8x32xf32>, vector<32x128xf32>, vector<8x128xf32> -> vector<8x128xf32>
    %146 = arith.addf %144, %145 : vector<8x128xf32>
    %147 = arith.negf %146 : vector<8x128xf32>
    %148 = math.exp %147 : vector<8x128xf32>
    %cst_27 = arith.constant 1.000000e+00 : f32
    %149 = vector.broadcast %cst_27 : f32 to vector<8x128xf32>
    %150 = arith.addf %149, %148 : vector<8x128xf32>
    %151 = arith.divf %149, %150 : vector<8x128xf32>
    %152 = arith.mulf %151, %17 : vector<8x128xf32>
    %153 = arith.addf %152, %20 : vector<8x128xf32>
    %154 = vector.extract_strided_slice %153 {offsets = [0, 0], sizes = [8, 32], strides = [1, 1]} : vector<8x128xf32> to vector<8x32xf32>
    %155 = vector.extract_strided_slice %153 {offsets = [0, 32], sizes = [8, 32], strides = [1, 1]} : vector<8x128xf32> to vector<8x32xf32>
    %156 = vector.extract_strided_slice %153 {offsets = [0, 64], sizes = [8, 32], strides = [1, 1]} : vector<8x128xf32> to vector<8x32xf32>
    %157 = vector.extract_strided_slice %153 {offsets = [0, 96], sizes = [8, 32], strides = [1, 1]} : vector<8x128xf32> to vector<8x32xf32>
    %158 = arith.mulf %155, %140 : vector<8x32xf32>
    %159 = arith.mulf %154, %156 : vector<8x32xf32>
    %160 = arith.addf %158, %159 : vector<8x32xf32>
    %161 = math.tanh %160 : vector<8x32xf32>
    %162 = arith.mulf %157, %161 : vector<8x32xf32>
    %163 = vector.extract_strided_slice %7 {offsets = [0, 7, 0], sizes = [8, 1, 128], strides = [1, 1, 1]} : vector<8x8x128xf32> to vector<8x1x128xf32>
    %164 = vector.shape_cast %163 : vector<8x1x128xf32> to vector<8x128xf32>
    %cst_28 = arith.constant dense<0.000000e+00> : vector<8x128xf32>
    %165 = tpu.matmul %162, %8, %cst_28 {dimension_numbers = #tpu.dot_dimension_numbers<[1], [0], [0], [1], [0, 0, 1, 1], [], []>} : vector<8x32xf32>, vector<32x128xf32>, vector<8x128xf32> -> vector<8x128xf32>
    %166 = arith.addf %164, %165 : vector<8x128xf32>
    %167 = arith.negf %166 : vector<8x128xf32>
    %168 = math.exp %167 : vector<8x128xf32>
    %cst_29 = arith.constant 1.000000e+00 : f32
    %169 = vector.broadcast %cst_29 : f32 to vector<8x128xf32>
    %170 = arith.addf %169, %168 : vector<8x128xf32>
    %171 = arith.divf %169, %170 : vector<8x128xf32>
    %172 = arith.mulf %171, %17 : vector<8x128xf32>
    %173 = arith.addf %172, %20 : vector<8x128xf32>
    %174 = vector.extract_strided_slice %173 {offsets = [0, 0], sizes = [8, 32], strides = [1, 1]} : vector<8x128xf32> to vector<8x32xf32>
    %175 = vector.extract_strided_slice %173 {offsets = [0, 32], sizes = [8, 32], strides = [1, 1]} : vector<8x128xf32> to vector<8x32xf32>
    %176 = vector.extract_strided_slice %173 {offsets = [0, 64], sizes = [8, 32], strides = [1, 1]} : vector<8x128xf32> to vector<8x32xf32>
    %177 = vector.extract_strided_slice %173 {offsets = [0, 96], sizes = [8, 32], strides = [1, 1]} : vector<8x128xf32> to vector<8x32xf32>
    %178 = arith.mulf %175, %160 : vector<8x32xf32>
    %179 = arith.mulf %174, %176 : vector<8x32xf32>
    %180 = arith.addf %178, %179 : vector<8x32xf32>
    %181 = math.tanh %180 : vector<8x32xf32>
    %182 = arith.mulf %177, %181 : vector<8x32xf32>
    %183 = vector.shape_cast %42 : vector<8x32xf32> to vector<1x8x32xf32>
    %184 = vector.shape_cast %62 : vector<8x32xf32> to vector<1x8x32xf32>
    %185 = vector.shape_cast %82 : vector<8x32xf32> to vector<1x8x32xf32>
    %186 = vector.shape_cast %102 : vector<8x32xf32> to vector<1x8x32xf32>
    %187 = vector.shape_cast %122 : vector<8x32xf32> to vector<1x8x32xf32>
    %188 = vector.shape_cast %142 : vector<8x32xf32> to vector<1x8x32xf32>
    %189 = vector.shape_cast %162 : vector<8x32xf32> to vector<1x8x32xf32>
    %190 = vector.shape_cast %182 : vector<8x32xf32> to vector<1x8x32xf32>
    %191 = tpu.concatenate %183, %184, %185, %186, %187, %188, %189, %190 in 0 : vector<1x8x32xf32>, vector<1x8x32xf32>, vector<1x8x32xf32>, vector<1x8x32xf32>, vector<1x8x32xf32>, vector<1x8x32xf32>, vector<1x8x32xf32>, vector<1x8x32xf32> -> vector<8x8x32xf32>
    %c0_30 = arith.constant 0 : index
    %c0_31 = arith.constant 0 : index
    %192 = vector.load %arg5[%c0_30, %c0_31] : memref<98x1xf32, #tpu.memory_space<vmem>>, vector<32x1xf32>
    %c96 = arith.constant 96 : index
    %c0_32 = arith.constant 0 : index
    %193 = vector.load %arg5[%c96, %c0_32] : memref<98x1xf32, #tpu.memory_space<vmem>>, vector<1x1xf32>
    %194 = vector.shape_cast %191 : vector<8x8x32xf32> to vector<64x32xf32>
    %cst_33 = arith.constant dense<0.000000e+00> : vector<64x1xf32>
    %195 = tpu.matmul %194, %192, %cst_33 {dimension_numbers = #tpu.dot_dimension_numbers<[1], [0], [0], [1], [0, 0, 1, 1], [], []>} : vector<64x32xf32>, vector<32x1xf32>, vector<64x1xf32> -> vector<64x1xf32>
    %196 = vector.broadcast %193 : vector<1x1xf32> to vector<64x1xf32>
    %197 = arith.addf %195, %196 : vector<64x1xf32>
    %198 = math.tanh %197 : vector<64x1xf32>
    %199 = vector.shape_cast %198 : vector<64x1xf32> to vector<8x8x1xf32>
    %cst_34 = arith.constant dense<0xFF800000> : vector<8x1xf32>
    %200 = vector.multi_reduction <maximumf>, %199, %cst_34 [0] : vector<8x8x1xf32> to vector<8x1xf32>
    %201 = vector.shape_cast %200 : vector<8x1xf32> to vector<1x8x1xf32>
    %202 = vector.broadcast %201 : vector<1x8x1xf32> to vector<8x8x1xf32>
    %203 = arith.subf %199, %202 : vector<8x8x1xf32>
    %204 = math.exp %203 : vector<8x8x1xf32>
    %cst_35 = arith.constant dense<0.000000e+00> : vector<8x1xf32>
    %205 = vector.multi_reduction <add>, %204, %cst_35 [0] : vector<8x8x1xf32> to vector<8x1xf32>
    %206 = vector.shape_cast %205 : vector<8x1xf32> to vector<1x8x1xf32>
    %207 = tpu.reciprocal %206 : vector<1x8x1xf32> -> vector<1x8x1xf32>
    %208 = vector.broadcast %207 : vector<1x8x1xf32> to vector<8x8x1xf32>
    %209 = arith.mulf %204, %208 : vector<8x8x1xf32>
    %210 = vector.broadcast %209 : vector<8x8x1xf32> to vector<8x8x32xf32>
    %211 = arith.mulf %210, %191 : vector<8x8x32xf32>
    %cst_36 = arith.constant dense<0.000000e+00> : vector<8x32xf32>
    %212 = vector.multi_reduction <add>, %211, %cst_36 [0] : vector<8x8x32xf32> to vector<8x32xf32>
    "tpu.trace_start"() <{level = 10 : i32, message = "ih,jh->ij"}> : () -> ()
    %cst_37 = arith.constant dense<0.000000e+00> : vector<8x8xf32>
    %213 = tpu.matmul %212, %212, %cst_37 {dimension_numbers = #tpu.dot_dimension_numbers<[1], [1], [0], [0], [0, 0, 1, 0], [], []>} : vector<8x32xf32>, vector<8x32xf32>, vector<8x8xf32> -> vector<8x8xf32>
    "tpu.trace_stop"() : () -> ()
    %c0_38 = arith.constant 0 : index
    %c0_39 = arith.constant 0 : index
    %214 = vector.load %arg7[%c0_38, %c0_39] : memref<8x8xf32, #tpu.memory_space<vmem>>, vector<8x8xf32>
    %215 = arith.mulf %213, %214 : vector<8x8xf32>
    %cst_40 = arith.constant dense<0.000000e+00> : vector<8x32xf32>
    %216 = tpu.matmul %215, %212, %cst_40 {dimension_numbers = #tpu.dot_dimension_numbers<[1], [0], [0], [1], [0, 0, 1, 1], [], []>} : vector<8x8xf32>, vector<8x32xf32>, vector<8x32xf32> -> vector<8x32xf32>
    %c32 = arith.constant 32 : index
    %c0_41 = arith.constant 0 : index
    %217 = vector.load %arg5[%c32, %c0_41] : memref<98x1xf32, #tpu.memory_space<vmem>>, vector<32x1xf32>
    %c64 = arith.constant 64 : index
    %c0_42 = arith.constant 0 : index
    %218 = vector.load %arg5[%c64, %c0_42] : memref<98x1xf32, #tpu.memory_space<vmem>>, vector<32x1xf32>
    %c97 = arith.constant 97 : index
    %c0_43 = arith.constant 0 : index
    %219 = vector.load %arg5[%c97, %c0_43] : memref<98x1xf32, #tpu.memory_space<vmem>>, vector<1x1xf32>
    %cst_44 = arith.constant dense<0.000000e+00> : vector<8x1xf32>
    %220 = tpu.matmul %212, %217, %cst_44 {dimension_numbers = #tpu.dot_dimension_numbers<[1], [0], [0], [1], [0, 0, 1, 1], [], []>} : vector<8x32xf32>, vector<32x1xf32>, vector<8x1xf32> -> vector<8x1xf32>
    %cst_45 = arith.constant dense<0.000000e+00> : vector<8x1xf32>
    %221 = tpu.matmul %216, %218, %cst_45 {dimension_numbers = #tpu.dot_dimension_numbers<[1], [0], [0], [1], [0, 0, 1, 1], [], []>} : vector<8x32xf32>, vector<32x1xf32>, vector<8x1xf32> -> vector<8x1xf32>
    %222 = arith.addf %220, %221 : vector<8x1xf32>
    %223 = vector.broadcast %219 : vector<1x1xf32> to vector<8x1xf32>
    %224 = arith.addf %222, %223 : vector<8x1xf32>
    %225 = vector.shape_cast %224 : vector<8x1xf32> to vector<1x8xf32>
    %226 = vector.shape_cast %225 : vector<1x8xf32> to vector<1x1x8xf32>
    %c0_46 = arith.constant 0 : index
    %c0_47 = arith.constant 0 : index
    %c0_48 = arith.constant 0 : index
    %227 = vector.load %arg8[%c0_46, %c0_47, %c0_48] : memref<1x1x8xf32, #tpu.memory_space<vmem>>, vector<1x1x8xf32>
    tpu.vector_store %arg8[%c0_46, %c0_47, %c0_48], %226 {strides = array<i32>} : memref<1x1x8xf32, #tpu.memory_space<vmem>>, vector<1x1x8xf32>,
    %228 = vector.broadcast %224 : vector<8x1xf32> to vector<8x8xf32>
    %229 = vector.broadcast %225 : vector<1x8xf32> to vector<8x8xf32>
    %230 = arith.cmpf ogt, %228, %229 : vector<8x8xf32>
    %231 = arith.extui %230 : vector<8x8xi1> to vector<8x8xi32>
    %232 = arith.sitofp %231 : vector<8x8xi32> to vector<8x8xf32>
    %cst_49 = arith.constant dense<0.000000e+00> : vector<8xf32>
    %233 = vector.multi_reduction <add>, %232, %cst_49 [0] : vector<8x8xf32> to vector<8xf32>
    %234 = vector.shape_cast %233 : vector<8xf32> to vector<1x8xf32>
    %cst_50 = arith.constant 3.000000e+00 : f32
    %235 = vector.broadcast %cst_50 : f32 to vector<1x8xf32>
    %236 = arith.cmpf olt, %234, %235 : vector<1x8xf32>
    %cst_51 = arith.constant 0.000000e+00 : f32
    %237 = vector.broadcast %cst_51 : f32 to vector<1x8xf32>
    %238 = arith.select %236, %225, %237 : vector<1x8xi1>, vector<1x8xf32>
    %c0_52 = arith.constant 0 : index
    %c0_53 = arith.constant 0 : index
    %239 = vector.load %arg6[%c0_52, %c0_53] : memref<9x3xf32, #tpu.memory_space<vmem>>, vector<8x3xf32>
    %cst_54 = arith.constant dense<0.000000e+00> : vector<1x3xf32>
    %240 = tpu.matmul %238, %239, %cst_54 {dimension_numbers = #tpu.dot_dimension_numbers<[1], [0], [0], [1], [0, 0, 1, 1], [], []>} : vector<1x8xf32>, vector<8x3xf32>, vector<1x3xf32> -> vector<1x3xf32>
    %c8 = arith.constant 8 : index
    %c0_55 = arith.constant 0 : index
    %241 = vector.load %arg6[%c8, %c0_55] : memref<9x3xf32, #tpu.memory_space<vmem>>, vector<1x3xf32>
    %242 = arith.addf %240, %241 : vector<1x3xf32>
    %243 = vector.shape_cast %242 : vector<1x3xf32> to vector<1x1x3xf32>
    %c0_56 = arith.constant 0 : index
    %c0_57 = arith.constant 0 : index
    %c0_58 = arith.constant 0 : index
    %244 = vector.load %arg9[%c0_56, %c0_57, %c0_58] : memref<1x1x3xf32, #tpu.memory_space<vmem>>, vector<1x1x3xf32>
    tpu.vector_store %arg9[%c0_56, %c0_57, %c0_58], %243 {strides = array<i32>} : memref<1x1x3xf32, #tpu.memory_space<vmem>>, vector<1x1x3xf32>,
    return
  }
  func.func @transform_0(%arg0: i32) -> (i32, i32, i32) {
    %c0_i32 = arith.constant 0 : i32
    %c0_i32_0 = arith.constant 0 : i32
    %c0_i32_1 = arith.constant 0 : i32
    return %arg0, %c0_i32, %c0_i32_0 : i32, i32, i32
  }
  func.func @transform_1(%arg0: i32) -> (i32, i32) {
    %c0_i32 = arith.constant 0 : i32
    %c0_i32_0 = arith.constant 0 : i32
    %c0_i32_1 = arith.constant 0 : i32
    return %c0_i32, %c0_i32_0 : i32, i32
  }
  func.func @transform_2(%arg0: i32) -> (i32, i32) {
    %c0_i32 = arith.constant 0 : i32
    %c0_i32_0 = arith.constant 0 : i32
    %c0_i32_1 = arith.constant 0 : i32
    return %c0_i32, %c0_i32_0 : i32, i32
  }
  func.func @transform_3(%arg0: i32) -> (i32, i32) {
    %c0_i32 = arith.constant 0 : i32
    %c0_i32_0 = arith.constant 0 : i32
    %c0_i32_1 = arith.constant 0 : i32
    return %c0_i32, %c0_i32_0 : i32, i32
  }
  func.func @transform_4(%arg0: i32) -> (i32, i32) {
    %c0_i32 = arith.constant 0 : i32
    %c0_i32_0 = arith.constant 0 : i32
    %c0_i32_1 = arith.constant 0 : i32
    return %c0_i32, %c0_i32_0 : i32, i32
  }
  func.func @transform_5(%arg0: i32) -> (i32, i32) {
    %c0_i32 = arith.constant 0 : i32
    %c0_i32_0 = arith.constant 0 : i32
    %c0_i32_1 = arith.constant 0 : i32
    return %c0_i32, %c0_i32_0 : i32, i32
  }
  func.func @transform_6(%arg0: i32) -> (i32, i32) {
    %c0_i32 = arith.constant 0 : i32
    %c0_i32_0 = arith.constant 0 : i32
    %c0_i32_1 = arith.constant 0 : i32
    return %c0_i32, %c0_i32_0 : i32, i32
  }
  func.func @transform_7(%arg0: i32) -> (i32, i32, i32) {
    %c0_i32 = arith.constant 0 : i32
    %c0_i32_0 = arith.constant 0 : i32
    %c0_i32_1 = arith.constant 0 : i32
    return %arg0, %c0_i32, %c0_i32_0 : i32, i32, i32
  }
  func.func @transform_8(%arg0: i32) -> (i32, i32, i32) {
    %c0_i32 = arith.constant 0 : i32
    %c0_i32_0 = arith.constant 0 : i32
    %c0_i32_1 = arith.constant 0 : i32
    return %arg0, %c0_i32, %c0_i32_0 : i32, i32, i32
  }
}

</mosaic_0001>

<llo_original>
// kernel: actor_forward.1
$region0: #{actor_forward.1}
  #allocation0 [shape = 'u32[]', space=smem, size = 0x4, offset = 0x4, fixed_abs, tag = 'smem constant byte address 0x4 - core index']
  #allocation1 [shape = 'u32[144,128]{1,0:T(1,128)}', space=vmem, size = 0x12000, scoped, tag = 'internal scratch']
  %s0 = inlined_call_operand.vmem [shape: f32[2,64,4], index: 0, kind: input, shape index: {}]
  %s1 = inlined_call_operand.vmem [shape: f32[4,128], index: 1, kind: input, shape index: {}]
  %s2 = inlined_call_operand.vmem [shape: f32[32,128], index: 2, kind: input, shape index: {}]
  %s3 = inlined_call_operand.vmem [shape: f32[1,128], index: 3, kind: input, shape index: {}]
  %s4 = inlined_call_operand.vmem [shape: f32[98,1], index: 4, kind: input, shape index: {}]
  %s5 = inlined_call_operand.vmem [shape: f32[9,3], index: 5, kind: input, shape index: {}]
  %s6 = inlined_call_operand.vmem [shape: f32[8,8], index: 6, kind: input, shape index: {}]
  %s7 = inlined_call_operand.hbm [shape: f32[2,1,8], index: 7, kind: output, shape index: {0}]
  %s8 = inlined_call_operand.hbm [shape: f32[2,1,3], index: 8, kind: output, shape index: {1}]
  %9 = xla_tuple %s7, %s8
  %s10 = sld [smem:[#allocation0]]
  $region69: #{actor_forward.1} parent=0
    _
  %s12 = ssub.s32 1, %s10
  %s13 = scalar_select 0, %s12, %s10
  $region1: #{actor_forward.1} parent=0
    #allocation2 [shape = 'u8[1024]{0}', space=vmem, size = 0x400, scoped, tag = 'output window, operand 0']
    #allocation3 [shape = 's32[2]{0}', space=sflag, size = 0x8, scoped, tag = 'scoped memory for actor_forward.1']
    #allocation4 [shape = 'u8[1024]{0}', space=vmem, size = 0x400, scoped, tag = 'output window, operand 1']
    #allocation5 [shape = 's32[2]{0}', space=sflag, size = 0x8, scoped, tag = 'scoped memory for actor_forward.1']
    %14 = vsyncpa [#allocation3], 0
    %s15 = scalar_lea.sflag [#allocation3], 1
    %16 = vsyncpa %s15, 0
    %17 = vsyncpa [#allocation5], 0
    %s18 = scalar_lea.sflag [#allocation5], 1
    %19 = vsyncpa %s18, 0
    loop: start=0, step=1, limit=4
    $region2: #{actor_forward.1} parent=1 // loop_pre_header
      _
    $region3: #{actor_forward.1} parent=1 // loop_header
      %s21 = sphi 0, %s25
      %p22 = scmp.ge.s32.totalorder %s21, 4
      %s31 = sphi 0, %s33
      %s34 = sphi 0, %s31
      %s35 = sphi 0, %s34
      %s51 = sphi 0, %s35
      %s55 = sphi 0, %s55
      %s57 = sphi 0, %s55
      %s58 = sphi 0, %s57
      %s72 = sphi 0, %s58
      %s76 = sphi 0, %s76
      %s78 = sphi 0, %s76
      %s79 = sphi 0, %s78
      %s93 = sphi 0, %s79
      %s97 = sphi 0, %s97
      %s99 = sphi 0, %s97
      %s100 = sphi 0, %s99
      %s114 = sphi 0, %s100
      %s118 = sphi 0, %s118
      %s120 = sphi 0, %s118
      %s121 = sphi 0, %s120
      %s135 = sphi 0, %s121
      %s139 = sphi 0, %s139
      %s141 = sphi 0, %s139
      %s142 = sphi 0, %s141
      %s156 = sphi 0, %s142
      %s160 = sphi 0, %s160
      %s162 = sphi 0, %s160
      %s163 = sphi 0, %s162
      %s177 = sphi 0, %s163
      %s183 = sphi 0, %s185
      %s186 = sphi 0, %s183
      %s187 = sphi 0, %s186
      %s203 = sphi 0, %s187
      %s209 = sphi 0, %s211
      %s212 = sphi 0, %s209
      %s213 = sphi 0, %s212
      %s229 = sphi 0, %s213
    $region4: #{actor_forward.1} parent=1 // loop_header_branch
      %24 = sbr.rel (%p22) target = $region8
    $region5: #{actor_forward.1} parent=1 // loop_body
      %s26 = ssub.s32 %s21, 1
      %s27 = ssub.s32 %s21, 2
      %s28 = sadd.s32 %s21, 1
      %s29 = ssub.s32 %s21, %s28
      %p30 = scmp.eq.s32.totalorder %s29, 0
      %s32 = sadd.s32 %s31, 1
      %s33 = scalar_select %p30, %s31, %s32
      %p36 = pneg %p30
      %p37 = scmp.eq.s32.totalorder %s21, 1
      %p38 = por %p36, %p37
      %p39 = scmp.ne.s32.totalorder %s31, %s34
      %p40 = scmp.eq.s32.totalorder %s21, 0
      %p41 = por %p39, %p40
      %p42 = scmp.ne.s32.totalorder %s31, %s34
      %p43 = scmp.eq.s32.totalorder %s26, 1
      %p44 = por %p42, %p43
      %p45 = scmp.ne.s32.totalorder %s34, %s35
      %p46 = scmp.eq.s32.totalorder %s26, 0
      %p47 = por %p45, %p46
      %p48 = scmp.ne.s32.totalorder %s34, %s35
      %p49 = scmp.eq.s32.totalorder %s27, 1
      %p50 = por %p48, %p49
      %p52 = scmp.ne.s32.totalorder %s35, %s51
      %p53 = scmp.eq.s32.totalorder %s27, 0
      %p54 = por %p52, %p53
      %s56 = sadd.s32 %s55, 1
      %p59 = scmp.eq.s32.totalorder %s21, 1
      %p60 = scmp.ne.s32.totalorder %s55, %s57
      %p61 = scmp.eq.s32.totalorder %s21, 0
      %p62 = por %p60, %p61
      %p63 = scmp.ne.s32.totalorder %s55, %s57
      %p64 = scmp.eq.s32.totalorder %s26, 1
      %p65 = por %p63, %p64
      %p66 = scmp.ne.s32.totalorder %s57, %s58
      %p67 = scmp.eq.s32.totalorder %s26, 0
      %p68 = por %p66, %p67
      %p69 = scmp.ne.s32.totalorder %s57, %s58
      %p70 = scmp.eq.s32.totalorder %s27, 1
      %p71 = por %p69, %p70
      %p73 = scmp.ne.s32.totalorder %s58, %s72
      %p74 = scmp.eq.s32.totalorder %s27, 0
      %p75 = por %p73, %p74
      %s77 = sadd.s32 %s76, 1
      %p80 = scmp.eq.s32.totalorder %s21, 1
      %p81 = scmp.ne.s32.totalorder %s76, %s78
      %p82 = scmp.eq.s32.totalorder %s21, 0
      %p83 = por %p81, %p82
      %p84 = scmp.ne.s32.totalorder %s76, %s78
      %p85 = scmp.eq.s32.totalorder %s26, 1
      %p86 = por %p84, %p85
      %p87 = scmp.ne.s32.totalorder %s78, %s79
      %p88 = scmp.eq.s32.totalorder %s26, 0
      %p89 = por %p87, %p88
      %p90 = scmp.ne.s32.totalorder %s78, %s79
      %p91 = scmp.eq.s32.totalorder %s27, 1
      %p92 = por %p90, %p91
      %p94 = scmp.ne.s32.totalorder %s79, %s93
      %p95 = scmp.eq.s32.totalorder %s27, 0
      %p96 = por %p94, %p95
      %s98 = sadd.s32 %s97, 1
      %p101 = scmp.eq.s32.totalorder %s21, 1
      %p102 = scmp.ne.s32.totalorder %s97, %s99
      %p103 = scmp.eq.s32.totalorder %s21, 0
      %p104 = por %p102, %p103
      %p105 = scmp.ne.s32.totalorder %s97, %s99
      %p106 = scmp.eq.s32.totalorder %s26, 1
      %p107 = por %p105, %p106
      %p108 = scmp.ne.s32.totalorder %s99, %s100
      %p109 = scmp.eq.s32.totalorder %s26, 0
      %p110 = por %p108, %p109
      %p111 = scmp.ne.s32.totalorder %s99, %s100
      %p112 = scmp.eq.s32.totalorder %s27, 1
      %p113 = por %p111, %p112
      %p115 = scmp.ne.s32.totalorder %s100, %s114
      %p116 = scmp.eq.s32.totalorder %s27, 0
      %p117 = por %p115, %p116
      %s119 = sadd.s32 %s118, 1
      %p122 = scmp.eq.s32.totalorder %s21, 1
      %p123 = scmp.ne.s32.totalorder %s118, %s120
      %p124 = scmp.eq.s32.totalorder %s21, 0
      %p125 = por %p123, %p124
      %p126 = scmp.ne.s32.totalorder %s118, %s120
      %p127 = scmp.eq.s32.totalorder %s26, 1
      %p128 = por %p126, %p127
      %p129 = scmp.ne.s32.totalorder %s120, %s121
      %p130 = scmp.eq.s32.totalorder %s26, 0
      %p131 = por %p129, %p130
      %p132 = scmp.ne.s32.totalorder %s120, %s121
      %p133 = scmp.eq.s32.totalorder %s27, 1
      %p134 = por %p132, %p133
      %p136 = scmp.ne.s32.totalorder %s121, %s135
      %p137 = scmp.eq.s32.totalorder %s27, 0
      %p138 = por %p136, %p137
      %s140 = sadd.s32 %s139, 1
      %p143 = scmp.eq.s32.totalorder %s21, 1
      %p144 = scmp.ne.s32.totalorder %s139, %s141
      %p145 = scmp.eq.s32.totalorder %s21, 0
      %p146 = por %p144, %p145
      %p147 = scmp.ne.s32.totalorder %s139, %s141
      %p148 = scmp.eq.s32.totalorder %s26, 1
      %p149 = por %p147, %p148
      %p150 = scmp.ne.s32.totalorder %s141, %s142
      %p151 = scmp.eq.s32.totalorder %s26, 0
      %p152 = por %p150, %p151
      %p153 = scmp.ne.s32.totalorder %s141, %s142
      %p154 = scmp.eq.s32.totalorder %s27, 1
      %p155 = por %p153, %p154
      %p157 = scmp.ne.s32.totalorder %s142, %s156
      %p158 = scmp.eq.s32.totalorder %s27, 0
      %p159 = por %p157, %p158
      %s161 = sadd.s32 %s160, 1
      %p164 = scmp.eq.s32.totalorder %s21, 1
      %p165 = scmp.ne.s32.totalorder %s160, %s162
      %p166 = scmp.eq.s32.totalorder %s21, 0
      %p167 = por %p165, %p166
      %p168 = scmp.ne.s32.totalorder %s160, %s162
      %p169 = scmp.eq.s32.totalorder %s26, 1
      %p170 = por %p168, %p169
      %p171 = scmp.ne.s32.totalorder %s162, %s163
      %p172 = scmp.eq.s32.totalorder %s26, 0
      %p173 = por %p171, %p172
      %p174 = scmp.ne.s32.totalorder %s162, %s163
      %p175 = scmp.eq.s32.totalorder %s27, 1
      %p176 = por %p174, %p175
      %p178 = scmp.ne.s32.totalorder %s163, %s177
      %p179 = scmp.eq.s32.totalorder %s27, 0
      %p180 = por %p178, %p179
      %s181 = ssub.s32 %s21, %s28
      %p182 = scmp.eq.s32.totalorder %s181, 0
      %s184 = sadd.s32 %s183, 1
      %s185 = scalar_select %p182, %s183, %s184
      %p188 = pneg %p182
      %p189 = scmp.eq.s32.totalorder %s21, 1
      %p190 = por %p188, %p189
      %p191 = scmp.ne.s32.totalorder %s183, %s186
      %p192 = scmp.eq.s32.totalorder %s21, 0
      %p193 = por %p191, %p192
      %p194 = scmp.ne.s32.totalorder %s183, %s186
      %p195 = scmp.eq.s32.totalorder %s26, 1
      %p196 = por %p194, %p195
      %p197 = scmp.ne.s32.totalorder %s186, %s187
      %p198 = scmp.eq.s32.totalorder %s26, 0
      %p199 = por %p197, %p198
      %p200 = scmp.ne.s32.totalorder %s186, %s187
      %p201 = scmp.eq.s32.totalorder %s27, 1
      %p202 = por %p200, %p201
      %p204 = scmp.ne.s32.totalorder %s187, %s203
      %p205 = scmp.eq.s32.totalorder %s27, 0
      %p206 = por %p204, %p205
      %s207 = ssub.s32 %s21, %s28
      %p208 = scmp.eq.s32.totalorder %s207, 0
      %s210 = sadd.s32 %s209, 1
      %s211 = scalar_select %p208, %s209, %s210
      %p214 = pneg %p208
      %p215 = scmp.eq.s32.totalorder %s21, 1
      %p216 = por %p214, %p215
      %p217 = scmp.ne.s32.totalorder %s209, %s212
      %p218 = scmp.eq.s32.totalorder %s21, 0
      %p219 = por %p217, %p218
      %p220 = scmp.ne.s32.totalorder %s209, %s212
      %p221 = scmp.eq.s32.totalorder %s26, 1
      %p222 = por %p220, %p221
      %p223 = scmp.ne.s32.totalorder %s212, %s213
      %p224 = scmp.eq.s32.totalorder %s26, 0
      %p225 = por %p223, %p224
      %p226 = scmp.ne.s32.totalorder %s212, %s213
      %p227 = scmp.eq.s32.totalorder %s27, 1
      %p228 = por %p226, %p227
      %p230 = scmp.ne.s32.totalorder %s213, %s229
      %p231 = scmp.eq.s32.totalorder %s27, 0
      %p232 = por %p230, %p231
      %p233 = scmp.le.s32.totalorder 1, %s21
      %p234 = scmp.lt.s32.totalorder %s21, 3
      %p235 = pnand %p233, %p234
      %p236 = pneg %p235
      // Predicated region
      $region9: #{actor_forward.1} parent=5 // pred_check
        _
      $region10: #{actor_forward.1} parent=5 // pred_check_branch
        %238 = sbr.rel (%p235) target = $region12
      $region11: #{actor_forward.1} parent=5 // pred_region
        %s239 = ssub.s32 %s21, 1
        // Predicated region
        $region13: #{actor_forward.1} parent=11 // pred_check
          %p240 = pneg %p68
        $region14: #{actor_forward.1} parent=11 // pred_check_branch
          %242 = sbr.rel (%p240) target = $region16
        $region15: #{actor_forward.1} parent=11 // pred_region
          _
        $region16: #{actor_forward.1} parent=11 // pred_fallthru
          _
        // Predicated region
        $region17: #{actor_forward.1} parent=11 // pred_check
          %p243 = pneg %p89
        $region18: #{actor_forward.1} parent=11 // pred_check_branch
          %245 = sbr.rel (%p243) target = $region20
        $region19: #{actor_forward.1} parent=11 // pred_region
          _
        $region20: #{actor_forward.1} parent=11 // pred_fallthru
          _
        // Predicated region
        $region21: #{actor_forward.1} parent=11 // pred_check
          %p246 = pneg %p110
        $region22: #{actor_forward.1} parent=11 // pred_check_branch
          %248 = sbr.rel (%p246) target = $region24
        $region23: #{actor_forward.1} parent=11 // pred_region
          _
        $region24: #{actor_forward.1} parent=11 // pred_fallthru
          _
        // Predicated region
        $region25: #{actor_forward.1} parent=11 // pred_check
          %p249 = pneg %p131
        $region26: #{actor_forward.1} parent=11 // pred_check_branch
          %251 = sbr.rel (%p249) target = $region28
        $region27: #{actor_forward.1} parent=11 // pred_region
          _
        $region28: #{actor_forward.1} parent=11 // pred_fallthru
          _
        // Predicated region
        $region29: #{actor_forward.1} parent=11 // pred_check
          %p252 = pneg %p152
        $region30: #{actor_forward.1} parent=11 // pred_check_branch
          %254 = sbr.rel (%p252) target = $region32
        $region31: #{actor_forward.1} parent=11 // pred_region
          _
        $region32: #{actor_forward.1} parent=11 // pred_fallthru
          _
        // Predicated region
        $region33: #{actor_forward.1} parent=11 // pred_check
          %p255 = pneg %p173
        $region34: #{actor_forward.1} parent=11 // pred_check_branch
          %257 = sbr.rel (%p255) target = $region36
        $region35: #{actor_forward.1} parent=11 // pred_region
          _
        $region36: #{actor_forward.1} parent=11 // pred_fallthru
          _
      $region12: #{actor_forward.1} parent=5 // pred_fallthru
        _
      %p258 = scmp.lt.s32.totalorder %s21, 2
      // Predicated region
      $region37: #{actor_forward.1} parent=5 // pred_check
        %p259 = pneg %p258
      $region38: #{actor_forward.1} parent=5 // pred_check_branch
        %261 = sbr.rel (%p259) target = $region40
      $region39: #{actor_forward.1} parent=5 // pred_region
        // Predicated region
        $region41: #{actor_forward.1} parent=39 // pred_check
          %p262 = pneg %p41
        $region42: #{actor_forward.1} parent=39 // pred_check_branch
          %264 = sbr.rel (%p262) target = $region44
        $region43: #{actor_forward.1} parent=39 // pred_region
          %p265 = scmp.lt.s32.totalorder %s21, 1
          %s266 = scalar_select %p265, %s21, 1
          %s267 = smul.addr %s266, 8
          %s268 = smul.addr %s267, 8
          %s269 = scalar_lea.vmem %s0, %s268
        $region44: #{actor_forward.1} parent=39 // pred_fallthru
          _
      $region40: #{actor_forward.1} parent=5 // pred_fallthru
        _
      %p270 = scmp.le.s32.totalorder 1, %s21
      %p271 = scmp.lt.s32.totalorder %s21, 3
      %p272 = pnand %p270, %p271
      %p273 = pneg %p272
      // Predicated region
      $region45: #{actor_forward.1} parent=5 // pred_check
        _
      $region46: #{actor_forward.1} parent=5 // pred_check_branch
        %275 = sbr.rel (%p272) target = $region48
      $region47: #{actor_forward.1} parent=5 // pred_region
        %s276 = ssub.s32 %s21, 1
        %p277 = scmp.lt.s32.totalorder %s26, 1
        %s278 = scalar_select %p277, %s26, 1
        %s279 = smul.addr %s278, 8
        %s280 = smul.addr %s279, 8
        %s281 = scalar_lea.vmem %s0, %s280
        %p282 = pneg %p47
        %p283 = pneg %p44
        %p284 = pneg %p68
        %p285 = pneg %p65
        %p286 = pneg %p89
        %p287 = pneg %p86
        %p288 = pneg %p110
        %p289 = pneg %p107
        %p290 = pneg %p131
        %p291 = pneg %p128
        %p292 = pneg %p152
        %p293 = pneg %p149
        %p294 = pneg %p173
        %p295 = pneg %p170
        %p296 = pneg %p199
        %p297 = pneg %p196
        %s298 = sand.u32 %s186, 1
        %s299 = scalar_lea.sflag [#allocation3], %s298
        %s300 = sand.u32 %s186, 1
        %s301 = scalar_lea.vmem [#allocation2], %s300
        %p302 = pneg %p225
        %p303 = pneg %p222
        %s304 = sand.u32 %s212, 1
        %s305 = scalar_lea.sflag [#allocation5], %s304
        %s306 = sand.u32 %s212, 1
        %s307 = scalar_lea.vmem [#allocation4], %s306
        %p308 = scmp.lt.s32.totalorder %s26, 1
        %s309 = scalar_select %p308, %s26, 1
        %s310 = smul.addr %s309, 8
        %s311 = smul.addr %s310, 8
        %s312 = scalar_lea.vmem %s0, %s311
        %v313 = vld [vmem:[%s312] sm:$0xff]
        %v314 = vld [vmem:[%s312 + $0x8] sm:$0xff]
        %v315 = vld [vmem:[%s312 + $0x10] sm:$0xff]
        %v316 = vld [vmem:[%s312 + $0x18] sm:$0xff]
        %v317 = vld [vmem:[%s312 + $0x20] sm:$0xff]
        %v318 = vld [vmem:[%s312 + $0x28] sm:$0xff]
        %v319 = vld [vmem:[%s312 + $0x30] sm:$0xff]
        %v320 = vld [vmem:[%s312 + $0x38] sm:$0xff]
        %v321 = vld [vmem:[%s1] sm:$0xf]
        %v322 = vld [vmem:[%s3] sm:$0x1]
        %v324 = vlaneseq
        %v325 = vshrl.u32 %v324, 7
        %v326 = vsub.s32 0, %v325
        %v327 = vrot.slane %v322, %v326
        %vm329 = vcmask 31744
        %v331 = vsel %vm329, %v313, 0
        %v334 = vsel %vm329, %v314, 0
        %v337 = vsel %vm329, %v315, 0
        %v340 = vsel %vm329, %v316, 0
        %v343 = vsel %vm329, %v317, 0
        %v346 = vsel %vm329, %v318, 0
        %v349 = vsel %vm329, %v319, 0
        %v352 = vsel %vm329, %v320, 0
        %vm354 = vcmask 1043456
        %v356 = vsel %vm354, %v321, 0
        %358 = vmatprep.subr.mxu0 0.0
        %359 = vmatpush1.msra.mxu0 %v356
        %360 = vmatprep.subr.mxu0 0.0
        %361 = vmatpush1.msra.mxu0 0.0
        %362 = vmatprep.subr.mxu0 0.0
        %363 = vmatpush1.msra.mxu0 0.0
        %364 = vmatprep.subr.mxu0 0.0
        %365 = vmatpush1.msra.mxu0 0.0
        %366 = vmatprep.subr.mxu0 0.0
        %367 = vmatpush1.msra.mxu0 0.0
        %368 = vmatprep.subr.mxu0 0.0
        %369 = vmatpush1.msra.mxu0 0.0
        %370 = vmatprep.subr.mxu0 0.0
        %371 = vmatpush1.msra.mxu0 0.0
        %372 = vmatprep.subr.mxu0 0.0
        %373 = vmatpush1.msra.mxu0 0.0
        %374 = vmatprep.subr.mxu0 0.0
        %375 = vmatpush1.msra.mxu0 0.0
        %376 = vmatprep.subr.mxu0 0.0
        %377 = vmatpush1.msra.mxu0 0.0
        %378 = vmatprep.subr.mxu0 0.0
        %379 = vmatpush1.msra.mxu0 0.0
        %380 = vmatprep.subr.mxu0 0.0
        %381 = vmatpush1.msra.mxu0 0.0
        %382 = vmatprep.subr.mxu0 0.0
        %383 = vmatpush1.msra.mxu0 0.0
        %384 = vmatprep.subr.mxu0 0.0
        %385 = vmatpush1.msra.mxu0 0.0
        %386 = vmatprep.subr.mxu0 0.0
        %387 = vmatpush1.msra.mxu0 0.0
        %388 = vmatprep.subr.mxu0 0.0
        %389 = vmatpush1.msra.mxu0 0.0
        %390 = vmatprep.subr.mxu0 0.0
        %391 = vmatpush1.msra.mxu0 0.0
        %392 = vmatprep.subr.mxu0 0.0
        %393 = vmatpush1.msra.mxu0 0.0
        %394 = vmatprep.subr.mxu0 0.0
        %395 = vmatpush1.msra.mxu0 0.0
        %396 = vmatprep.subr.mxu0 0.0
        %397 = vmatpush1.msra.mxu0 0.0
        %398 = vmatprep.subr.mxu0 0.0
        %399 = vmatpush1.msra.mxu0 0.0
        %400 = vmatprep.subr.mxu0 0.0
        %401 = vmatpush1.msra.mxu0 0.0
        %402 = vmatprep.subr.mxu0 0.0
        %403 = vmatpush1.msra.mxu0 0.0
        %404 = vmatprep.subr.mxu0 0.0
        %405 = vmatpush1.msra.mxu0 0.0
        %406 = vmatprep.subr.mxu0 0.0
        %407 = vmatpush1.msra.mxu0 0.0
        %408 = vmatprep.subr.mxu0 0.0
        %409 = vmatpush1.msra.mxu0 0.0
        %410 = vmatprep.subr.mxu0 0.0
        %411 = vmatpush1.msra.mxu0 0.0
        %412 = vmatprep.subr.mxu0 0.0
        %413 = vmatpush1.msra.mxu0 0.0
        %414 = vmatprep.subr.mxu0 0.0
        %415 = vmatpush1.msra.mxu0 0.0
        %416 = vmatprep.subr.mxu0 0.0
        %417 = vmatpush1.msra.mxu0 0.0
        %418 = vmatprep.subr.mxu0 0.0
        %419 = vmatpush1.msra.mxu0 0.0
        %420 = vmatprep.subr.mxu0 0.0
        %421 = vmatpush1.msra.mxu0 0.0
        %422 = vmatprep.mubr.f32.mxu0 0.0
        %423 = vmatmul.mubr.f32.gmra.mrb[0].mxu0 %v331
        %v424 = vpop.f32.mrb[0].mxu0
        %v425 = vadd.f32 %v327, %v424
        %v426 = vpop.f32.mrb[0].mxu0
        %427 = vmatprep.mubr.f32.mxu0 0.0
        %428 = vmatmul.mubr.f32.gmra.mrb[0].mxu0 %v334
        %v429 = vpop.f32.mrb[0].mxu0
        %v430 = vadd.f32 %v327, %v429
        %v431 = vpop.f32.mrb[0].mxu0
        %432 = vmatprep.mubr.f32.mxu0 0.0
        %433 = vmatmul.mubr.f32.gmra.mrb[0].mxu0 %v337
        %v434 = vpop.f32.mrb[0].mxu0
        %v435 = vadd.f32 %v327, %v434
        %v436 = vpop.f32.mrb[0].mxu0
        %437 = vmatprep.mubr.f32.mxu0 0.0
        %438 = vmatmul.mubr.f32.gmra.mrb[0].mxu0 %v340
        %v439 = vpop.f32.mrb[0].mxu0
        %v440 = vadd.f32 %v327, %v439
        %v441 = vpop.f32.mrb[0].mxu0
        %442 = vmatprep.mubr.f32.mxu0 0.0
        %443 = vmatmul.mubr.f32.gmra.mrb[0].mxu0 %v343
        %v444 = vpop.f32.mrb[0].mxu0
        %v445 = vadd.f32 %v327, %v444
        %v446 = vpop.f32.mrb[0].mxu0
        %447 = vmatprep.mubr.f32.mxu0 0.0
        %448 = vmatmul.mubr.f32.gmra.mrb[0].mxu0 %v346
        %v449 = vpop.f32.mrb[0].mxu0
        %v450 = vadd.f32 %v327, %v449
        %v451 = vpop.f32.mrb[0].mxu0
        %452 = vmatprep.mubr.f32.mxu0 0.0
        %453 = vmatmul.mubr.f32.gmra.mrb[0].mxu0 %v349
        %v454 = vpop.f32.mrb[0].mxu0
        %v455 = vadd.f32 %v327, %v454
        %v456 = vpop.f32.mrb[0].mxu0
        %457 = vmatprep.mubr.f32.mxu0 0.0
        %458 = vmatmul.mubr.f32.gmra.mrb[0].mxu0 %v352
        %v459 = vpop.f32.mrb[0].mxu0
        %v460 = vadd.f32 %v327, %v459
        %v461 = vpop.f32.mrb[0].mxu0
        %462 = vdwg.mxu0
        %v463 = vld [vmem:[%s2] sm:$0xff]
        %v464 = vld [vmem:[%s2 + $0x8] sm:$0xff]
        %v465 = vld [vmem:[%s2 + $0x10] sm:$0xff]
        %v466 = vld [vmem:[%s2 + $0x18] sm:$0xff]
        %v467 = vlaneseq
        %v468 = vand.u32 %v467, 127
        %vm469 = vcmp.ge.s32.totalorder %v468, 64
        %vm470 = vcmp.lt.s32.totalorder %v468, 96
        %vm471 = vmand %vm469, %vm470
        %v472 = vsel %vm471, 2.0, 1.0
        %v473 = vsel %vm471, -1.0, 0.0
        %vm474 = vcmask 261120
        %v476 = vsel %vm474, 0.0, 0
        %478 = vmatprep.subr.mxu0 0.0
        %479 = vmatpush1.msra.mxu0 %v463
        %480 = vmatprep.subr.mxu0 0.0
        %481 = vmatpush1.msra.mxu0 %v464
        %482 = vmatprep.subr.mxu0 0.0
        %483 = vmatpush1.msra.mxu0 %v465
        %484 = vmatprep.subr.mxu0 0.0
        %485 = vmatpush1.msra.mxu0 %v466
        %486 = vmatprep.subr.mxu0 0.0
        %487 = vmatpush1.msra.mxu0 0.0
        %488 = vmatprep.subr.mxu0 0.0
        %489 = vmatpush1.msra.mxu0 0.0
        %490 = vmatprep.subr.mxu0 0.0
        %491 = vmatpush1.msra.mxu0 0.0
        %492 = vmatprep.subr.mxu0 0.0
        %493 = vmatpush1.msra.mxu0 0.0
        %494 = vmatprep.subr.mxu0 0.0
        %495 = vmatpush1.msra.mxu0 0.0
        %496 = vmatprep.subr.mxu0 0.0
        %497 = vmatpush1.msra.mxu0 0.0
        %498 = vmatprep.subr.mxu0 0.0
        %499 = vmatpush1.msra.mxu0 0.0
        %500 = vmatprep.subr.mxu0 0.0
        %501 = vmatpush1.msra.mxu0 0.0
        %502 = vmatprep.subr.mxu0 0.0
        %503 = vmatpush1.msra.mxu0 0.0
        %504 = vmatprep.subr.mxu0 0.0
        %505 = vmatpush1.msra.mxu0 0.0
        %506 = vmatprep.subr.mxu0 0.0
        %507 = vmatpush1.msra.mxu0 0.0
        %508 = vmatprep.subr.mxu0 0.0
        %509 = vmatpush1.msra.mxu0 0.0
        %510 = vmatprep.subr.mxu0 0.0
        %511 = vmatpush1.msra.mxu0 0.0
        %512 = vmatprep.subr.mxu0 0.0
        %513 = vmatpush1.msra.mxu0 0.0
        %514 = vmatprep.subr.mxu0 0.0
        %515 = vmatpush1.msra.mxu0 0.0
        %516 = vmatprep.subr.mxu0 0.0
        %517 = vmatpush1.msra.mxu0 0.0
        %518 = vmatprep.subr.mxu0 0.0
        %519 = vmatpush1.msra.mxu0 0.0
        %520 = vmatprep.subr.mxu0 0.0
        %521 = vmatpush1.msra.mxu0 0.0
        %522 = vmatprep.subr.mxu0 0.0
        %523 = vmatpush1.msra.mxu0 0.0
        %524 = vmatprep.subr.mxu0 0.0
        %525 = vmatpush1.msra.mxu0 0.0
        %526 = vmatprep.subr.mxu0 0.0
        %527 = vmatpush1.msra.mxu0 0.0
        %528 = vmatprep.subr.mxu0 0.0
        %529 = vmatpush1.msra.mxu0 0.0
        %530 = vmatprep.subr.mxu0 0.0
        %531 = vmatpush1.msra.mxu0 0.0
        %532 = vmatprep.subr.mxu0 0.0
        %533 = vmatpush1.msra.mxu0 0.0
        %534 = vmatprep.subr.mxu0 0.0
        %535 = vmatpush1.msra.mxu0 0.0
        %536 = vmatprep.subr.mxu0 0.0
        %537 = vmatpush1.msra.mxu0 0.0
        %538 = vmatprep.subr.mxu0 0.0
        %539 = vmatpush1.msra.mxu0 0.0
        %540 = vmatprep.subr.mxu0 0.0
        %541 = vmatpush1.msra.mxu0 0.0
        %542 = vmatprep.mubr.f32.mxu0 0.0
        %543 = vmatmul.mubr.f32.gmra.mrb[0].mxu0 %v476
        %v544 = vpop.f32.mrb[0].mxu0
        %v545 = vadd.f32 0.0, %v544
        %v546 = vpop.f32.mrb[0].mxu0
        %547 = vdwg.mxu0
        %v549 = vrot.slane %v545, 1
        %v550 = vrot.slane %v545, 2
        %v551 = vrot.slane %v545, 3
        %v552 = vrot.slane %v545, 4
        %v553 = vrot.slane %v545, 5
        %v554 = vrot.slane %v545, 6
        %v555 = vrot.slane %v545, 7
        %v564 = vadd.f32 %v425, %v545
        %v565 = vadd.f32 %v430, %v549
        %v566 = vadd.f32 %v435, %v550
        %v567 = vadd.f32 %v440, %v551
        %v568 = vadd.f32 %v445, %v552
        %v569 = vadd.f32 %v450, %v553
        %v570 = vadd.f32 %v455, %v554
        %v571 = vadd.f32 %v460, %v555
        %v572 = vxor.u32 %v564, 2147483648
        %v573 = vxor.u32 %v565, 2147483648
        %v574 = vxor.u32 %v566, 2147483648
        %v575 = vxor.u32 %v567, 2147483648
        %v576 = vxor.u32 %v568, 2147483648
        %v577 = vxor.u32 %v569, 2147483648
        %v578 = vxor.u32 %v570, 2147483648
        %v579 = vxor.u32 %v571, 2147483648
        %v580 = vmul.f32 %v572, 1.442695
        %v581 = vpow.pop %v580
        %v582 = vmul.f32 %v573, 1.442695
        %v583 = vpow.pop %v582
        %v584 = vmul.f32 %v574, 1.442695
        %v585 = vpow.pop %v584
        %v586 = vmul.f32 %v575, 1.442695
        %v587 = vpow.pop %v586
        %v588 = vmul.f32 %v576, 1.442695
        %v589 = vpow.pop %v588
        %v590 = vmul.f32 %v577, 1.442695
        %v591 = vpow.pop %v590
        %v592 = vmul.f32 %v578, 1.442695
        %v593 = vpow.pop %v592
        %v594 = vmul.f32 %v579, 1.442695
        %v595 = vpow.pop %v594
        %v596 = vadd.f32 %v581, 1.0
        %v597 = vadd.f32 %v583, 1.0
        %v598 = vadd.f32 %v585, 1.0
        %v599 = vadd.f32 %v587, 1.0
        %v600 = vadd.f32 %v589, 1.0
        %v601 = vadd.f32 %v591, 1.0
        %v602 = vadd.f32 %v593, 1.0
        %v603 = vadd.f32 %v595, 1.0
        %v604 = vrcp.pop %v596
        %v605 = vmul.f32 1.0, %v604
        %v606 = vrcp.pop %v597
        %v607 = vmul.f32 1.0, %v606
        %v608 = vrcp.pop %v598
        %v609 = vmul.f32 1.0, %v608
        %v610 = vrcp.pop %v599
        %v611 = vmul.f32 1.0, %v610
        %v612 = vrcp.pop %v600
        %v613 = vmul.f32 1.0, %v612
        %v614 = vrcp.pop %v601
        %v615 = vmul.f32 1.0, %v614
        %v616 = vrcp.pop %v602
        %v617 = vmul.f32 1.0, %v616
        %v618 = vrcp.pop %v603
        %v619 = vmul.f32 1.0, %v618
        %v620 = vmul.f32 %v605, %v472
        %v621 = vmul.f32 %v607, %v472
        %v622 = vmul.f32 %v609, %v472
        %v623 = vmul.f32 %v611, %v472
        %v624 = vmul.f32 %v613, %v472
        %v625 = vmul.f32 %v615, %v472
        %v626 = vmul.f32 %v617, %v472
        %v627 = vmul.f32 %v619, %v472
        %v628 = vadd.f32 %v620, %v473
        %v629 = vadd.f32 %v621, %v473
        %v630 = vadd.f32 %v622, %v473
        %v631 = vadd.f32 %v623, %v473
        %v632 = vadd.f32 %v624, %v473
        %v633 = vadd.f32 %v625, %v473
        %v634 = vadd.f32 %v626, %v473
        %v635 = vadd.f32 %v627, %v473
        %v636 = vmul.f32 %v628, 0.0
        %v637 = vmul.f32 %v629, 0.0
        %v638 = vmul.f32 %v630, 0.0
        %v639 = vmul.f32 %v631, 0.0
        %v640 = vmul.f32 %v632, 0.0
        %v641 = vmul.f32 %v633, 0.0
        %v642 = vmul.f32 %v634, 0.0
        %v643 = vmul.f32 %v635, 0.0
        %652 = vrot.lane.b32.xlu0 %v628, 64
        %v653 = vpop.permute.xlu0 %652
        %654 = vrot.lane.b32.xlu0 %v629, 64
        %v655 = vpop.permute.xlu0 %654
        %656 = vrot.lane.b32.xlu0 %v630, 64
        %v657 = vpop.permute.xlu0 %656
        %658 = vrot.lane.b32.xlu0 %v631, 64
        %v659 = vpop.permute.xlu0 %658
        %660 = vrot.lane.b32.xlu0 %v632, 64
        %v661 = vpop.permute.xlu0 %660
        %662 = vrot.lane.b32.xlu0 %v633, 64
        %v663 = vpop.permute.xlu0 %662
        %664 = vrot.lane.b32.xlu0 %v634, 64
        %v665 = vpop.permute.xlu0 %664
        %666 = vrot.lane.b32.xlu0 %v635, 64
        %v667 = vpop.permute.xlu0 %666
        %v676 = vmul.f32 %v628, %v653
        %v677 = vmul.f32 %v629, %v655
        %v678 = vmul.f32 %v630, %v657
        %v679 = vmul.f32 %v631, %v659
        %v680 = vmul.f32 %v632, %v661
        %v681 = vmul.f32 %v633, %v663
        %v682 = vmul.f32 %v634, %v665
        %v683 = vmul.f32 %v635, %v667
        %692 = vrot.lane.b32.xlu0 %v676, 32
        %v693 = vpop.permute.xlu0 %692
        %694 = vrot.lane.b32.xlu0 %v677, 32
        %v695 = vpop.permute.xlu0 %694
        %696 = vrot.lane.b32.xlu0 %v678, 32
        %v697 = vpop.permute.xlu0 %696
        %698 = vrot.lane.b32.xlu0 %v679, 32
        %v699 = vpop.permute.xlu0 %698
        %700 = vrot.lane.b32.xlu0 %v680, 32
        %v701 = vpop.permute.xlu0 %700
        %702 = vrot.lane.b32.xlu0 %v681, 32
        %v703 = vpop.permute.xlu0 %702
        %704 = vrot.lane.b32.xlu0 %v682, 32
        %v705 = vpop.permute.xlu0 %704
        %706 = vrot.lane.b32.xlu0 %v683, 32
        %v707 = vpop.permute.xlu0 %706
        %v716 = vadd.f32 %v636, %v693
        %v717 = vadd.f32 %v637, %v695
        %v718 = vadd.f32 %v638, %v697
        %v719 = vadd.f32 %v639, %v699
        %v720 = vadd.f32 %v640, %v701
        %v721 = vadd.f32 %v641, %v703
        %v722 = vadd.f32 %v642, %v705
        %v723 = vadd.f32 %v643, %v707
        %v724 = vtanh.pop %v716
        %v725 = vtanh.pop %v717
        %v726 = vtanh.pop %v718
        %v727 = vtanh.pop %v719
        %v728 = vtanh.pop %v720
        %v729 = vtanh.pop %v721
        %v730 = vtanh.pop %v722
        %v731 = vtanh.pop %v723
        %740 = vrot.lane.b32.xlu0 %v724, 64
        %v741 = vpop.permute.xlu0 %740
        %742 = vrot.lane.b32.xlu0 %v725, 64
        %v743 = vpop.permute.xlu0 %742
        %744 = vrot.lane.b32.xlu0 %v726, 64
        %v745 = vpop.permute.xlu0 %744
        %746 = vrot.lane.b32.xlu0 %v727, 64
        %v747 = vpop.permute.xlu0 %746
        %748 = vrot.lane.b32.xlu0 %v728, 64
        %v749 = vpop.permute.xlu0 %748
        %750 = vrot.lane.b32.xlu0 %v729, 64
        %v751 = vpop.permute.xlu0 %750
        %752 = vrot.lane.b32.xlu0 %v730, 64
        %v753 = vpop.permute.xlu0 %752
        %754 = vrot.lane.b32.xlu0 %v731, 64
        %v755 = vpop.permute.xlu0 %754
        %v764 = vmul.f32 %v628, %v741
        %v765 = vmul.f32 %v629, %v743
        %v766 = vmul.f32 %v630, %v745
        %v767 = vmul.f32 %v631, %v747
        %v768 = vmul.f32 %v632, %v749
        %v769 = vmul.f32 %v633, %v751
        %v770 = vmul.f32 %v634, %v753
        %v771 = vmul.f32 %v635, %v755
        %v780 = vrot.slane %v765, 7
        %vm781 = vcmask 1041409
        %v782 = vsel %vm781, %v780, %v764
        %v783 = vrot.slane %v766, 6
        %vm784 = vcmask 1042434
        %v785 = vsel %vm784, %v783, %v782
        %v786 = vrot.slane %v767, 5
        %vm787 = vcmask 1043459
        %v788 = vsel %vm787, %v786, %v785
        %v789 = vrot.slane %v768, 4
        %vm790 = vcmask 1044484
        %v791 = vsel %vm790, %v789, %v788
        %v792 = vrot.slane %v769, 3
        %vm793 = vcmask 1045509
        %v794 = vsel %vm793, %v792, %v791
        %v795 = vrot.slane %v770, 2
        %vm796 = vcmask 1046534
        %v797 = vsel %vm796, %v795, %v794
        %v798 = vrot.slane %v771, 1
        %vm799 = vcmask 1047559
        %v800 = vsel %vm799, %v798, %v797
        %801 = vrot.lane.b32.xlu0 %v800, 32
        %v802 = vpop.permute.xlu0 %801
        %v803 = vsel %vm474, %v802, 0
        %805 = vmatprep.subr.mxu0 0.0
        %806 = vmatpush1.msra.mxu0 %v463
        %807 = vmatprep.subr.mxu0 0.0
        %808 = vmatpush1.msra.mxu0 %v464
        %809 = vmatprep.subr.mxu0 0.0
        %810 = vmatpush1.msra.mxu0 %v465
        %811 = vmatprep.subr.mxu0 0.0
        %812 = vmatpush1.msra.mxu0 %v466
        %813 = vmatprep.subr.mxu0 0.0
        %814 = vmatpush1.msra.mxu0 0.0
        %815 = vmatprep.subr.mxu0 0.0
        %816 = vmatpush1.msra.mxu0 0.0
        %817 = vmatprep.subr.mxu0 0.0
        %818 = vmatpush1.msra.mxu0 0.0
        %819 = vmatprep.subr.mxu0 0.0
        %820 = vmatpush1.msra.mxu0 0.0
        %821 = vmatprep.subr.mxu0 0.0
        %822 = vmatpush1.msra.mxu0 0.0
        %823 = vmatprep.subr.mxu0 0.0
        %824 = vmatpush1.msra.mxu0 0.0
        %825 = vmatprep.subr.mxu0 0.0
        %826 = vmatpush1.msra.mxu0 0.0
        %827 = vmatprep.subr.mxu0 0.0
        %828 = vmatpush1.msra.mxu0 0.0
        %829 = vmatprep.subr.mxu0 0.0
        %830 = vmatpush1.msra.mxu0 0.0
        %831 = vmatprep.subr.mxu0 0.0
        %832 = vmatpush1.msra.mxu0 0.0
        %833 = vmatprep.subr.mxu0 0.0
        %834 = vmatpush1.msra.mxu0 0.0
        %835 = vmatprep.subr.mxu0 0.0
        %836 = vmatpush1.msra.mxu0 0.0
        %837 = vmatprep.subr.mxu0 0.0
        %838 = vmatpush1.msra.mxu0 0.0
        %839 = vmatprep.subr.mxu0 0.0
        %840 = vmatpush1.msra.mxu0 0.0
        %841 = vmatprep.subr.mxu0 0.0
        %842 = vmatpush1.msra.mxu0 0.0
        %843 = vmatprep.subr.mxu0 0.0
        %844 = vmatpush1.msra.mxu0 0.0
        %845 = vmatprep.subr.mxu0 0.0
        %846 = vmatpush1.msra.mxu0 0.0
        %847 = vmatprep.subr.mxu0 0.0
        %848 = vmatpush1.msra.mxu0 0.0
        %849 = vmatprep.subr.mxu0 0.0
        %850 = vmatpush1.msra.mxu0 0.0
        %851 = vmatprep.subr.mxu0 0.0
        %852 = vmatpush1.msra.mxu0 0.0
        %853 = vmatprep.subr.mxu0 0.0
        %854 = vmatpush1.msra.mxu0 0.0
        %855 = vmatprep.subr.mxu0 0.0
        %856 = vmatpush1.msra.mxu0 0.0
        %857 = vmatprep.subr.mxu0 0.0
        %858 = vmatpush1.msra.mxu0 0.0
        %859 = vmatprep.subr.mxu0 0.0
        %860 = vmatpush1.msra.mxu0 0.0
        %861 = vmatprep.subr.mxu0 0.0
        %862 = vmatpush1.msra.mxu0 0.0
        %863 = vmatprep.subr.mxu0 0.0
        %864 = vmatpush1.msra.mxu0 0.0
        %865 = vmatprep.subr.mxu0 0.0
        %866 = vmatpush1.msra.mxu0 0.0
        %867 = vmatprep.subr.mxu0 0.0
        %868 = vmatpush1.msra.mxu0 0.0
        %869 = vmatprep.mubr.f32.mxu0 0.0
        %870 = vmatmul.mubr.f32.gmra.mrb[0].mxu0 %v803
        %v871 = vpop.f32.mrb[0].mxu0
        %v872 = vadd.f32 0.0, %v871
        %v873 = vpop.f32.mrb[0].mxu0
        %874 = vdwg.mxu0
        %v876 = vrot.slane %v872, 7
        %v877 = vrot.slane %v872, 1
        %v878 = vrot.slane %v872, 2
        %v879 = vrot.slane %v872, 3
        %v880 = vrot.slane %v872, 4
        %v881 = vrot.slane %v872, 5
        %v882 = vrot.slane %v872, 6
        %v891 = vadd.f32 %v425, %v876
        %v892 = vadd.f32 %v430, %v872
        %v893 = vadd.f32 %v435, %v877
        %v894 = vadd.f32 %v440, %v878
        %v895 = vadd.f32 %v445, %v879
        %v896 = vadd.f32 %v450, %v880
        %v897 = vadd.f32 %v455, %v881
        %v898 = vadd.f32 %v460, %v882
        %v899 = vxor.u32 %v891, 2147483648
        %v900 = vxor.u32 %v892, 2147483648
        %v901 = vxor.u32 %v893, 2147483648
        %v902 = vxor.u32 %v894, 2147483648
        %v903 = vxor.u32 %v895, 2147483648
        %v904 = vxor.u32 %v896, 2147483648
        %v905 = vxor.u32 %v897, 2147483648
        %v906 = vxor.u32 %v898, 2147483648
        %v907 = vmul.f32 %v899, 1.442695
        %v908 = vpow.pop %v907
        %v909 = vmul.f32 %v900, 1.442695
        %v910 = vpow.pop %v909
        %v911 = vmul.f32 %v901, 1.442695
        %v912 = vpow.pop %v911
        %v913 = vmul.f32 %v902, 1.442695
        %v914 = vpow.pop %v913
        %v915 = vmul.f32 %v903, 1.442695
        %v916 = vpow.pop %v915
        %v917 = vmul.f32 %v904, 1.442695
        %v918 = vpow.pop %v917
        %v919 = vmul.f32 %v905, 1.442695
        %v920 = vpow.pop %v919
        %v921 = vmul.f32 %v906, 1.442695
        %v922 = vpow.pop %v921
        %v923 = vadd.f32 %v908, 1.0
        %v924 = vadd.f32 %v910, 1.0
        %v925 = vadd.f32 %v912, 1.0
        %v926 = vadd.f32 %v914, 1.0
        %v927 = vadd.f32 %v916, 1.0
        %v928 = vadd.f32 %v918, 1.0
        %v929 = vadd.f32 %v920, 1.0
        %v930 = vadd.f32 %v922, 1.0
        %v931 = vrcp.pop %v923
        %v932 = vmul.f32 1.0, %v931
        %v933 = vrcp.pop %v924
        %v934 = vmul.f32 1.0, %v933
        %v935 = vrcp.pop %v925
        %v936 = vmul.f32 1.0, %v935
        %v937 = vrcp.pop %v926
        %v938 = vmul.f32 1.0, %v937
        %v939 = vrcp.pop %v927
        %v940 = vmul.f32 1.0, %v939
        %v941 = vrcp.pop %v928
        %v942 = vmul.f32 1.0, %v941
        %v943 = vrcp.pop %v929
        %v944 = vmul.f32 1.0, %v943
        %v945 = vrcp.pop %v930
        %v946 = vmul.f32 1.0, %v945
        %v947 = vmul.f32 %v932, %v472
        %v948 = vmul.f32 %v934, %v472
        %v949 = vmul.f32 %v936, %v472
        %v950 = vmul.f32 %v938, %v472
        %v951 = vmul.f32 %v940, %v472
        %v952 = vmul.f32 %v942, %v472
        %v953 = vmul.f32 %v944, %v472
        %v954 = vmul.f32 %v946, %v472
        %v955 = vadd.f32 %v947, %v473
        %v956 = vadd.f32 %v948, %v473
        %v957 = vadd.f32 %v949, %v473
        %v958 = vadd.f32 %v950, %v473
        %v959 = vadd.f32 %v951, %v473
        %v960 = vadd.f32 %v952, %v473
        %v961 = vadd.f32 %v953, %v473
        %v962 = vadd.f32 %v954, %v473
        %v971 = vrot.slane %v716, 7
        %v972 = vrot.slane %v717, 7
        %v973 = vrot.slane %v718, 7
        %v974 = vrot.slane %v719, 7
        %v975 = vrot.slane %v720, 7
        %v976 = vrot.slane %v721, 7
        %v977 = vrot.slane %v722, 7
        %v978 = vrot.slane %v723, 7
        %v987 = vmul.f32 %v955, %v971
        %v988 = vmul.f32 %v956, %v972
        %v989 = vmul.f32 %v957, %v973
        %v990 = vmul.f32 %v958, %v974
        %v991 = vmul.f32 %v959, %v975
        %v992 = vmul.f32 %v960, %v976
        %v993 = vmul.f32 %v961, %v977
        %v994 = vmul.f32 %v962, %v978
        %1003 = vrot.lane.b32.xlu0 %v955, 64
        %v1004 = vpop.permute.xlu0 %1003
        %1005 = vrot.lane.b32.xlu0 %v956, 64
        %v1006 = vpop.permute.xlu0 %1005
        %1007 = vrot.lane.b32.xlu0 %v957, 64
        %v1008 = vpop.permute.xlu0 %1007
        %1009 = vrot.lane.b32.xlu0 %v958, 64
        %v1010 = vpop.permute.xlu0 %1009
        %1011 = vrot.lane.b32.xlu0 %v959, 64
        %v1012 = vpop.permute.xlu0 %1011
        %1013 = vrot.lane.b32.xlu0 %v960, 64
        %v1014 = vpop.permute.xlu0 %1013
        %1015 = vrot.lane.b32.xlu0 %v961, 64
        %v1016 = vpop.permute.xlu0 %1015
        %1017 = vrot.lane.b32.xlu0 %v962, 64
        %v1018 = vpop.permute.xlu0 %1017
        %v1027 = vmul.f32 %v955, %v1004
        %v1028 = vmul.f32 %v956, %v1006
        %v1029 = vmul.f32 %v957, %v1008
        %v1030 = vmul.f32 %v958, %v1010
        %v1031 = vmul.f32 %v959, %v1012
        %v1032 = vmul.f32 %v960, %v1014
        %v1033 = vmul.f32 %v961, %v1016
        %v1034 = vmul.f32 %v962, %v1018
        %1043 = vrot.lane.b32.xlu0 %v1027, 32
        %v1044 = vpop.permute.xlu0 %1043
        %1045 = vrot.lane.b32.xlu0 %v1028, 32
        %v1046 = vpop.permute.xlu0 %1045
        %1047 = vrot.lane.b32.xlu0 %v1029, 32
        %v1048 = vpop.permute.xlu0 %1047
        %1049 = vrot.lane.b32.xlu0 %v1030, 32
        %v1050 = vpop.permute.xlu0 %1049
        %1051 = vrot.lane.b32.xlu0 %v1031, 32
        %v1052 = vpop.permute.xlu0 %1051
        %1053 = vrot.lane.b32.xlu0 %v1032, 32
        %v1054 = vpop.permute.xlu0 %1053
        %1055 = vrot.lane.b32.xlu0 %v1033, 32
        %v1056 = vpop.permute.xlu0 %1055
        %1057 = vrot.lane.b32.xlu0 %v1034, 32
        %v1058 = vpop.permute.xlu0 %1057
        %v1067 = vadd.f32 %v987, %v1044
        %v1068 = vadd.f32 %v988, %v1046
        %v1069 = vadd.f32 %v989, %v1048
        %v1070 = vadd.f32 %v990, %v1050
        %v1071 = vadd.f32 %v991, %v1052
        %v1072 = vadd.f32 %v992, %v1054
        %v1073 = vadd.f32 %v993, %v1056
        %v1074 = vadd.f32 %v994, %v1058
        %v1075 = vtanh.pop %v1067
        %v1076 = vtanh.pop %v1068
        %v1077 = vtanh.pop %v1069
        %v1078 = vtanh.pop %v1070
        %v1079 = vtanh.pop %v1071
        %v1080 = vtanh.pop %v1072
        %v1081 = vtanh.pop %v1073
        %v1082 = vtanh.pop %v1074
        %1091 = vrot.lane.b32.xlu0 %v1075, 64
        %v1092 = vpop.permute.xlu0 %1091
        %1093 = vrot.lane.b32.xlu0 %v1076, 64
        %v1094 = vpop.permute.xlu0 %1093
        %1095 = vrot.lane.b32.xlu0 %v1077, 64
        %v1096 = vpop.permute.xlu0 %1095
        %1097 = vrot.lane.b32.xlu0 %v1078, 64
        %v1098 = vpop.permute.xlu0 %1097
        %1099 = vrot.lane.b32.xlu0 %v1079, 64
        %v1100 = vpop.permute.xlu0 %1099
        %1101 = vrot.lane.b32.xlu0 %v1080, 64
        %v1102 = vpop.permute.xlu0 %1101
        %1103 = vrot.lane.b32.xlu0 %v1081, 64
        %v1104 = vpop.permute.xlu0 %1103
        %1105 = vrot.lane.b32.xlu0 %v1082, 64
        %v1106 = vpop.permute.xlu0 %1105
        %v1115 = vmul.f32 %v955, %v1092
        %v1116 = vmul.f32 %v956, %v1094
        %v1117 = vmul.f32 %v957, %v1096
        %v1118 = vmul.f32 %v958, %v1098
        %v1119 = vmul.f32 %v959, %v1100
        %v1120 = vmul.f32 %v960, %v1102
        %v1121 = vmul.f32 %v961, %v1104
        %v1122 = vmul.f32 %v962, %v1106
        %v1131 = vrot.slane %v1115, 1
        %v1132 = vsel %vm781, %v1116, %v1131
        %v1133 = vrot.slane %v1117, 7
        %v1134 = vsel %vm784, %v1133, %v1132
        %v1135 = vrot.slane %v1118, 6
        %v1136 = vsel %vm787, %v1135, %v1134
        %v1137 = vrot.slane %v1119, 5
        %v1138 = vsel %vm790, %v1137, %v1136
        %v1139 = vrot.slane %v1120, 4
        %v1140 = vsel %vm793, %v1139, %v1138
        %v1141 = vrot.slane %v1121, 3
        %v1142 = vsel %vm796, %v1141, %v1140
        %v1143 = vrot.slane %v1122, 2
        %v1144 = vsel %vm799, %v1143, %v1142
        %1145 = vrot.lane.b32.xlu0 %v1144, 32
        %v1146 = vpop.permute.xlu0 %1145
        %v1147 = vsel %vm474, %v1146, 0
        %1149 = vmatprep.subr.mxu0 0.0
        %1150 = vmatpush1.msra.mxu0 %v463
        %1151 = vmatprep.subr.mxu0 0.0
        %1152 = vmatpush1.msra.mxu0 %v464
        %1153 = vmatprep.subr.mxu0 0.0
        %1154 = vmatpush1.msra.mxu0 %v465
        %1155 = vmatprep.subr.mxu0 0.0
        %1156 = vmatpush1.msra.mxu0 %v466
        %1157 = vmatprep.subr.mxu0 0.0
        %1158 = vmatpush1.msra.mxu0 0.0
        %1159 = vmatprep.subr.mxu0 0.0
        %1160 = vmatpush1.msra.mxu0 0.0
        %1161 = vmatprep.subr.mxu0 0.0
        %1162 = vmatpush1.msra.mxu0 0.0
        %1163 = vmatprep.subr.mxu0 0.0
        %1164 = vmatpush1.msra.mxu0 0.0
        %1165 = vmatprep.subr.mxu0 0.0
        %1166 = vmatpush1.msra.mxu0 0.0
        %1167 = vmatprep.subr.mxu0 0.0
        %1168 = vmatpush1.msra.mxu0 0.0
        %1169 = vmatprep.subr.mxu0 0.0
        %1170 = vmatpush1.msra.mxu0 0.0
        %1171 = vmatprep.subr.mxu0 0.0
        %1172 = vmatpush1.msra.mxu0 0.0
        %1173 = vmatprep.subr.mxu0 0.0
        %1174 = vmatpush1.msra.mxu0 0.0
        %1175 = vmatprep.subr.mxu0 0.0
        %1176 = vmatpush1.msra.mxu0 0.0
        %1177 = vmatprep.subr.mxu0 0.0
        %1178 = vmatpush1.msra.mxu0 0.0
        %1179 = vmatprep.subr.mxu0 0.0
        %1180 = vmatpush1.msra.mxu0 0.0
        %1181 = vmatprep.subr.mxu0 0.0
        %1182 = vmatpush1.msra.mxu0 0.0
        %1183 = vmatprep.subr.mxu0 0.0
        %1184 = vmatpush1.msra.mxu0 0.0
        %1185 = vmatprep.subr.mxu0 0.0
        %1186 = vmatpush1.msra.mxu0 0.0
        %1187 = vmatprep.subr.mxu0 0.0
        %1188 = vmatpush1.msra.mxu0 0.0
        %1189 = vmatprep.subr.mxu0 0.0
        %1190 = vmatpush1.msra.mxu0 0.0
        %1191 = vmatprep.subr.mxu0 0.0
        %1192 = vmatpush1.msra.mxu0 0.0
        %1193 = vmatprep.subr.mxu0 0.0
        %1194 = vmatpush1.msra.mxu0 0.0
        %1195 = vmatprep.subr.mxu0 0.0
        %1196 = vmatpush1.msra.mxu0 0.0
        %1197 = vmatprep.subr.mxu0 0.0
        %1198 = vmatpush1.msra.mxu0 0.0
        %1199 = vmatprep.subr.mxu0 0.0
        %1200 = vmatpush1.msra.mxu0 0.0
        %1201 = vmatprep.subr.mxu0 0.0
        %1202 = vmatpush1.msra.mxu0 0.0
        %1203 = vmatprep.subr.mxu0 0.0
        %1204 = vmatpush1.msra.mxu0 0.0
        %1205 = vmatprep.subr.mxu0 0.0
        %1206 = vmatpush1.msra.mxu0 0.0
        %1207 = vmatprep.subr.mxu0 0.0
        %1208 = vmatpush1.msra.mxu0 0.0
        %1209 = vmatprep.subr.mxu0 0.0
        %1210 = vmatpush1.msra.mxu0 0.0
        %1211 = vmatprep.subr.mxu0 0.0
        %1212 = vmatpush1.msra.mxu0 0.0
        %1213 = vmatprep.mubr.f32.mxu0 0.0
        %1214 = vmatmul.mubr.f32.gmra.mrb[0].mxu0 %v1147
        %v1215 = vpop.f32.mrb[0].mxu0
        %v1216 = vadd.f32 0.0, %v1215
        %v1217 = vpop.f32.mrb[0].mxu0
        %1218 = vdwg.mxu0
        %v1220 = vrot.slane %v1216, 6
        %v1221 = vrot.slane %v1216, 7
        %v1222 = vrot.slane %v1216, 1
        %v1223 = vrot.slane %v1216, 2
        %v1224 = vrot.slane %v1216, 3
        %v1225 = vrot.slane %v1216, 4
        %v1226 = vrot.slane %v1216, 5
        %v1235 = vadd.f32 %v425, %v1220
        %v1236 = vadd.f32 %v430, %v1221
        %v1237 = vadd.f32 %v435, %v1216
        %v1238 = vadd.f32 %v440, %v1222
        %v1239 = vadd.f32 %v445, %v1223
        %v1240 = vadd.f32 %v450, %v1224
        %v1241 = vadd.f32 %v455, %v1225
        %v1242 = vadd.f32 %v460, %v1226
        %v1243 = vxor.u32 %v1235, 2147483648
        %v1244 = vxor.u32 %v1236, 2147483648
        %v1245 = vxor.u32 %v1237, 2147483648
        %v1246 = vxor.u32 %v1238, 2147483648
        %v1247 = vxor.u32 %v1239, 2147483648
        %v1248 = vxor.u32 %v1240, 2147483648
        %v1249 = vxor.u32 %v1241, 2147483648
        %v1250 = vxor.u32 %v1242, 2147483648
        %v1251 = vmul.f32 %v1243, 1.442695
        %v1252 = vpow.pop %v1251
        %v1253 = vmul.f32 %v1244, 1.442695
        %v1254 = vpow.pop %v1253
        %v1255 = vmul.f32 %v1245, 1.442695
        %v1256 = vpow.pop %v1255
        %v1257 = vmul.f32 %v1246, 1.442695
        %v1258 = vpow.pop %v1257
        %v1259 = vmul.f32 %v1247, 1.442695
        %v1260 = vpow.pop %v1259
        %v1261 = vmul.f32 %v1248, 1.442695
        %v1262 = vpow.pop %v1261
        %v1263 = vmul.f32 %v1249, 1.442695
        %v1264 = vpow.pop %v1263
        %v1265 = vmul.f32 %v1250, 1.442695
        %v1266 = vpow.pop %v1265
        %v1267 = vadd.f32 %v1252, 1.0
        %v1268 = vadd.f32 %v1254, 1.0
        %v1269 = vadd.f32 %v1256, 1.0
        %v1270 = vadd.f32 %v1258, 1.0
        %v1271 = vadd.f32 %v1260, 1.0
        %v1272 = vadd.f32 %v1262, 1.0
        %v1273 = vadd.f32 %v1264, 1.0
        %v1274 = vadd.f32 %v1266, 1.0
        %v1275 = vrcp.pop %v1267
        %v1276 = vmul.f32 1.0, %v1275
        %v1277 = vrcp.pop %v1268
        %v1278 = vmul.f32 1.0, %v1277
        %v1279 = vrcp.pop %v1269
        %v1280 = vmul.f32 1.0, %v1279
        %v1281 = vrcp.pop %v1270
        %v1282 = vmul.f32 1.0, %v1281
        %v1283 = vrcp.pop %v1271
        %v1284 = vmul.f32 1.0, %v1283
        %v1285 = vrcp.pop %v1272
        %v1286 = vmul.f32 1.0, %v1285
        %v1287 = vrcp.pop %v1273
        %v1288 = vmul.f32 1.0, %v1287
        %v1289 = vrcp.pop %v1274
        %v1290 = vmul.f32 1.0, %v1289
        %v1291 = vmul.f32 %v1276, %v472
        %v1292 = vmul.f32 %v1278, %v472
        %v1293 = vmul.f32 %v1280, %v472
        %v1294 = vmul.f32 %v1282, %v472
        %v1295 = vmul.f32 %v1284, %v472
        %v1296 = vmul.f32 %v1286, %v472
        %v1297 = vmul.f32 %v1288, %v472
        %v1298 = vmul.f32 %v1290, %v472
        %v1299 = vadd.f32 %v1291, %v473
        %v1300 = vadd.f32 %v1292, %v473
        %v1301 = vadd.f32 %v1293, %v473
        %v1302 = vadd.f32 %v1294, %v473
        %v1303 = vadd.f32 %v1295, %v473
        %v1304 = vadd.f32 %v1296, %v473
        %v1305 = vadd.f32 %v1297, %v473
        %v1306 = vadd.f32 %v1298, %v473
        %v1315 = vrot.slane %v1067, 7
        %v1316 = vrot.slane %v1068, 7
        %v1317 = vrot.slane %v1069, 7
        %v1318 = vrot.slane %v1070, 7
        %v1319 = vrot.slane %v1071, 7
        %v1320 = vrot.slane %v1072, 7
        %v1321 = vrot.slane %v1073, 7
        %v1322 = vrot.slane %v1074, 7
        %v1331 = vmul.f32 %v1299, %v1315
        %v1332 = vmul.f32 %v1300, %v1316
        %v1333 = vmul.f32 %v1301, %v1317
        %v1334 = vmul.f32 %v1302, %v1318
        %v1335 = vmul.f32 %v1303, %v1319
        %v1336 = vmul.f32 %v1304, %v1320
        %v1337 = vmul.f32 %v1305, %v1321
        %v1338 = vmul.f32 %v1306, %v1322
        %1347 = vrot.lane.b32.xlu0 %v1299, 64
        %v1348 = vpop.permute.xlu0 %1347
        %1349 = vrot.lane.b32.xlu0 %v1300, 64
        %v1350 = vpop.permute.xlu0 %1349
        %1351 = vrot.lane.b32.xlu0 %v1301, 64
        %v1352 = vpop.permute.xlu0 %1351
        %1353 = vrot.lane.b32.xlu0 %v1302, 64
        %v1354 = vpop.permute.xlu0 %1353
        %1355 = vrot.lane.b32.xlu0 %v1303, 64
        %v1356 = vpop.permute.xlu0 %1355
        %1357 = vrot.lane.b32.xlu0 %v1304, 64
        %v1358 = vpop.permute.xlu0 %1357
        %1359 = vrot.lane.b32.xlu0 %v1305, 64
        %v1360 = vpop.permute.xlu0 %1359
        %1361 = vrot.lane.b32.xlu0 %v1306, 64
        %v1362 = vpop.permute.xlu0 %1361
        %v1371 = vmul.f32 %v1299, %v1348
        %v1372 = vmul.f32 %v1300, %v1350
        %v1373 = vmul.f32 %v1301, %v1352
        %v1374 = vmul.f32 %v1302, %v1354
        %v1375 = vmul.f32 %v1303, %v1356
        %v1376 = vmul.f32 %v1304, %v1358
        %v1377 = vmul.f32 %v1305, %v1360
        %v1378 = vmul.f32 %v1306, %v1362
        %1387 = vrot.lane.b32.xlu0 %v1371, 32
        %v1388 = vpop.permute.xlu0 %1387
        %1389 = vrot.lane.b32.xlu0 %v1372, 32
        %v1390 = vpop.permute.xlu0 %1389
        %1391 = vrot.lane.b32.xlu0 %v1373, 32
        %v1392 = vpop.permute.xlu0 %1391
        %1393 = vrot.lane.b32.xlu0 %v1374, 32
        %v1394 = vpop.permute.xlu0 %1393
        %1395 = vrot.lane.b32.xlu0 %v1375, 32
        %v1396 = vpop.permute.xlu0 %1395
        %1397 = vrot.lane.b32.xlu0 %v1376, 32
        %v1398 = vpop.permute.xlu0 %1397
        %1399 = vrot.lane.b32.xlu0 %v1377, 32
        %v1400 = vpop.permute.xlu0 %1399
        %1401 = vrot.lane.b32.xlu0 %v1378, 32
        %v1402 = vpop.permute.xlu0 %1401
        %v1411 = vadd.f32 %v1331, %v1388
        %v1412 = vadd.f32 %v1332, %v1390
        %v1413 = vadd.f32 %v1333, %v1392
        %v1414 = vadd.f32 %v1334, %v1394
        %v1415 = vadd.f32 %v1335, %v1396
        %v1416 = vadd.f32 %v1336, %v1398
        %v1417 = vadd.f32 %v1337, %v1400
        %v1418 = vadd.f32 %v1338, %v1402
        %v1419 = vtanh.pop %v1411
        %v1420 = vtanh.pop %v1412
        %v1421 = vtanh.pop %v1413
        %v1422 = vtanh.pop %v1414
        %v1423 = vtanh.pop %v1415
        %v1424 = vtanh.pop %v1416
        %v1425 = vtanh.pop %v1417
        %v1426 = vtanh.pop %v1418
        %1435 = vrot.lane.b32.xlu0 %v1419, 64
        %v1436 = vpop.permute.xlu0 %1435
        %1437 = vrot.lane.b32.xlu0 %v1420, 64
        %v1438 = vpop.permute.xlu0 %1437
        %1439 = vrot.lane.b32.xlu0 %v1421, 64
        %v1440 = vpop.permute.xlu0 %1439
        %1441 = vrot.lane.b32.xlu0 %v1422, 64
        %v1442 = vpop.permute.xlu0 %1441
        %1443 = vrot.lane.b32.xlu0 %v1423, 64
        %v1444 = vpop.permute.xlu0 %1443
        %1445 = vrot.lane.b32.xlu0 %v1424, 64
        %v1446 = vpop.permute.xlu0 %1445
        %1447 = vrot.lane.b32.xlu0 %v1425, 64
        %v1448 = vpop.permute.xlu0 %1447
        %1449 = vrot.lane.b32.xlu0 %v1426, 64
        %v1450 = vpop.permute.xlu0 %1449
        %v1459 = vmul.f32 %v1299, %v1436
        %v1460 = vmul.f32 %v1300, %v1438
        %v1461 = vmul.f32 %v1301, %v1440
        %v1462 = vmul.f32 %v1302, %v1442
        %v1463 = vmul.f32 %v1303, %v1444
        %v1464 = vmul.f32 %v1304, %v1446
        %v1465 = vmul.f32 %v1305, %v1448
        %v1466 = vmul.f32 %v1306, %v1450
        %v1475 = vrot.slane %v1459, 2
        %v1476 = vrot.slane %v1460, 1
        %v1477 = vsel %vm781, %v1476, %v1475
        %v1478 = vsel %vm784, %v1461, %v1477
        %v1479 = vrot.slane %v1462, 7
        %v1480 = vsel %vm787, %v1479, %v1478
        %v1481 = vrot.slane %v1463, 6
        %v1482 = vsel %vm790, %v1481, %v1480
        %v1483 = vrot.slane %v1464, 5
        %v1484 = vsel %vm793, %v1483, %v1482
        %v1485 = vrot.slane %v1465, 4
        %v1486 = vsel %vm796, %v1485, %v1484
        %v1487 = vrot.slane %v1466, 3
        %v1488 = vsel %vm799, %v1487, %v1486
        %1489 = vrot.lane.b32.xlu0 %v1488, 32
        %v1490 = vpop.permute.xlu0 %1489
        %v1491 = vsel %vm474, %v1490, 0
        %1493 = vmatprep.subr.mxu0 0.0
        %1494 = vmatpush1.msra.mxu0 %v463
        %1495 = vmatprep.subr.mxu0 0.0
        %1496 = vmatpush1.msra.mxu0 %v464
        %1497 = vmatprep.subr.mxu0 0.0
        %1498 = vmatpush1.msra.mxu0 %v465
        %1499 = vmatprep.subr.mxu0 0.0
        %1500 = vmatpush1.msra.mxu0 %v466
        %1501 = vmatprep.subr.mxu0 0.0
        %1502 = vmatpush1.msra.mxu0 0.0
        %1503 = vmatprep.subr.mxu0 0.0
        %1504 = vmatpush1.msra.mxu0 0.0
        %1505 = vmatprep.subr.mxu0 0.0
        %1506 = vmatpush1.msra.mxu0 0.0
        %1507 = vmatprep.subr.mxu0 0.0
        %1508 = vmatpush1.msra.mxu0 0.0
        %1509 = vmatprep.subr.mxu0 0.0
        %1510 = vmatpush1.msra.mxu0 0.0
        %1511 = vmatprep.subr.mxu0 0.0
        %1512 = vmatpush1.msra.mxu0 0.0
        %1513 = vmatprep.subr.mxu0 0.0
        %1514 = vmatpush1.msra.mxu0 0.0
        %1515 = vmatprep.subr.mxu0 0.0
        %1516 = vmatpush1.msra.mxu0 0.0
        %1517 = vmatprep.subr.mxu0 0.0
        %1518 = vmatpush1.msra.mxu0 0.0
        %1519 = vmatprep.subr.mxu0 0.0
        %1520 = vmatpush1.msra.mxu0 0.0
        %1521 = vmatprep.subr.mxu0 0.0
        %1522 = vmatpush1.msra.mxu0 0.0
        %1523 = vmatprep.subr.mxu0 0.0
        %1524 = vmatpush1.msra.mxu0 0.0
        %1525 = vmatprep.subr.mxu0 0.0
        %1526 = vmatpush1.msra.mxu0 0.0
        %1527 = vmatprep.subr.mxu0 0.0
        %1528 = vmatpush1.msra.mxu0 0.0
        %1529 = vmatprep.subr.mxu0 0.0
        %1530 = vmatpush1.msra.mxu0 0.0
        %1531 = vmatprep.subr.mxu0 0.0
        %1532 = vmatpush1.msra.mxu0 0.0
        %1533 = vmatprep.subr.mxu0 0.0
        %1534 = vmatpush1.msra.mxu0 0.0
        %1535 = vmatprep.subr.mxu0 0.0
        %1536 = vmatpush1.msra.mxu0 0.0
        %1537 = vmatprep.subr.mxu0 0.0
        %1538 = vmatpush1.msra.mxu0 0.0
        %1539 = vmatprep.subr.mxu0 0.0
        %1540 = vmatpush1.msra.mxu0 0.0
        %1541 = vmatprep.subr.mxu0 0.0
        %1542 = vmatpush1.msra.mxu0 0.0
        %1543 = vmatprep.subr.mxu0 0.0
        %1544 = vmatpush1.msra.mxu0 0.0
        %1545 = vmatprep.subr.mxu0 0.0
        %1546 = vmatpush1.msra.mxu0 0.0
        %1547 = vmatprep.subr.mxu0 0.0
        %1548 = vmatpush1.msra.mxu0 0.0
        %1549 = vmatprep.subr.mxu0 0.0
        %1550 = vmatpush1.msra.mxu0 0.0
        %1551 = vmatprep.subr.mxu0 0.0
        %1552 = vmatpush1.msra.mxu0 0.0
        %1553 = vmatprep.subr.mxu0 0.0
        %1554 = vmatpush1.msra.mxu0 0.0
        %1555 = vmatprep.subr.mxu0 0.0
        %1556 = vmatpush1.msra.mxu0 0.0
        %1557 = vmatprep.mubr.f32.mxu0 0.0
        %1558 = vmatmul.mubr.f32.gmra.mrb[0].mxu0 %v1491
        %v1559 = vpop.f32.mrb[0].mxu0
        %v1560 = vadd.f32 0.0, %v1559
        %v1561 = vpop.f32.mrb[0].mxu0
        %1562 = vdwg.mxu0
        %v1564 = vrot.slane %v1560, 5
        %v1565 = vrot.slane %v1560, 6
        %v1566 = vrot.slane %v1560, 7
        %v1567 = vrot.slane %v1560, 1
        %v1568 = vrot.slane %v1560, 2
        %v1569 = vrot.slane %v1560, 3
        %v1570 = vrot.slane %v1560, 4
        %v1579 = vadd.f32 %v425, %v1564
        %v1580 = vadd.f32 %v430, %v1565
        %v1581 = vadd.f32 %v435, %v1566
        %v1582 = vadd.f32 %v440, %v1560
        %v1583 = vadd.f32 %v445, %v1567
        %v1584 = vadd.f32 %v450, %v1568
        %v1585 = vadd.f32 %v455, %v1569
        %v1586 = vadd.f32 %v460, %v1570
        %v1587 = vxor.u32 %v1579, 2147483648
        %v1588 = vxor.u32 %v1580, 2147483648
        %v1589 = vxor.u32 %v1581, 2147483648
        %v1590 = vxor.u32 %v1582, 2147483648
        %v1591 = vxor.u32 %v1583, 2147483648
        %v1592 = vxor.u32 %v1584, 2147483648
        %v1593 = vxor.u32 %v1585, 2147483648
        %v1594 = vxor.u32 %v1586, 2147483648
        %v1595 = vmul.f32 %v1587, 1.442695
        %v1596 = vpow.pop %v1595
        %v1597 = vmul.f32 %v1588, 1.442695
        %v1598 = vpow.pop %v1597
        %v1599 = vmul.f32 %v1589, 1.442695
        %v1600 = vpow.pop %v1599
        %v1601 = vmul.f32 %v1590, 1.442695
        %v1602 = vpow.pop %v1601
        %v1603 = vmul.f32 %v1591, 1.442695
        %v1604 = vpow.pop %v1603
        %v1605 = vmul.f32 %v1592, 1.442695
        %v1606 = vpow.pop %v1605
        %v1607 = vmul.f32 %v1593, 1.442695
        %v1608 = vpow.pop %v1607
        %v1609 = vmul.f32 %v1594, 1.442695
        %v1610 = vpow.pop %v1609
        %v1611 = vadd.f32 %v1596, 1.0
        %v1612 = vadd.f32 %v1598, 1.0
        %v1613 = vadd.f32 %v1600, 1.0
        %v1614 = vadd.f32 %v1602, 1.0
        %v1615 = vadd.f32 %v1604, 1.0
        %v1616 = vadd.f32 %v1606, 1.0
        %v1617 = vadd.f32 %v1608, 1.0
        %v1618 = vadd.f32 %v1610, 1.0
        %v1619 = vrcp.pop %v1611
        %v1620 = vmul.f32 1.0, %v1619
        %v1621 = vrcp.pop %v1612
        %v1622 = vmul.f32 1.0, %v1621
        %v1623 = vrcp.pop %v1613
        %v1624 = vmul.f32 1.0, %v1623
        %v1625 = vrcp.pop %v1614
        %v1626 = vmul.f32 1.0, %v1625
        %v1627 = vrcp.pop %v1615
        %v1628 = vmul.f32 1.0, %v1627
        %v1629 = vrcp.pop %v1616
        %v1630 = vmul.f32 1.0, %v1629
        %v1631 = vrcp.pop %v1617
        %v1632 = vmul.f32 1.0, %v1631
        %v1633 = vrcp.pop %v1618
        %v1634 = vmul.f32 1.0, %v1633
        %v1635 = vmul.f32 %v1620, %v472
        %v1636 = vmul.f32 %v1622, %v472
        %v1637 = vmul.f32 %v1624, %v472
        %v1638 = vmul.f32 %v1626, %v472
        %v1639 = vmul.f32 %v1628, %v472
        %v1640 = vmul.f32 %v1630, %v472
        %v1641 = vmul.f32 %v1632, %v472
        %v1642 = vmul.f32 %v1634, %v472
        %v1643 = vadd.f32 %v1635, %v473
        %v1644 = vadd.f32 %v1636, %v473
        %v1645 = vadd.f32 %v1637, %v473
        %v1646 = vadd.f32 %v1638, %v473
        %v1647 = vadd.f32 %v1639, %v473
        %v1648 = vadd.f32 %v1640, %v473
        %v1649 = vadd.f32 %v1641, %v473
        %v1650 = vadd.f32 %v1642, %v473
        %v1659 = vrot.slane %v1411, 7
        %v1660 = vrot.slane %v1412, 7
        %v1661 = vrot.slane %v1413, 7
        %v1662 = vrot.slane %v1414, 7
        %v1663 = vrot.slane %v1415, 7
        %v1664 = vrot.slane %v1416, 7
        %v1665 = vrot.slane %v1417, 7
        %v1666 = vrot.slane %v1418, 7
        %v1675 = vmul.f32 %v1643, %v1659
        %v1676 = vmul.f32 %v1644, %v1660
        %v1677 = vmul.f32 %v1645, %v1661
        %v1678 = vmul.f32 %v1646, %v1662
        %v1679 = vmul.f32 %v1647, %v1663
        %v1680 = vmul.f32 %v1648, %v1664
        %v1681 = vmul.f32 %v1649, %v1665
        %v1682 = vmul.f32 %v1650, %v1666
        %1691 = vrot.lane.b32.xlu0 %v1643, 64
        %v1692 = vpop.permute.xlu0 %1691
        %1693 = vrot.lane.b32.xlu0 %v1644, 64
        %v1694 = vpop.permute.xlu0 %1693
        %1695 = vrot.lane.b32.xlu0 %v1645, 64
        %v1696 = vpop.permute.xlu0 %1695
        %1697 = vrot.lane.b32.xlu0 %v1646, 64
        %v1698 = vpop.permute.xlu0 %1697
        %1699 = vrot.lane.b32.xlu0 %v1647, 64
        %v1700 = vpop.permute.xlu0 %1699
        %1701 = vrot.lane.b32.xlu0 %v1648, 64
        %v1702 = vpop.permute.xlu0 %1701
        %1703 = vrot.lane.b32.xlu0 %v1649, 64
        %v1704 = vpop.permute.xlu0 %1703
        %1705 = vrot.lane.b32.xlu0 %v1650, 64
        %v1706 = vpop.permute.xlu0 %1705
        %v1715 = vmul.f32 %v1643, %v1692
        %v1716 = vmul.f32 %v1644, %v1694
        %v1717 = vmul.f32 %v1645, %v1696
        %v1718 = vmul.f32 %v1646, %v1698
        %v1719 = vmul.f32 %v1647, %v1700
        %v1720 = vmul.f32 %v1648, %v1702
        %v1721 = vmul.f32 %v1649, %v1704
        %v1722 = vmul.f32 %v1650, %v1706
        %1731 = vrot.lane.b32.xlu0 %v1715, 32
        %v1732 = vpop.permute.xlu0 %1731
        %1733 = vrot.lane.b32.xlu0 %v1716, 32
        %v1734 = vpop.permute.xlu0 %1733
        %1735 = vrot.lane.b32.xlu0 %v1717, 32
        %v1736 = vpop.permute.xlu0 %1735
        %1737 = vrot.lane.b32.xlu0 %v1718, 32
        %v1738 = vpop.permute.xlu0 %1737
        %1739 = vrot.lane.b32.xlu0 %v1719, 32
        %v1740 = vpop.permute.xlu0 %1739
        %1741 = vrot.lane.b32.xlu0 %v1720, 32
        %v1742 = vpop.permute.xlu0 %1741
        %1743 = vrot.lane.b32.xlu0 %v1721, 32
        %v1744 = vpop.permute.xlu0 %1743
        %1745 = vrot.lane.b32.xlu0 %v1722, 32
        %v1746 = vpop.permute.xlu0 %1745
        %v1755 = vadd.f32 %v1675, %v1732
        %v1756 = vadd.f32 %v1676, %v1734
        %v1757 = vadd.f32 %v1677, %v1736
        %v1758 = vadd.f32 %v1678, %v1738
        %v1759 = vadd.f32 %v1679, %v1740
        %v1760 = vadd.f32 %v1680, %v1742
        %v1761 = vadd.f32 %v1681, %v1744
        %v1762 = vadd.f32 %v1682, %v1746
        %v1763 = vtanh.pop %v1755
        %v1764 = vtanh.pop %v1756
        %v1765 = vtanh.pop %v1757
        %v1766 = vtanh.pop %v1758
        %v1767 = vtanh.pop %v1759
        %v1768 = vtanh.pop %v1760
        %v1769 = vtanh.pop %v1761
        %v1770 = vtanh.pop %v1762
        %1779 = vrot.lane.b32.xlu0 %v1763, 64
        %v1780 = vpop.permute.xlu0 %1779
        %1781 = vrot.lane.b32.xlu0 %v1764, 64
        %v1782 = vpop.permute.xlu0 %1781
        %1783 = vrot.lane.b32.xlu0 %v1765, 64
        %v1784 = vpop.permute.xlu0 %1783
        %1785 = vrot.lane.b32.xlu0 %v1766, 64
        %v1786 = vpop.permute.xlu0 %1785
        %1787 = vrot.lane.b32.xlu0 %v1767, 64
        %v1788 = vpop.permute.xlu0 %1787
        %1789 = vrot.lane.b32.xlu0 %v1768, 64
        %v1790 = vpop.permute.xlu0 %1789
        %1791 = vrot.lane.b32.xlu0 %v1769, 64
        %v1792 = vpop.permute.xlu0 %1791
        %1793 = vrot.lane.b32.xlu0 %v1770, 64
        %v1794 = vpop.permute.xlu0 %1793
        %v1803 = vmul.f32 %v1643, %v1780
        %v1804 = vmul.f32 %v1644, %v1782
        %v1805 = vmul.f32 %v1645, %v1784
        %v1806 = vmul.f32 %v1646, %v1786
        %v1807 = vmul.f32 %v1647, %v1788
        %v1808 = vmul.f32 %v1648, %v1790
        %v1809 = vmul.f32 %v1649, %v1792
        %v1810 = vmul.f32 %v1650, %v1794
        %v1819 = vrot.slane %v1803, 3
        %v1820 = vrot.slane %v1804, 2
        %v1821 = vsel %vm781, %v1820, %v1819
        %v1822 = vrot.slane %v1805, 1
        %v1823 = vsel %vm784, %v1822, %v1821
        %v1824 = vsel %vm787, %v1806, %v1823
        %v1825 = vrot.slane %v1807, 7
        %v1826 = vsel %vm790, %v1825, %v1824
        %v1827 = vrot.slane %v1808, 6
        %v1828 = vsel %vm793, %v1827, %v1826
        %v1829 = vrot.slane %v1809, 5
        %v1830 = vsel %vm796, %v1829, %v1828
        %v1831 = vrot.slane %v1810, 4
        %v1832 = vsel %vm799, %v1831, %v1830
        %1833 = vrot.lane.b32.xlu0 %v1832, 32
        %v1834 = vpop.permute.xlu0 %1833
        %v1835 = vsel %vm474, %v1834, 0
        %1837 = vmatprep.subr.mxu0 0.0
        %1838 = vmatpush1.msra.mxu0 %v463
        %1839 = vmatprep.subr.mxu0 0.0
        %1840 = vmatpush1.msra.mxu0 %v464
        %1841 = vmatprep.subr.mxu0 0.0
        %1842 = vmatpush1.msra.mxu0 %v465
        %1843 = vmatprep.subr.mxu0 0.0
        %1844 = vmatpush1.msra.mxu0 %v466
        %1845 = vmatprep.subr.mxu0 0.0
        %1846 = vmatpush1.msra.mxu0 0.0
        %1847 = vmatprep.subr.mxu0 0.0
        %1848 = vmatpush1.msra.mxu0 0.0
        %1849 = vmatprep.subr.mxu0 0.0
        %1850 = vmatpush1.msra.mxu0 0.0
        %1851 = vmatprep.subr.mxu0 0.0
        %1852 = vmatpush1.msra.mxu0 0.0
        %1853 = vmatprep.subr.mxu0 0.0
        %1854 = vmatpush1.msra.mxu0 0.0
        %1855 = vmatprep.subr.mxu0 0.0
        %1856 = vmatpush1.msra.mxu0 0.0
        %1857 = vmatprep.subr.mxu0 0.0
        %1858 = vmatpush1.msra.mxu0 0.0
        %1859 = vmatprep.subr.mxu0 0.0
        %1860 = vmatpush1.msra.mxu0 0.0
        %1861 = vmatprep.subr.mxu0 0.0
        %1862 = vmatpush1.msra.mxu0 0.0
        %1863 = vmatprep.subr.mxu0 0.0
        %1864 = vmatpush1.msra.mxu0 0.0
        %1865 = vmatprep.subr.mxu0 0.0
        %1866 = vmatpush1.msra.mxu0 0.0
        %1867 = vmatprep.subr.mxu0 0.0
        %1868 = vmatpush1.msra.mxu0 0.0
        %1869 = vmatprep.subr.mxu0 0.0
        %1870 = vmatpush1.msra.mxu0 0.0
        %1871 = vmatprep.subr.mxu0 0.0
        %1872 = vmatpush1.msra.mxu0 0.0
        %1873 = vmatprep.subr.mxu0 0.0
        %1874 = vmatpush1.msra.mxu0 0.0
        %1875 = vmatprep.subr.mxu0 0.0
        %1876 = vmatpush1.msra.mxu0 0.0
        %1877 = vmatprep.subr.mxu0 0.0
        %1878 = vmatpush1.msra.mxu0 0.0
        %1879 = vmatprep.subr.mxu0 0.0
        %1880 = vmatpush1.msra.mxu0 0.0
        %1881 = vmatprep.subr.mxu0 0.0
        %1882 = vmatpush1.msra.mxu0 0.0
        %1883 = vmatprep.subr.mxu0 0.0
        %1884 = vmatpush1.msra.mxu0 0.0
        %1885 = vmatprep.subr.mxu0 0.0
        %1886 = vmatpush1.msra.mxu0 0.0
        %1887 = vmatprep.subr.mxu0 0.0
        %1888 = vmatpush1.msra.mxu0 0.0
        %1889 = vmatprep.subr.mxu0 0.0
        %1890 = vmatpush1.msra.mxu0 0.0
        %1891 = vmatprep.subr.mxu0 0.0
        %1892 = vmatpush1.msra.mxu0 0.0
        %1893 = vmatprep.subr.mxu0 0.0
        %1894 = vmatpush1.msra.mxu0 0.0
        %1895 = vmatprep.subr.mxu0 0.0
        %1896 = vmatpush1.msra.mxu0 0.0
        %1897 = vmatprep.subr.mxu0 0.0
        %1898 = vmatpush1.msra.mxu0 0.0
        %1899 = vmatprep.subr.mxu0 0.0
        %1900 = vmatpush1.msra.mxu0 0.0
        %1901 = vmatprep.mubr.f32.mxu0 0.0
        %1902 = vmatmul.mubr.f32.gmra.mrb[0].mxu0 %v1835
        %v1903 = vpop.f32.mrb[0].mxu0
        %v1904 = vadd.f32 0.0, %v1903
        %v1905 = vpop.f32.mrb[0].mxu0
        %1906 = vdwg.mxu0
        %v1908 = vrot.slane %v1904, 4
        %v1909 = vrot.slane %v1904, 5
        %v1910 = vrot.slane %v1904, 6
        %v1911 = vrot.slane %v1904, 7
        %v1912 = vrot.slane %v1904, 1
        %v1913 = vrot.slane %v1904, 2
        %v1914 = vrot.slane %v1904, 3
        %v1923 = vadd.f32 %v425, %v1908
        %v1924 = vadd.f32 %v430, %v1909
        %v1925 = vadd.f32 %v435, %v1910
        %v1926 = vadd.f32 %v440, %v1911
        %v1927 = vadd.f32 %v445, %v1904
        %v1928 = vadd.f32 %v450, %v1912
        %v1929 = vadd.f32 %v455, %v1913
        %v1930 = vadd.f32 %v460, %v1914
        %v1931 = vxor.u32 %v1923, 2147483648
        %v1932 = vxor.u32 %v1924, 2147483648
        %v1933 = vxor.u32 %v1925, 2147483648
        %v1934 = vxor.u32 %v1926, 2147483648
        %v1935 = vxor.u32 %v1927, 2147483648
        %v1936 = vxor.u32 %v1928, 2147483648
        %v1937 = vxor.u32 %v1929, 2147483648
        %v1938 = vxor.u32 %v1930, 2147483648
        %v1939 = vmul.f32 %v1931, 1.442695
        %v1940 = vpow.pop %v1939
        %v1941 = vmul.f32 %v1932, 1.442695
        %v1942 = vpow.pop %v1941
        %v1943 = vmul.f32 %v1933, 1.442695
        %v1944 = vpow.pop %v1943
        %v1945 = vmul.f32 %v1934, 1.442695
        %v1946 = vpow.pop %v1945
        %v1947 = vmul.f32 %v1935, 1.442695
        %v1948 = vpow.pop %v1947
        %v1949 = vmul.f32 %v1936, 1.442695
        %v1950 = vpow.pop %v1949
        %v1951 = vmul.f32 %v1937, 1.442695
        %v1952 = vpow.pop %v1951
        %v1953 = vmul.f32 %v1938, 1.442695
        %v1954 = vpow.pop %v1953
        %v1955 = vadd.f32 %v1940, 1.0
        %v1956 = vadd.f32 %v1942, 1.0
        %v1957 = vadd.f32 %v1944, 1.0
        %v1958 = vadd.f32 %v1946, 1.0
        %v1959 = vadd.f32 %v1948, 1.0
        %v1960 = vadd.f32 %v1950, 1.0
        %v1961 = vadd.f32 %v1952, 1.0
        %v1962 = vadd.f32 %v1954, 1.0
        %v1963 = vrcp.pop %v1955
        %v1964 = vmul.f32 1.0, %v1963
        %v1965 = vrcp.pop %v1956
        %v1966 = vmul.f32 1.0, %v1965
        %v1967 = vrcp.pop %v1957
        %v1968 = vmul.f32 1.0, %v1967
        %v1969 = vrcp.pop %v1958
        %v1970 = vmul.f32 1.0, %v1969
        %v1971 = vrcp.pop %v1959
        %v1972 = vmul.f32 1.0, %v1971
        %v1973 = vrcp.pop %v1960
        %v1974 = vmul.f32 1.0, %v1973
        %v1975 = vrcp.pop %v1961
        %v1976 = vmul.f32 1.0, %v1975
        %v1977 = vrcp.pop %v1962
        %v1978 = vmul.f32 1.0, %v1977
        %v1979 = vmul.f32 %v1964, %v472
        %v1980 = vmul.f32 %v1966, %v472
        %v1981 = vmul.f32 %v1968, %v472
        %v1982 = vmul.f32 %v1970, %v472
        %v1983 = vmul.f32 %v1972, %v472
        %v1984 = vmul.f32 %v1974, %v472
        %v1985 = vmul.f32 %v1976, %v472
        %v1986 = vmul.f32 %v1978, %v472
        %v1987 = vadd.f32 %v1979, %v473
        %v1988 = vadd.f32 %v1980, %v473
        %v1989 = vadd.f32 %v1981, %v473
        %v1990 = vadd.f32 %v1982, %v473
        %v1991 = vadd.f32 %v1983, %v473
        %v1992 = vadd.f32 %v1984, %v473
        %v1993 = vadd.f32 %v1985, %v473
        %v1994 = vadd.f32 %v1986, %v473
        %v2003 = vrot.slane %v1755, 7
        %v2004 = vrot.slane %v1756, 7
        %v2005 = vrot.slane %v1757, 7
        %v2006 = vrot.slane %v1758, 7
        %v2007 = vrot.slane %v1759, 7
        %v2008 = vrot.slane %v1760, 7
        %v2009 = vrot.slane %v1761, 7
        %v2010 = vrot.slane %v1762, 7
        %v2019 = vmul.f32 %v1987, %v2003
        %v2020 = vmul.f32 %v1988, %v2004
        %v2021 = vmul.f32 %v1989, %v2005
        %v2022 = vmul.f32 %v1990, %v2006
        %v2023 = vmul.f32 %v1991, %v2007
        %v2024 = vmul.f32 %v1992, %v2008
        %v2025 = vmul.f32 %v1993, %v2009
        %v2026 = vmul.f32 %v1994, %v2010
        %2035 = vrot.lane.b32.xlu0 %v1987, 64
        %v2036 = vpop.permute.xlu0 %2035
        %2037 = vrot.lane.b32.xlu0 %v1988, 64
        %v2038 = vpop.permute.xlu0 %2037
        %2039 = vrot.lane.b32.xlu0 %v1989, 64
        %v2040 = vpop.permute.xlu0 %2039
        %2041 = vrot.lane.b32.xlu0 %v1990, 64
        %v2042 = vpop.permute.xlu0 %2041
        %2043 = vrot.lane.b32.xlu0 %v1991, 64
        %v2044 = vpop.permute.xlu0 %2043
        %2045 = vrot.lane.b32.xlu0 %v1992, 64
        %v2046 = vpop.permute.xlu0 %2045
        %2047 = vrot.lane.b32.xlu0 %v1993, 64
        %v2048 = vpop.permute.xlu0 %2047
        %2049 = vrot.lane.b32.xlu0 %v1994, 64
        %v2050 = vpop.permute.xlu0 %2049
        %v2059 = vmul.f32 %v1987, %v2036
        %v2060 = vmul.f32 %v1988, %v2038
        %v2061 = vmul.f32 %v1989, %v2040
        %v2062 = vmul.f32 %v1990, %v2042
        %v2063 = vmul.f32 %v1991, %v2044
        %v2064 = vmul.f32 %v1992, %v2046
        %v2065 = vmul.f32 %v1993, %v2048
        %v2066 = vmul.f32 %v1994, %v2050
        %2075 = vrot.lane.b32.xlu0 %v2059, 32
        %v2076 = vpop.permute.xlu0 %2075
        %2077 = vrot.lane.b32.xlu0 %v2060, 32
        %v2078 = vpop.permute.xlu0 %2077
        %2079 = vrot.lane.b32.xlu0 %v2061, 32
        %v2080 = vpop.permute.xlu0 %2079
        %2081 = vrot.lane.b32.xlu0 %v2062, 32
        %v2082 = vpop.permute.xlu0 %2081
        %2083 = vrot.lane.b32.xlu0 %v2063, 32
        %v2084 = vpop.permute.xlu0 %2083
        %2085 = vrot.lane.b32.xlu0 %v2064, 32
        %v2086 = vpop.permute.xlu0 %2085
        %2087 = vrot.lane.b32.xlu0 %v2065, 32
        %v2088 = vpop.permute.xlu0 %2087
        %2089 = vrot.lane.b32.xlu0 %v2066, 32
        %v2090 = vpop.permute.xlu0 %2089
        %v2099 = vadd.f32 %v2019, %v2076
        %v2100 = vadd.f32 %v2020, %v2078
        %v2101 = vadd.f32 %v2021, %v2080
        %v2102 = vadd.f32 %v2022, %v2082
        %v2103 = vadd.f32 %v2023, %v2084
        %v2104 = vadd.f32 %v2024, %v2086
        %v2105 = vadd.f32 %v2025, %v2088
        %v2106 = vadd.f32 %v2026, %v2090
        %v2107 = vtanh.pop %v2099
        %v2108 = vtanh.pop %v2100
        %v2109 = vtanh.pop %v2101
        %v2110 = vtanh.pop %v2102
        %v2111 = vtanh.pop %v2103
        %v2112 = vtanh.pop %v2104
        %v2113 = vtanh.pop %v2105
        %v2114 = vtanh.pop %v2106
        %2123 = vrot.lane.b32.xlu0 %v2107, 64
        %v2124 = vpop.permute.xlu0 %2123
        %2125 = vrot.lane.b32.xlu0 %v2108, 64
        %v2126 = vpop.permute.xlu0 %2125
        %2127 = vrot.lane.b32.xlu0 %v2109, 64
        %v2128 = vpop.permute.xlu0 %2127
        %2129 = vrot.lane.b32.xlu0 %v2110, 64
        %v2130 = vpop.permute.xlu0 %2129
        %2131 = vrot.lane.b32.xlu0 %v2111, 64
        %v2132 = vpop.permute.xlu0 %2131
        %2133 = vrot.lane.b32.xlu0 %v2112, 64
        %v2134 = vpop.permute.xlu0 %2133
        %2135 = vrot.lane.b32.xlu0 %v2113, 64
        %v2136 = vpop.permute.xlu0 %2135
        %2137 = vrot.lane.b32.xlu0 %v2114, 64
        %v2138 = vpop.permute.xlu0 %2137
        %v2147 = vmul.f32 %v1987, %v2124
        %v2148 = vmul.f32 %v1988, %v2126
        %v2149 = vmul.f32 %v1989, %v2128
        %v2150 = vmul.f32 %v1990, %v2130
        %v2151 = vmul.f32 %v1991, %v2132
        %v2152 = vmul.f32 %v1992, %v2134
        %v2153 = vmul.f32 %v1993, %v2136
        %v2154 = vmul.f32 %v1994, %v2138
        %v2163 = vrot.slane %v2147, 4
        %v2164 = vrot.slane %v2148, 3
        %v2165 = vsel %vm781, %v2164, %v2163
        %v2166 = vrot.slane %v2149, 2
        %v2167 = vsel %vm784, %v2166, %v2165
        %v2168 = vrot.slane %v2150, 1
        %v2169 = vsel %vm787, %v2168, %v2167
        %v2170 = vsel %vm790, %v2151, %v2169
        %v2171 = vrot.slane %v2152, 7
        %v2172 = vsel %vm793, %v2171, %v2170
        %v2173 = vrot.slane %v2153, 6
        %v2174 = vsel %vm796, %v2173, %v2172
        %v2175 = vrot.slane %v2154, 5
        %v2176 = vsel %vm799, %v2175, %v2174
        %2177 = vrot.lane.b32.xlu0 %v2176, 32
        %v2178 = vpop.permute.xlu0 %2177
        %v2179 = vsel %vm474, %v2178, 0
        %2181 = vmatprep.subr.mxu0 0.0
        %2182 = vmatpush1.msra.mxu0 %v463
        %2183 = vmatprep.subr.mxu0 0.0
        %2184 = vmatpush1.msra.mxu0 %v464
        %2185 = vmatprep.subr.mxu0 0.0
        %2186 = vmatpush1.msra.mxu0 %v465
        %2187 = vmatprep.subr.mxu0 0.0
        %2188 = vmatpush1.msra.mxu0 %v466
        %2189 = vmatprep.subr.mxu0 0.0
        %2190 = vmatpush1.msra.mxu0 0.0
        %2191 = vmatprep.subr.mxu0 0.0
        %2192 = vmatpush1.msra.mxu0 0.0
        %2193 = vmatprep.subr.mxu0 0.0
        %2194 = vmatpush1.msra.mxu0 0.0
        %2195 = vmatprep.subr.mxu0 0.0
        %2196 = vmatpush1.msra.mxu0 0.0
        %2197 = vmatprep.subr.mxu0 0.0
        %2198 = vmatpush1.msra.mxu0 0.0
        %2199 = vmatprep.subr.mxu0 0.0
        %2200 = vmatpush1.msra.mxu0 0.0
        %2201 = vmatprep.subr.mxu0 0.0
        %2202 = vmatpush1.msra.mxu0 0.0
        %2203 = vmatprep.subr.mxu0 0.0
        %2204 = vmatpush1.msra.mxu0 0.0
        %2205 = vmatprep.subr.mxu0 0.0
        %2206 = vmatpush1.msra.mxu0 0.0
        %2207 = vmatprep.subr.mxu0 0.0
        %2208 = vmatpush1.msra.mxu0 0.0
        %2209 = vmatprep.subr.mxu0 0.0
        %2210 = vmatpush1.msra.mxu0 0.0
        %2211 = vmatprep.subr.mxu0 0.0
        %2212 = vmatpush1.msra.mxu0 0.0
        %2213 = vmatprep.subr.mxu0 0.0
        %2214 = vmatpush1.msra.mxu0 0.0
        %2215 = vmatprep.subr.mxu0 0.0
        %2216 = vmatpush1.msra.mxu0 0.0
        %2217 = vmatprep.subr.mxu0 0.0
        %2218 = vmatpush1.msra.mxu0 0.0
        %2219 = vmatprep.subr.mxu0 0.0
        %2220 = vmatpush1.msra.mxu0 0.0
        %2221 = vmatprep.subr.mxu0 0.0
        %2222 = vmatpush1.msra.mxu0 0.0
        %2223 = vmatprep.subr.mxu0 0.0
        %2224 = vmatpush1.msra.mxu0 0.0
        %2225 = vmatprep.subr.mxu0 0.0
        %2226 = vmatpush1.msra.mxu0 0.0
        %2227 = vmatprep.subr.mxu0 0.0
        %2228 = vmatpush1.msra.mxu0 0.0
        %2229 = vmatprep.subr.mxu0 0.0
        %2230 = vmatpush1.msra.mxu0 0.0
        %2231 = vmatprep.subr.mxu0 0.0
        %2232 = vmatpush1.msra.mxu0 0.0
        %2233 = vmatprep.subr.mxu0 0.0
        %2234 = vmatpush1.msra.mxu0 0.0
        %2235 = vmatprep.subr.mxu0 0.0
        %2236 = vmatpush1.msra.mxu0 0.0
        %2237 = vmatprep.subr.mxu0 0.0
        %2238 = vmatpush1.msra.mxu0 0.0
        %2239 = vmatprep.subr.mxu0 0.0
        %2240 = vmatpush1.msra.mxu0 0.0
        %2241 = vmatprep.subr.mxu0 0.0
        %2242 = vmatpush1.msra.mxu0 0.0
        %2243 = vmatprep.subr.mxu0 0.0
        %2244 = vmatpush1.msra.mxu0 0.0
        %2245 = vmatprep.mubr.f32.mxu0 0.0
        %2246 = vmatmul.mubr.f32.gmra.mrb[0].mxu0 %v2179
        %v2247 = vpop.f32.mrb[0].mxu0
        %v2248 = vadd.f32 0.0, %v2247
        %v2249 = vpop.f32.mrb[0].mxu0
        %2250 = vdwg.mxu0
        %v2252 = vrot.slane %v2248, 3
        %v2253 = vrot.slane %v2248, 4
        %v2254 = vrot.slane %v2248, 5
        %v2255 = vrot.slane %v2248, 6
        %v2256 = vrot.slane %v2248, 7
        %v2257 = vrot.slane %v2248, 1
        %v2258 = vrot.slane %v2248, 2
        %v2267 = vadd.f32 %v425, %v2252
        %v2268 = vadd.f32 %v430, %v2253
        %v2269 = vadd.f32 %v435, %v2254
        %v2270 = vadd.f32 %v440, %v2255
        %v2271 = vadd.f32 %v445, %v2256
        %v2272 = vadd.f32 %v450, %v2248
        %v2273 = vadd.f32 %v455, %v2257
        %v2274 = vadd.f32 %v460, %v2258
        %v2275 = vxor.u32 %v2267, 2147483648
        %v2276 = vxor.u32 %v2268, 2147483648
        %v2277 = vxor.u32 %v2269, 2147483648
        %v2278 = vxor.u32 %v2270, 2147483648
        %v2279 = vxor.u32 %v2271, 2147483648
        %v2280 = vxor.u32 %v2272, 2147483648
        %v2281 = vxor.u32 %v2273, 2147483648
        %v2282 = vxor.u32 %v2274, 2147483648
        %v2283 = vmul.f32 %v2275, 1.442695
        %v2284 = vpow.pop %v2283
        %v2285 = vmul.f32 %v2276, 1.442695
        %v2286 = vpow.pop %v2285
        %v2287 = vmul.f32 %v2277, 1.442695
        %v2288 = vpow.pop %v2287
        %v2289 = vmul.f32 %v2278, 1.442695
        %v2290 = vpow.pop %v2289
        %v2291 = vmul.f32 %v2279, 1.442695
        %v2292 = vpow.pop %v2291
        %v2293 = vmul.f32 %v2280, 1.442695
        %v2294 = vpow.pop %v2293
        %v2295 = vmul.f32 %v2281, 1.442695
        %v2296 = vpow.pop %v2295
        %v2297 = vmul.f32 %v2282, 1.442695
        %v2298 = vpow.pop %v2297
        %v2299 = vadd.f32 %v2284, 1.0
        %v2300 = vadd.f32 %v2286, 1.0
        %v2301 = vadd.f32 %v2288, 1.0
        %v2302 = vadd.f32 %v2290, 1.0
        %v2303 = vadd.f32 %v2292, 1.0
        %v2304 = vadd.f32 %v2294, 1.0
        %v2305 = vadd.f32 %v2296, 1.0
        %v2306 = vadd.f32 %v2298, 1.0
        %v2307 = vrcp.pop %v2299
        %v2308 = vmul.f32 1.0, %v2307
        %v2309 = vrcp.pop %v2300
        %v2310 = vmul.f32 1.0, %v2309
        %v2311 = vrcp.pop %v2301
        %v2312 = vmul.f32 1.0, %v2311
        %v2313 = vrcp.pop %v2302
        %v2314 = vmul.f32 1.0, %v2313
        %v2315 = vrcp.pop %v2303
        %v2316 = vmul.f32 1.0, %v2315
        %v2317 = vrcp.pop %v2304
        %v2318 = vmul.f32 1.0, %v2317
        %v2319 = vrcp.pop %v2305
        %v2320 = vmul.f32 1.0, %v2319
        %v2321 = vrcp.pop %v2306
        %v2322 = vmul.f32 1.0, %v2321
        %v2323 = vmul.f32 %v2308, %v472
        %v2324 = vmul.f32 %v2310, %v472
        %v2325 = vmul.f32 %v2312, %v472
        %v2326 = vmul.f32 %v2314, %v472
        %v2327 = vmul.f32 %v2316, %v472
        %v2328 = vmul.f32 %v2318, %v472
        %v2329 = vmul.f32 %v2320, %v472
        %v2330 = vmul.f32 %v2322, %v472
        %v2331 = vadd.f32 %v2323, %v473
        %v2332 = vadd.f32 %v2324, %v473
        %v2333 = vadd.f32 %v2325, %v473
        %v2334 = vadd.f32 %v2326, %v473
        %v2335 = vadd.f32 %v2327, %v473
        %v2336 = vadd.f32 %v2328, %v473
        %v2337 = vadd.f32 %v2329, %v473
        %v2338 = vadd.f32 %v2330, %v473
        %v2347 = vrot.slane %v2099, 7
        %v2348 = vrot.slane %v2100, 7
        %v2349 = vrot.slane %v2101, 7
        %v2350 = vrot.slane %v2102, 7
        %v2351 = vrot.slane %v2103, 7
        %v2352 = vrot.slane %v2104, 7
        %v2353 = vrot.slane %v2105, 7
        %v2354 = vrot.slane %v2106, 7
        %v2363 = vmul.f32 %v2331, %v2347
        %v2364 = vmul.f32 %v2332, %v2348
        %v2365 = vmul.f32 %v2333, %v2349
        %v2366 = vmul.f32 %v2334, %v2350
        %v2367 = vmul.f32 %v2335, %v2351
        %v2368 = vmul.f32 %v2336, %v2352
        %v2369 = vmul.f32 %v2337, %v2353
        %v2370 = vmul.f32 %v2338, %v2354
        %2379 = vrot.lane.b32.xlu0 %v2331, 64
        %v2380 = vpop.permute.xlu0 %2379
        %2381 = vrot.lane.b32.xlu0 %v2332, 64
        %v2382 = vpop.permute.xlu0 %2381
        %2383 = vrot.lane.b32.xlu0 %v2333, 64
        %v2384 = vpop.permute.xlu0 %2383
        %2385 = vrot.lane.b32.xlu0 %v2334, 64
        %v2386 = vpop.permute.xlu0 %2385
        %2387 = vrot.lane.b32.xlu0 %v2335, 64
        %v2388 = vpop.permute.xlu0 %2387
        %2389 = vrot.lane.b32.xlu0 %v2336, 64
        %v2390 = vpop.permute.xlu0 %2389
        %2391 = vrot.lane.b32.xlu0 %v2337, 64
        %v2392 = vpop.permute.xlu0 %2391
        %2393 = vrot.lane.b32.xlu0 %v2338, 64
        %v2394 = vpop.permute.xlu0 %2393
        %v2403 = vmul.f32 %v2331, %v2380
        %v2404 = vmul.f32 %v2332, %v2382
        %v2405 = vmul.f32 %v2333, %v2384
        %v2406 = vmul.f32 %v2334, %v2386
        %v2407 = vmul.f32 %v2335, %v2388
        %v2408 = vmul.f32 %v2336, %v2390
        %v2409 = vmul.f32 %v2337, %v2392
        %v2410 = vmul.f32 %v2338, %v2394
        %2419 = vrot.lane.b32.xlu0 %v2403, 32
        %v2420 = vpop.permute.xlu0 %2419
        %2421 = vrot.lane.b32.xlu0 %v2404, 32
        %v2422 = vpop.permute.xlu0 %2421
        %2423 = vrot.lane.b32.xlu0 %v2405, 32
        %v2424 = vpop.permute.xlu0 %2423
        %2425 = vrot.lane.b32.xlu0 %v2406, 32
        %v2426 = vpop.permute.xlu0 %2425
        %2427 = vrot.lane.b32.xlu0 %v2407, 32
        %v2428 = vpop.permute.xlu0 %2427
        %2429 = vrot.lane.b32.xlu0 %v2408, 32
        %v2430 = vpop.permute.xlu0 %2429
        %2431 = vrot.lane.b32.xlu0 %v2409, 32
        %v2432 = vpop.permute.xlu0 %2431
        %2433 = vrot.lane.b32.xlu0 %v2410, 32
        %v2434 = vpop.permute.xlu0 %2433
        %v2443 = vadd.f32 %v2363, %v2420
        %v2444 = vadd.f32 %v2364, %v2422
        %v2445 = vadd.f32 %v2365, %v2424
        %v2446 = vadd.f32 %v2366, %v2426
        %v2447 = vadd.f32 %v2367, %v2428
        %v2448 = vadd.f32 %v2368, %v2430
        %v2449 = vadd.f32 %v2369, %v2432
        %v2450 = vadd.f32 %v2370, %v2434
        %v2451 = vtanh.pop %v2443
        %v2452 = vtanh.pop %v2444
        %v2453 = vtanh.pop %v2445
        %v2454 = vtanh.pop %v2446
        %v2455 = vtanh.pop %v2447
        %v2456 = vtanh.pop %v2448
        %v2457 = vtanh.pop %v2449
        %v2458 = vtanh.pop %v2450
        %2467 = vrot.lane.b32.xlu0 %v2451, 64
        %v2468 = vpop.permute.xlu0 %2467
        %2469 = vrot.lane.b32.xlu0 %v2452, 64
        %v2470 = vpop.permute.xlu0 %2469
        %2471 = vrot.lane.b32.xlu0 %v2453, 64
        %v2472 = vpop.permute.xlu0 %2471
        %2473 = vrot.lane.b32.xlu0 %v2454, 64
        %v2474 = vpop.permute.xlu0 %2473
        %2475 = vrot.lane.b32.xlu0 %v2455, 64
        %v2476 = vpop.permute.xlu0 %2475
        %2477 = vrot.lane.b32.xlu0 %v2456, 64
        %v2478 = vpop.permute.xlu0 %2477
        %2479 = vrot.lane.b32.xlu0 %v2457, 64
        %v2480 = vpop.permute.xlu0 %2479
        %2481 = vrot.lane.b32.xlu0 %v2458, 64
        %v2482 = vpop.permute.xlu0 %2481
        %v2491 = vmul.f32 %v2331, %v2468
        %v2492 = vmul.f32 %v2332, %v2470
        %v2493 = vmul.f32 %v2333, %v2472
        %v2494 = vmul.f32 %v2334, %v2474
        %v2495 = vmul.f32 %v2335, %v2476
        %v2496 = vmul.f32 %v2336, %v2478
        %v2497 = vmul.f32 %v2337, %v2480
        %v2498 = vmul.f32 %v2338, %v2482
        %v2507 = vrot.slane %v2491, 5
        %v2508 = vrot.slane %v2492, 4
        %v2509 = vsel %vm781, %v2508, %v2507
        %v2510 = vrot.slane %v2493, 3
        %v2511 = vsel %vm784, %v2510, %v2509
        %v2512 = vrot.slane %v2494, 2
        %v2513 = vsel %vm787, %v2512, %v2511
        %v2514 = vrot.slane %v2495, 1
        %v2515 = vsel %vm790, %v2514, %v2513
        %v2516 = vsel %vm793, %v2496, %v2515
        %v2517 = vrot.slane %v2497, 7
        %v2518 = vsel %vm796, %v2517, %v2516
        %v2519 = vrot.slane %v2498, 6
        %v2520 = vsel %vm799, %v2519, %v2518
        %2521 = vrot.lane.b32.xlu0 %v2520, 32
        %v2522 = vpop.permute.xlu0 %2521
        %v2523 = vsel %vm474, %v2522, 0
        %2525 = vmatprep.subr.mxu0 0.0
        %2526 = vmatpush1.msra.mxu0 %v463
        %2527 = vmatprep.subr.mxu0 0.0
        %2528 = vmatpush1.msra.mxu0 %v464
        %2529 = vmatprep.subr.mxu0 0.0
        %2530 = vmatpush1.msra.mxu0 %v465
        %2531 = vmatprep.subr.mxu0 0.0
        %2532 = vmatpush1.msra.mxu0 %v466
        %2533 = vmatprep.subr.mxu0 0.0
        %2534 = vmatpush1.msra.mxu0 0.0
        %2535 = vmatprep.subr.mxu0 0.0
        %2536 = vmatpush1.msra.mxu0 0.0
        %2537 = vmatprep.subr.mxu0 0.0
        %2538 = vmatpush1.msra.mxu0 0.0
        %2539 = vmatprep.subr.mxu0 0.0
        %2540 = vmatpush1.msra.mxu0 0.0
        %2541 = vmatprep.subr.mxu0 0.0
        %2542 = vmatpush1.msra.mxu0 0.0
        %2543 = vmatprep.subr.mxu0 0.0
        %2544 = vmatpush1.msra.mxu0 0.0
        %2545 = vmatprep.subr.mxu0 0.0
        %2546 = vmatpush1.msra.mxu0 0.0
        %2547 = vmatprep.subr.mxu0 0.0
        %2548 = vmatpush1.msra.mxu0 0.0
        %2549 = vmatprep.subr.mxu0 0.0
        %2550 = vmatpush1.msra.mxu0 0.0
        %2551 = vmatprep.subr.mxu0 0.0
        %2552 = vmatpush1.msra.mxu0 0.0
        %2553 = vmatprep.subr.mxu0 0.0
        %2554 = vmatpush1.msra.mxu0 0.0
        %2555 = vmatprep.subr.mxu0 0.0
        %2556 = vmatpush1.msra.mxu0 0.0
        %2557 = vmatprep.subr.mxu0 0.0
        %2558 = vmatpush1.msra.mxu0 0.0
        %2559 = vmatprep.subr.mxu0 0.0
        %2560 = vmatpush1.msra.mxu0 0.0
        %2561 = vmatprep.subr.mxu0 0.0
        %2562 = vmatpush1.msra.mxu0 0.0
        %2563 = vmatprep.subr.mxu0 0.0
        %2564 = vmatpush1.msra.mxu0 0.0
        %2565 = vmatprep.subr.mxu0 0.0
        %2566 = vmatpush1.msra.mxu0 0.0
        %2567 = vmatprep.subr.mxu0 0.0
        %2568 = vmatpush1.msra.mxu0 0.0
        %2569 = vmatprep.subr.mxu0 0.0
        %2570 = vmatpush1.msra.mxu0 0.0
        %2571 = vmatprep.subr.mxu0 0.0
        %2572 = vmatpush1.msra.mxu0 0.0
        %2573 = vmatprep.subr.mxu0 0.0
        %2574 = vmatpush1.msra.mxu0 0.0
        %2575 = vmatprep.subr.mxu0 0.0
        %2576 = vmatpush1.msra.mxu0 0.0
        %2577 = vmatprep.subr.mxu0 0.0
        %2578 = vmatpush1.msra.mxu0 0.0
        %2579 = vmatprep.subr.mxu0 0.0
        %2580 = vmatpush1.msra.mxu0 0.0
        %2581 = vmatprep.subr.mxu0 0.0
        %2582 = vmatpush1.msra.mxu0 0.0
        %2583 = vmatprep.subr.mxu0 0.0
        %2584 = vmatpush1.msra.mxu0 0.0
        %2585 = vmatprep.subr.mxu0 0.0
        %2586 = vmatpush1.msra.mxu0 0.0
        %2587 = vmatprep.subr.mxu0 0.0
        %2588 = vmatpush1.msra.mxu0 0.0
        %2589 = vmatprep.mubr.f32.mxu0 0.0
        %2590 = vmatmul.mubr.f32.gmra.mrb[0].mxu0 %v2523
        %v2591 = vpop.f32.mrb[0].mxu0
        %v2592 = vadd.f32 0.0, %v2591
        %v2593 = vpop.f32.mrb[0].mxu0
        %2594 = vdwg.mxu0
        %v2596 = vrot.slane %v2592, 2
        %v2597 = vrot.slane %v2592, 3
        %v2598 = vrot.slane %v2592, 4
        %v2599 = vrot.slane %v2592, 5
        %v2600 = vrot.slane %v2592, 6
        %v2601 = vrot.slane %v2592, 7
        %v2602 = vrot.slane %v2592, 1
        %v2611 = vadd.f32 %v425, %v2596
        %v2612 = vadd.f32 %v430, %v2597
        %v2613 = vadd.f32 %v435, %v2598
        %v2614 = vadd.f32 %v440, %v2599
        %v2615 = vadd.f32 %v445, %v2600
        %v2616 = vadd.f32 %v450, %v2601
        %v2617 = vadd.f32 %v455, %v2592
        %v2618 = vadd.f32 %v460, %v2602
        %v2619 = vxor.u32 %v2611, 2147483648
        %v2620 = vxor.u32 %v2612, 2147483648
        %v2621 = vxor.u32 %v2613, 2147483648
        %v2622 = vxor.u32 %v2614, 2147483648
        %v2623 = vxor.u32 %v2615, 2147483648
        %v2624 = vxor.u32 %v2616, 2147483648
        %v2625 = vxor.u32 %v2617, 2147483648
        %v2626 = vxor.u32 %v2618, 2147483648
        %v2627 = vmul.f32 %v2619, 1.442695
        %v2628 = vpow.pop %v2627
        %v2629 = vmul.f32 %v2620, 1.442695
        %v2630 = vpow.pop %v2629
        %v2631 = vmul.f32 %v2621, 1.442695
        %v2632 = vpow.pop %v2631
        %v2633 = vmul.f32 %v2622, 1.442695
        %v2634 = vpow.pop %v2633
        %v2635 = vmul.f32 %v2623, 1.442695
        %v2636 = vpow.pop %v2635
        %v2637 = vmul.f32 %v2624, 1.442695
        %v2638 = vpow.pop %v2637
        %v2639 = vmul.f32 %v2625, 1.442695
        %v2640 = vpow.pop %v2639
        %v2641 = vmul.f32 %v2626, 1.442695
        %v2642 = vpow.pop %v2641
        %v2643 = vadd.f32 %v2628, 1.0
        %v2644 = vadd.f32 %v2630, 1.0
        %v2645 = vadd.f32 %v2632, 1.0
        %v2646 = vadd.f32 %v2634, 1.0
        %v2647 = vadd.f32 %v2636, 1.0
        %v2648 = vadd.f32 %v2638, 1.0
        %v2649 = vadd.f32 %v2640, 1.0
        %v2650 = vadd.f32 %v2642, 1.0
        %v2651 = vrcp.pop %v2643
        %v2652 = vmul.f32 1.0, %v2651
        %v2653 = vrcp.pop %v2644
        %v2654 = vmul.f32 1.0, %v2653
        %v2655 = vrcp.pop %v2645
        %v2656 = vmul.f32 1.0, %v2655
        %v2657 = vrcp.pop %v2646
        %v2658 = vmul.f32 1.0, %v2657
        %v2659 = vrcp.pop %v2647
        %v2660 = vmul.f32 1.0, %v2659
        %v2661 = vrcp.pop %v2648
        %v2662 = vmul.f32 1.0, %v2661
        %v2663 = vrcp.pop %v2649
        %v2664 = vmul.f32 1.0, %v2663
        %v2665 = vrcp.pop %v2650
        %v2666 = vmul.f32 1.0, %v2665
        %v2667 = vmul.f32 %v2652, %v472
        %v2668 = vmul.f32 %v2654, %v472
        %v2669 = vmul.f32 %v2656, %v472
        %v2670 = vmul.f32 %v2658, %v472
        %v2671 = vmul.f32 %v2660, %v472
        %v2672 = vmul.f32 %v2662, %v472
        %v2673 = vmul.f32 %v2664, %v472
        %v2674 = vmul.f32 %v2666, %v472
        %v2675 = vadd.f32 %v2667, %v473
        %v2676 = vadd.f32 %v2668, %v473
        %v2677 = vadd.f32 %v2669, %v473
        %v2678 = vadd.f32 %v2670, %v473
        %v2679 = vadd.f32 %v2671, %v473
        %v2680 = vadd.f32 %v2672, %v473
        %v2681 = vadd.f32 %v2673, %v473
        %v2682 = vadd.f32 %v2674, %v473
        %v2691 = vrot.slane %v2443, 7
        %v2692 = vrot.slane %v2444, 7
        %v2693 = vrot.slane %v2445, 7
        %v2694 = vrot.slane %v2446, 7
        %v2695 = vrot.slane %v2447, 7
        %v2696 = vrot.slane %v2448, 7
        %v2697 = vrot.slane %v2449, 7
        %v2698 = vrot.slane %v2450, 7
        %v2707 = vmul.f32 %v2675, %v2691
        %v2708 = vmul.f32 %v2676, %v2692
        %v2709 = vmul.f32 %v2677, %v2693
        %v2710 = vmul.f32 %v2678, %v2694
        %v2711 = vmul.f32 %v2679, %v2695
        %v2712 = vmul.f32 %v2680, %v2696
        %v2713 = vmul.f32 %v2681, %v2697
        %v2714 = vmul.f32 %v2682, %v2698
        %2723 = vrot.lane.b32.xlu0 %v2675, 64
        %v2724 = vpop.permute.xlu0 %2723
        %2725 = vrot.lane.b32.xlu0 %v2676, 64
        %v2726 = vpop.permute.xlu0 %2725
        %2727 = vrot.lane.b32.xlu0 %v2677, 64
        %v2728 = vpop.permute.xlu0 %2727
        %2729 = vrot.lane.b32.xlu0 %v2678, 64
        %v2730 = vpop.permute.xlu0 %2729
        %2731 = vrot.lane.b32.xlu0 %v2679, 64
        %v2732 = vpop.permute.xlu0 %2731
        %2733 = vrot.lane.b32.xlu0 %v2680, 64
        %v2734 = vpop.permute.xlu0 %2733
        %2735 = vrot.lane.b32.xlu0 %v2681, 64
        %v2736 = vpop.permute.xlu0 %2735
        %2737 = vrot.lane.b32.xlu0 %v2682, 64
        %v2738 = vpop.permute.xlu0 %2737
        %v2747 = vmul.f32 %v2675, %v2724
        %v2748 = vmul.f32 %v2676, %v2726
        %v2749 = vmul.f32 %v2677, %v2728
        %v2750 = vmul.f32 %v2678, %v2730
        %v2751 = vmul.f32 %v2679, %v2732
        %v2752 = vmul.f32 %v2680, %v2734
        %v2753 = vmul.f32 %v2681, %v2736
        %v2754 = vmul.f32 %v2682, %v2738
        %2763 = vrot.lane.b32.xlu0 %v2747, 32
        %v2764 = vpop.permute.xlu0 %2763
        %2765 = vrot.lane.b32.xlu0 %v2748, 32
        %v2766 = vpop.permute.xlu0 %2765
        %2767 = vrot.lane.b32.xlu0 %v2749, 32
        %v2768 = vpop.permute.xlu0 %2767
        %2769 = vrot.lane.b32.xlu0 %v2750, 32
        %v2770 = vpop.permute.xlu0 %2769
        %2771 = vrot.lane.b32.xlu0 %v2751, 32
        %v2772 = vpop.permute.xlu0 %2771
        %2773 = vrot.lane.b32.xlu0 %v2752, 32
        %v2774 = vpop.permute.xlu0 %2773
        %2775 = vrot.lane.b32.xlu0 %v2753, 32
        %v2776 = vpop.permute.xlu0 %2775
        %2777 = vrot.lane.b32.xlu0 %v2754, 32
        %v2778 = vpop.permute.xlu0 %2777
        %v2787 = vadd.f32 %v2707, %v2764
        %v2788 = vadd.f32 %v2708, %v2766
        %v2789 = vadd.f32 %v2709, %v2768
        %v2790 = vadd.f32 %v2710, %v2770
        %v2791 = vadd.f32 %v2711, %v2772
        %v2792 = vadd.f32 %v2712, %v2774
        %v2793 = vadd.f32 %v2713, %v2776
        %v2794 = vadd.f32 %v2714, %v2778
        %v2795 = vtanh.pop %v2787
        %v2796 = vtanh.pop %v2788
        %v2797 = vtanh.pop %v2789
        %v2798 = vtanh.pop %v2790
        %v2799 = vtanh.pop %v2791
        %v2800 = vtanh.pop %v2792
        %v2801 = vtanh.pop %v2793
        %v2802 = vtanh.pop %v2794
        %2811 = vrot.lane.b32.xlu0 %v2795, 64
        %v2812 = vpop.permute.xlu0 %2811
        %2813 = vrot.lane.b32.xlu0 %v2796, 64
        %v2814 = vpop.permute.xlu0 %2813
        %2815 = vrot.lane.b32.xlu0 %v2797, 64
        %v2816 = vpop.permute.xlu0 %2815
        %2817 = vrot.lane.b32.xlu0 %v2798, 64
        %v2818 = vpop.permute.xlu0 %2817
        %2819 = vrot.lane.b32.xlu0 %v2799, 64
        %v2820 = vpop.permute.xlu0 %2819
        %2821 = vrot.lane.b32.xlu0 %v2800, 64
        %v2822 = vpop.permute.xlu0 %2821
        %2823 = vrot.lane.b32.xlu0 %v2801, 64
        %v2824 = vpop.permute.xlu0 %2823
        %2825 = vrot.lane.b32.xlu0 %v2802, 64
        %v2826 = vpop.permute.xlu0 %2825
        %v2835 = vmul.f32 %v2675, %v2812
        %v2836 = vmul.f32 %v2676, %v2814
        %v2837 = vmul.f32 %v2677, %v2816
        %v2838 = vmul.f32 %v2678, %v2818
        %v2839 = vmul.f32 %v2679, %v2820
        %v2840 = vmul.f32 %v2680, %v2822
        %v2841 = vmul.f32 %v2681, %v2824
        %v2842 = vmul.f32 %v2682, %v2826
        %v2851 = vrot.slane %v2835, 6
        %v2852 = vrot.slane %v2836, 5
        %v2853 = vsel %vm781, %v2852, %v2851
        %v2854 = vrot.slane %v2837, 4
        %v2855 = vsel %vm784, %v2854, %v2853
        %v2856 = vrot.slane %v2838, 3
        %v2857 = vsel %vm787, %v2856, %v2855
        %v2858 = vrot.slane %v2839, 2
        %v2859 = vsel %vm790, %v2858, %v2857
        %v2860 = vrot.slane %v2840, 1
        %v2861 = vsel %vm793, %v2860, %v2859
        %v2862 = vsel %vm796, %v2841, %v2861
        %v2863 = vrot.slane %v2842, 7
        %v2864 = vsel %vm799, %v2863, %v2862
        %2865 = vrot.lane.b32.xlu0 %v2864, 32
        %v2866 = vpop.permute.xlu0 %2865
        %v2867 = vsel %vm474, %v2866, 0
        %2869 = vmatprep.subr.mxu0 0.0
        %2870 = vmatpush1.msra.mxu0 %v463
        %2871 = vmatprep.subr.mxu0 0.0
        %2872 = vmatpush1.msra.mxu0 %v464
        %2873 = vmatprep.subr.mxu0 0.0
        %2874 = vmatpush1.msra.mxu0 %v465
        %2875 = vmatprep.subr.mxu0 0.0
        %2876 = vmatpush1.msra.mxu0 %v466
        %2877 = vmatprep.subr.mxu0 0.0
        %2878 = vmatpush1.msra.mxu0 0.0
        %2879 = vmatprep.subr.mxu0 0.0
        %2880 = vmatpush1.msra.mxu0 0.0
        %2881 = vmatprep.subr.mxu0 0.0
        %2882 = vmatpush1.msra.mxu0 0.0
        %2883 = vmatprep.subr.mxu0 0.0
        %2884 = vmatpush1.msra.mxu0 0.0
        %2885 = vmatprep.subr.mxu0 0.0
        %2886 = vmatpush1.msra.mxu0 0.0
        %2887 = vmatprep.subr.mxu0 0.0
        %2888 = vmatpush1.msra.mxu0 0.0
        %2889 = vmatprep.subr.mxu0 0.0
        %2890 = vmatpush1.msra.mxu0 0.0
        %2891 = vmatprep.subr.mxu0 0.0
        %2892 = vmatpush1.msra.mxu0 0.0
        %2893 = vmatprep.subr.mxu0 0.0
        %2894 = vmatpush1.msra.mxu0 0.0
        %2895 = vmatprep.subr.mxu0 0.0
        %2896 = vmatpush1.msra.mxu0 0.0
        %2897 = vmatprep.subr.mxu0 0.0
        %2898 = vmatpush1.msra.mxu0 0.0
        %2899 = vmatprep.subr.mxu0 0.0
        %2900 = vmatpush1.msra.mxu0 0.0
        %2901 = vmatprep.subr.mxu0 0.0
        %2902 = vmatpush1.msra.mxu0 0.0
        %2903 = vmatprep.subr.mxu0 0.0
        %2904 = vmatpush1.msra.mxu0 0.0
        %2905 = vmatprep.subr.mxu0 0.0
        %2906 = vmatpush1.msra.mxu0 0.0
        %2907 = vmatprep.subr.mxu0 0.0
        %2908 = vmatpush1.msra.mxu0 0.0
        %2909 = vmatprep.subr.mxu0 0.0
        %2910 = vmatpush1.msra.mxu0 0.0
        %2911 = vmatprep.subr.mxu0 0.0
        %2912 = vmatpush1.msra.mxu0 0.0
        %2913 = vmatprep.subr.mxu0 0.0
        %2914 = vmatpush1.msra.mxu0 0.0
        %2915 = vmatprep.subr.mxu0 0.0
        %2916 = vmatpush1.msra.mxu0 0.0
        %2917 = vmatprep.subr.mxu0 0.0
        %2918 = vmatpush1.msra.mxu0 0.0
        %2919 = vmatprep.subr.mxu0 0.0
        %2920 = vmatpush1.msra.mxu0 0.0
        %2921 = vmatprep.subr.mxu0 0.0
        %2922 = vmatpush1.msra.mxu0 0.0
        %2923 = vmatprep.subr.mxu0 0.0
        %2924 = vmatpush1.msra.mxu0 0.0
        %2925 = vmatprep.subr.mxu0 0.0
        %2926 = vmatpush1.msra.mxu0 0.0
        %2927 = vmatprep.subr.mxu0 0.0
        %2928 = vmatpush1.msra.mxu0 0.0
        %2929 = vmatprep.subr.mxu0 0.0
        %2930 = vmatpush1.msra.mxu0 0.0
        %2931 = vmatprep.subr.mxu0 0.0
        %2932 = vmatpush1.msra.mxu0 0.0
        %2933 = vmatprep.mubr.f32.mxu0 0.0
        %2934 = vmatmul.mubr.f32.gmra.mrb[0].mxu0 %v2867
        %v2935 = vpop.f32.mrb[0].mxu0
        %v2936 = vadd.f32 0.0, %v2935
        %v2937 = vpop.f32.mrb[0].mxu0
        %2938 = vdwg.mxu0
        %v2940 = vrot.slane %v2936, 1
        %v2941 = vrot.slane %v2936, 2
        %v2942 = vrot.slane %v2936, 3
        %v2943 = vrot.slane %v2936, 4
        %v2944 = vrot.slane %v2936, 5
        %v2945 = vrot.slane %v2936, 6
        %v2946 = vrot.slane %v2936, 7
        %v2955 = vadd.f32 %v425, %v2940
        %v2956 = vadd.f32 %v430, %v2941
        %v2957 = vadd.f32 %v435, %v2942
        %v2958 = vadd.f32 %v440, %v2943
        %v2959 = vadd.f32 %v445, %v2944
        %v2960 = vadd.f32 %v450, %v2945
        %v2961 = vadd.f32 %v455, %v2946
        %v2962 = vadd.f32 %v460, %v2936
        %v2963 = vxor.u32 %v2955, 2147483648
        %v2964 = vxor.u32 %v2956, 2147483648
        %v2965 = vxor.u32 %v2957, 2147483648
        %v2966 = vxor.u32 %v2958, 2147483648
        %v2967 = vxor.u32 %v2959, 2147483648
        %v2968 = vxor.u32 %v2960, 2147483648
        %v2969 = vxor.u32 %v2961, 2147483648
        %v2970 = vxor.u32 %v2962, 2147483648
        %v2971 = vmul.f32 %v2963, 1.442695
        %v2972 = vpow.pop %v2971
        %v2973 = vmul.f32 %v2964, 1.442695
        %v2974 = vpow.pop %v2973
        %v2975 = vmul.f32 %v2965, 1.442695
        %v2976 = vpow.pop %v2975
        %v2977 = vmul.f32 %v2966, 1.442695
        %v2978 = vpow.pop %v2977
        %v2979 = vmul.f32 %v2967, 1.442695
        %v2980 = vpow.pop %v2979
        %v2981 = vmul.f32 %v2968, 1.442695
        %v2982 = vpow.pop %v2981
        %v2983 = vmul.f32 %v2969, 1.442695
        %v2984 = vpow.pop %v2983
        %v2985 = vmul.f32 %v2970, 1.442695
        %v2986 = vpow.pop %v2985
        %v2987 = vadd.f32 %v2972, 1.0
        %v2988 = vadd.f32 %v2974, 1.0
        %v2989 = vadd.f32 %v2976, 1.0
        %v2990 = vadd.f32 %v2978, 1.0
        %v2991 = vadd.f32 %v2980, 1.0
        %v2992 = vadd.f32 %v2982, 1.0
        %v2993 = vadd.f32 %v2984, 1.0
        %v2994 = vadd.f32 %v2986, 1.0
        %v2995 = vrcp.pop %v2987
        %v2996 = vmul.f32 1.0, %v2995
        %v2997 = vrcp.pop %v2988
        %v2998 = vmul.f32 1.0, %v2997
        %v2999 = vrcp.pop %v2989
        %v3000 = vmul.f32 1.0, %v2999
        %v3001 = vrcp.pop %v2990
        %v3002 = vmul.f32 1.0, %v3001
        %v3003 = vrcp.pop %v2991
        %v3004 = vmul.f32 1.0, %v3003
        %v3005 = vrcp.pop %v2992
        %v3006 = vmul.f32 1.0, %v3005
        %v3007 = vrcp.pop %v2993
        %v3008 = vmul.f32 1.0, %v3007
        %v3009 = vrcp.pop %v2994
        %v3010 = vmul.f32 1.0, %v3009
        %v3011 = vmul.f32 %v2996, %v472
        %v3012 = vmul.f32 %v2998, %v472
        %v3013 = vmul.f32 %v3000, %v472
        %v3014 = vmul.f32 %v3002, %v472
        %v3015 = vmul.f32 %v3004, %v472
        %v3016 = vmul.f32 %v3006, %v472
        %v3017 = vmul.f32 %v3008, %v472
        %v3018 = vmul.f32 %v3010, %v472
        %v3019 = vadd.f32 %v3011, %v473
        %v3020 = vadd.f32 %v3012, %v473
        %v3021 = vadd.f32 %v3013, %v473
        %v3022 = vadd.f32 %v3014, %v473
        %v3023 = vadd.f32 %v3015, %v473
        %v3024 = vadd.f32 %v3016, %v473
        %v3025 = vadd.f32 %v3017, %v473
        %v3026 = vadd.f32 %v3018, %v473
        %v3035 = vrot.slane %v2787, 7
        %v3036 = vrot.slane %v2788, 7
        %v3037 = vrot.slane %v2789, 7
        %v3038 = vrot.slane %v2790, 7
        %v3039 = vrot.slane %v2791, 7
        %v3040 = vrot.slane %v2792, 7
        %v3041 = vrot.slane %v2793, 7
        %v3042 = vrot.slane %v2794, 7
        %v3051 = vmul.f32 %v3019, %v3035
        %v3052 = vmul.f32 %v3020, %v3036
        %v3053 = vmul.f32 %v3021, %v3037
        %v3054 = vmul.f32 %v3022, %v3038
        %v3055 = vmul.f32 %v3023, %v3039
        %v3056 = vmul.f32 %v3024, %v3040
        %v3057 = vmul.f32 %v3025, %v3041
        %v3058 = vmul.f32 %v3026, %v3042
        %3067 = vrot.lane.b32.xlu0 %v3019, 64
        %v3068 = vpop.permute.xlu0 %3067
        %3069 = vrot.lane.b32.xlu0 %v3020, 64
        %v3070 = vpop.permute.xlu0 %3069
        %3071 = vrot.lane.b32.xlu0 %v3021, 64
        %v3072 = vpop.permute.xlu0 %3071
        %3073 = vrot.lane.b32.xlu0 %v3022, 64
        %v3074 = vpop.permute.xlu0 %3073
        %3075 = vrot.lane.b32.xlu0 %v3023, 64
        %v3076 = vpop.permute.xlu0 %3075
        %3077 = vrot.lane.b32.xlu0 %v3024, 64
        %v3078 = vpop.permute.xlu0 %3077
        %3079 = vrot.lane.b32.xlu0 %v3025, 64
        %v3080 = vpop.permute.xlu0 %3079
        %3081 = vrot.lane.b32.xlu0 %v3026, 64
        %v3082 = vpop.permute.xlu0 %3081
        %v3091 = vmul.f32 %v3019, %v3068
        %v3092 = vmul.f32 %v3020, %v3070
        %v3093 = vmul.f32 %v3021, %v3072
        %v3094 = vmul.f32 %v3022, %v3074
        %v3095 = vmul.f32 %v3023, %v3076
        %v3096 = vmul.f32 %v3024, %v3078
        %v3097 = vmul.f32 %v3025, %v3080
        %v3098 = vmul.f32 %v3026, %v3082
        %3107 = vrot.lane.b32.xlu0 %v3091, 32
        %v3108 = vpop.permute.xlu0 %3107
        %3109 = vrot.lane.b32.xlu0 %v3092, 32
        %v3110 = vpop.permute.xlu0 %3109
        %3111 = vrot.lane.b32.xlu0 %v3093, 32
        %v3112 = vpop.permute.xlu0 %3111
        %3113 = vrot.lane.b32.xlu0 %v3094, 32
        %v3114 = vpop.permute.xlu0 %3113
        %3115 = vrot.lane.b32.xlu0 %v3095, 32
        %v3116 = vpop.permute.xlu0 %3115
        %3117 = vrot.lane.b32.xlu0 %v3096, 32
        %v3118 = vpop.permute.xlu0 %3117
        %3119 = vrot.lane.b32.xlu0 %v3097, 32
        %v3120 = vpop.permute.xlu0 %3119
        %3121 = vrot.lane.b32.xlu0 %v3098, 32
        %v3122 = vpop.permute.xlu0 %3121
        %v3131 = vadd.f32 %v3051, %v3108
        %v3132 = vadd.f32 %v3052, %v3110
        %v3133 = vadd.f32 %v3053, %v3112
        %v3134 = vadd.f32 %v3054, %v3114
        %v3135 = vadd.f32 %v3055, %v3116
        %v3136 = vadd.f32 %v3056, %v3118
        %v3137 = vadd.f32 %v3057, %v3120
        %v3138 = vadd.f32 %v3058, %v3122
        %v3139 = vtanh.pop %v3131
        %v3140 = vtanh.pop %v3132
        %v3141 = vtanh.pop %v3133
        %v3142 = vtanh.pop %v3134
        %v3143 = vtanh.pop %v3135
        %v3144 = vtanh.pop %v3136
        %v3145 = vtanh.pop %v3137
        %v3146 = vtanh.pop %v3138
        %3155 = vrot.lane.b32.xlu0 %v3139, 64
        %v3156 = vpop.permute.xlu0 %3155
        %3157 = vrot.lane.b32.xlu0 %v3140, 64
        %v3158 = vpop.permute.xlu0 %3157
        %3159 = vrot.lane.b32.xlu0 %v3141, 64
        %v3160 = vpop.permute.xlu0 %3159
        %3161 = vrot.lane.b32.xlu0 %v3142, 64
        %v3162 = vpop.permute.xlu0 %3161
        %3163 = vrot.lane.b32.xlu0 %v3143, 64
        %v3164 = vpop.permute.xlu0 %3163
        %3165 = vrot.lane.b32.xlu0 %v3144, 64
        %v3166 = vpop.permute.xlu0 %3165
        %3167 = vrot.lane.b32.xlu0 %v3145, 64
        %v3168 = vpop.permute.xlu0 %3167
        %3169 = vrot.lane.b32.xlu0 %v3146, 64
        %v3170 = vpop.permute.xlu0 %3169
        %v3179 = vmul.f32 %v3019, %v3156
        %v3180 = vmul.f32 %v3020, %v3158
        %v3181 = vmul.f32 %v3021, %v3160
        %v3182 = vmul.f32 %v3022, %v3162
        %v3183 = vmul.f32 %v3023, %v3164
        %v3184 = vmul.f32 %v3024, %v3166
        %v3185 = vmul.f32 %v3025, %v3168
        %v3186 = vmul.f32 %v3026, %v3170
        %v3187 = vrot.slane %v1116, 1
        %v3188 = vrot.slane %v1117, 1
        %v3189 = vrot.slane %v1118, 1
        %v3190 = vrot.slane %v1119, 1
        %v3191 = vrot.slane %v1120, 1
        %v3192 = vrot.slane %v1121, 1
        %v3193 = vrot.slane %v1122, 1
        %v3194 = vrot.slane %v1460, 2
        %v3195 = vrot.slane %v1461, 2
        %v3196 = vrot.slane %v1462, 2
        %v3197 = vrot.slane %v1463, 2
        %v3198 = vrot.slane %v1464, 2
        %v3199 = vrot.slane %v1465, 2
        %v3200 = vrot.slane %v1466, 2
        %v3201 = vrot.slane %v1804, 3
        %v3202 = vrot.slane %v1805, 3
        %v3203 = vrot.slane %v1806, 3
        %v3204 = vrot.slane %v1807, 3
        %v3205 = vrot.slane %v1808, 3
        %v3206 = vrot.slane %v1809, 3
        %v3207 = vrot.slane %v1810, 3
        %v3208 = vrot.slane %v2148, 4
        %v3209 = vrot.slane %v2149, 4
        %v3210 = vrot.slane %v2150, 4
        %v3211 = vrot.slane %v2151, 4
        %v3212 = vrot.slane %v2152, 4
        %v3213 = vrot.slane %v2153, 4
        %v3214 = vrot.slane %v2154, 4
        %v3215 = vrot.slane %v2492, 5
        %v3216 = vrot.slane %v2493, 5
        %v3217 = vrot.slane %v2494, 5
        %v3218 = vrot.slane %v2495, 5
        %v3219 = vrot.slane %v2496, 5
        %v3220 = vrot.slane %v2497, 5
        %v3221 = vrot.slane %v2498, 5
        %v3222 = vrot.slane %v2836, 6
        %v3223 = vrot.slane %v2837, 6
        %v3224 = vrot.slane %v2838, 6
        %v3225 = vrot.slane %v2839, 6
        %v3226 = vrot.slane %v2840, 6
        %v3227 = vrot.slane %v2841, 6
        %v3228 = vrot.slane %v2842, 6
        %v3237 = vrot.slane %v3179, 7
        %v3238 = vrot.slane %v3180, 7
        %v3239 = vrot.slane %v3181, 7
        %v3240 = vrot.slane %v3182, 7
        %v3241 = vrot.slane %v3183, 7
        %v3242 = vrot.slane %v3184, 7
        %v3243 = vrot.slane %v3185, 7
        %v3244 = vrot.slane %v3186, 7
        %v3245 = vld [vmem:[%s4] sm:$0xff]
        %v3246 = vld [vmem:[%s4 + $0x8] sm:$0xff]
        %v3247 = vld [vmem:[%s4 + $0x10] sm:$0xff]
        %v3248 = vld [vmem:[%s4 + $0x18] sm:$0xff]
        %v3249 = vld [vmem:[%s4 + $0x60] sm:$0x1]
        %v3250 = vlaneseq
        %v3251 = vshrl.u32 %v3250, 7
        %v3252 = vsub.s32 0, %v3251
        %v3253 = vrot.slane %v3249, %v3252
        %v3254 = vrot.slane %v3187, 7
        %v3255 = vsel %vm781, %v3254, %v1131
        %v3256 = vrot.slane %v3188, 6
        %v3257 = vsel %vm784, %v3256, %v3255
        %v3258 = vrot.slane %v3189, 5
        %v3259 = vsel %vm787, %v3258, %v3257
        %v3260 = vrot.slane %v3190, 4
        %v3261 = vsel %vm790, %v3260, %v3259
        %v3262 = vrot.slane %v3191, 3
        %v3263 = vsel %vm793, %v3262, %v3261
        %v3264 = vrot.slane %v3192, 2
        %v3265 = vsel %vm796, %v3264, %v3263
        %v3266 = vrot.slane %v3193, 1
        %v3267 = vsel %vm799, %v3266, %v3265
        %v3268 = vrot.slane %v3194, 7
        %v3269 = vsel %vm781, %v3268, %v1475
        %v3270 = vrot.slane %v3195, 6
        %v3271 = vsel %vm784, %v3270, %v3269
        %v3272 = vrot.slane %v3196, 5
        %v3273 = vsel %vm787, %v3272, %v3271
        %v3274 = vrot.slane %v3197, 4
        %v3275 = vsel %vm790, %v3274, %v3273
        %v3276 = vrot.slane %v3198, 3
        %v3277 = vsel %vm793, %v3276, %v3275
        %v3278 = vrot.slane %v3199, 2
        %v3279 = vsel %vm796, %v3278, %v3277
        %v3280 = vrot.slane %v3200, 1
        %v3281 = vsel %vm799, %v3280, %v3279
        %v3282 = vrot.slane %v3201, 7
        %v3283 = vsel %vm781, %v3282, %v1819
        %v3284 = vrot.slane %v3202, 6
        %v3285 = vsel %vm784, %v3284, %v3283
        %v3286 = vrot.slane %v3203, 5
        %v3287 = vsel %vm787, %v3286, %v3285
        %v3288 = vrot.slane %v3204, 4
        %v3289 = vsel %vm790, %v3288, %v3287
        %v3290 = vrot.slane %v3205, 3
        %v3291 = vsel %vm793, %v3290, %v3289
        %v3292 = vrot.slane %v3206, 2
        %v3293 = vsel %vm796, %v3292, %v3291
        %v3294 = vrot.slane %v3207, 1
        %v3295 = vsel %vm799, %v3294, %v3293
        %v3296 = vrot.slane %v3208, 7
        %v3297 = vsel %vm781, %v3296, %v2163
        %v3298 = vrot.slane %v3209, 6
        %v3299 = vsel %vm784, %v3298, %v3297
        %v3300 = vrot.slane %v3210, 5
        %v3301 = vsel %vm787, %v3300, %v3299
        %v3302 = vrot.slane %v3211, 4
        %v3303 = vsel %vm790, %v3302, %v3301
        %v3304 = vrot.slane %v3212, 3
        %v3305 = vsel %vm793, %v3304, %v3303
        %v3306 = vrot.slane %v3213, 2
        %v3307 = vsel %vm796, %v3306, %v3305
        %v3308 = vrot.slane %v3214, 1
        %v3309 = vsel %vm799, %v3308, %v3307
        %v3310 = vrot.slane %v3215, 7
        %v3311 = vsel %vm781, %v3310, %v2507
        %v3312 = vrot.slane %v3216, 6
        %v3313 = vsel %vm784, %v3312, %v3311
        %v3314 = vrot.slane %v3217, 5
        %v3315 = vsel %vm787, %v3314, %v3313
        %v3316 = vrot.slane %v3218, 4
        %v3317 = vsel %vm790, %v3316, %v3315
        %v3318 = vrot.slane %v3219, 3
        %v3319 = vsel %vm793, %v3318, %v3317
        %v3320 = vrot.slane %v3220, 2
        %v3321 = vsel %vm796, %v3320, %v3319
        %v3322 = vrot.slane %v3221, 1
        %v3323 = vsel %vm799, %v3322, %v3321
        %v3324 = vrot.slane %v3222, 7
        %v3325 = vsel %vm781, %v3324, %v2851
        %v3326 = vrot.slane %v3223, 6
        %v3327 = vsel %vm784, %v3326, %v3325
        %v3328 = vrot.slane %v3224, 5
        %v3329 = vsel %vm787, %v3328, %v3327
        %v3330 = vrot.slane %v3225, 4
        %v3331 = vsel %vm790, %v3330, %v3329
        %v3332 = vrot.slane %v3226, 3
        %v3333 = vsel %vm793, %v3332, %v3331
        %v3334 = vrot.slane %v3227, 2
        %v3335 = vsel %vm796, %v3334, %v3333
        %v3336 = vrot.slane %v3228, 1
        %v3337 = vsel %vm799, %v3336, %v3335
        %v3338 = vrot.slane %v3238, 7
        %v3339 = vsel %vm781, %v3338, %v3237
        %v3340 = vrot.slane %v3239, 6
        %v3341 = vsel %vm784, %v3340, %v3339
        %v3342 = vrot.slane %v3240, 5
        %v3343 = vsel %vm787, %v3342, %v3341
        %v3344 = vrot.slane %v3241, 4
        %v3345 = vsel %vm790, %v3344, %v3343
        %v3346 = vrot.slane %v3242, 3
        %v3347 = vsel %vm793, %v3346, %v3345
        %v3348 = vrot.slane %v3243, 2
        %v3349 = vsel %vm796, %v3348, %v3347
        %v3350 = vrot.slane %v3244, 1
        %v3351 = vsel %vm799, %v3350, %v3349
        %3352 = vrot.lane.b32.xlu0 %v3267, 32
        %v3353 = vpop.permute.xlu0 %3352
        %3354 = vrot.lane.b32.xlu0 %v3281, 32
        %v3355 = vpop.permute.xlu0 %3354
        %3356 = vrot.lane.b32.xlu0 %v3295, 32
        %v3357 = vpop.permute.xlu0 %3356
        %3358 = vrot.lane.b32.xlu0 %v3309, 32
        %v3359 = vpop.permute.xlu0 %3358
        %3360 = vrot.lane.b32.xlu0 %v3323, 32
        %v3361 = vpop.permute.xlu0 %3360
        %3362 = vrot.lane.b32.xlu0 %v3337, 32
        %v3363 = vpop.permute.xlu0 %3362
        %3364 = vrot.lane.b32.xlu0 %v3351, 32
        %v3365 = vpop.permute.xlu0 %3364
        %v3366 = vsel %vm474, %v3353, 0
        %v3368 = vsel %vm474, %v3355, 0
        %v3370 = vsel %vm474, %v3357, 0
        %v3372 = vsel %vm474, %v3359, 0
        %v3374 = vsel %vm474, %v3361, 0
        %v3376 = vsel %vm474, %v3363, 0
        %v3378 = vsel %vm474, %v3365, 0
        %3380 = vmatprep.subr.mxu0 0.0
        %3381 = vmatpush1.msra.mxu0 %v3245
        %3382 = vmatprep.subr.mxu0 0.0
        %3383 = vmatpush1.msra.mxu0 %v3246
        %3384 = vmatprep.subr.mxu0 0.0
        %3385 = vmatpush1.msra.mxu0 %v3247
        %3386 = vmatprep.subr.mxu0 0.0
        %3387 = vmatpush1.msra.mxu0 %v3248
        %3388 = vmatprep.subr.mxu0 0.0
        %3389 = vmatpush1.msra.mxu0 0.0
        %3390 = vmatprep.subr.mxu0 0.0
        %3391 = vmatpush1.msra.mxu0 0.0
        %3392 = vmatprep.subr.mxu0 0.0
        %3393 = vmatpush1.msra.mxu0 0.0
        %3394 = vmatprep.subr.mxu0 0.0
        %3395 = vmatpush1.msra.mxu0 0.0
        %3396 = vmatprep.subr.mxu0 0.0
        %3397 = vmatpush1.msra.mxu0 0.0
        %3398 = vmatprep.subr.mxu0 0.0
        %3399 = vmatpush1.msra.mxu0 0.0
        %3400 = vmatprep.subr.mxu0 0.0
        %3401 = vmatpush1.msra.mxu0 0.0
        %3402 = vmatprep.subr.mxu0 0.0
        %3403 = vmatpush1.msra.mxu0 0.0
        %3404 = vmatprep.subr.mxu0 0.0
        %3405 = vmatpush1.msra.mxu0 0.0
        %3406 = vmatprep.subr.mxu0 0.0
        %3407 = vmatpush1.msra.mxu0 0.0
        %3408 = vmatprep.subr.mxu0 0.0
        %3409 = vmatpush1.msra.mxu0 0.0
        %3410 = vmatprep.subr.mxu0 0.0
        %3411 = vmatpush1.msra.mxu0 0.0
        %3412 = vmatprep.subr.mxu0 0.0
        %3413 = vmatpush1.msra.mxu0 0.0
        %3414 = vmatprep.subr.mxu0 0.0
        %3415 = vmatpush1.msra.mxu0 0.0
        %3416 = vmatprep.subr.mxu0 0.0
        %3417 = vmatpush1.msra.mxu0 0.0
        %3418 = vmatprep.subr.mxu0 0.0
        %3419 = vmatpush1.msra.mxu0 0.0
        %3420 = vmatprep.subr.mxu0 0.0
        %3421 = vmatpush1.msra.mxu0 0.0
        %3422 = vmatprep.subr.mxu0 0.0
        %3423 = vmatpush1.msra.mxu0 0.0
        %3424 = vmatprep.subr.mxu0 0.0
        %3425 = vmatpush1.msra.mxu0 0.0
        %3426 = vmatprep.subr.mxu0 0.0
        %3427 = vmatpush1.msra.mxu0 0.0
        %3428 = vmatprep.subr.mxu0 0.0
        %3429 = vmatpush1.msra.mxu0 0.0
        %3430 = vmatprep.subr.mxu0 0.0
        %3431 = vmatpush1.msra.mxu0 0.0
        %3432 = vmatprep.subr.mxu0 0.0
        %3433 = vmatpush1.msra.mxu0 0.0
        %3434 = vmatprep.subr.mxu0 0.0
        %3435 = vmatpush1.msra.mxu0 0.0
        %3436 = vmatprep.subr.mxu0 0.0
        %3437 = vmatpush1.msra.mxu0 0.0
        %3438 = vmatprep.subr.mxu0 0.0
        %3439 = vmatpush1.msra.mxu0 0.0
        %3440 = vmatprep.subr.mxu0 0.0
        %3441 = vmatpush1.msra.mxu0 0.0
        %3442 = vmatprep.subr.mxu0 0.0
        %3443 = vmatpush1.msra.mxu0 0.0
        %3444 = vmatprep.mubr.f32.mxu0 0.0
        %3445 = vmatmul.mubr.f32.gmra.mrb[0].mxu0 %v803
        %v3446 = vpop.f32.mrb[0].mxu0
        %v3447 = vadd.f32 %v3253, %v3446
        %v3448 = vpop.f32.mrb[0].mxu0
        %3449 = vmatprep.mubr.f32.mxu0 0.0
        %3450 = vmatmul.mubr.f32.gmra.mrb[0].mxu0 %v3366
        %v3451 = vpop.f32.mrb[0].mxu0
        %v3452 = vadd.f32 %v3253, %v3451
        %v3453 = vpop.f32.mrb[0].mxu0
        %3454 = vmatprep.mubr.f32.mxu0 0.0
        %3455 = vmatmul.mubr.f32.gmra.mrb[0].mxu0 %v3368
        %v3456 = vpop.f32.mrb[0].mxu0
        %v3457 = vadd.f32 %v3253, %v3456
        %v3458 = vpop.f32.mrb[0].mxu0
        %3459 = vmatprep.mubr.f32.mxu0 0.0
        %3460 = vmatmul.mubr.f32.gmra.mrb[0].mxu0 %v3370
        %v3461 = vpop.f32.mrb[0].mxu0
        %v3462 = vadd.f32 %v3253, %v3461
        %v3463 = vpop.f32.mrb[0].mxu0
        %3464 = vmatprep.mubr.f32.mxu0 0.0
        %3465 = vmatmul.mubr.f32.gmra.mrb[0].mxu0 %v3372
        %v3466 = vpop.f32.mrb[0].mxu0
        %v3467 = vadd.f32 %v3253, %v3466
        %v3468 = vpop.f32.mrb[0].mxu0
        %3469 = vmatprep.mubr.f32.mxu0 0.0
        %3470 = vmatmul.mubr.f32.gmra.mrb[0].mxu0 %v3374
        %v3471 = vpop.f32.mrb[0].mxu0
        %v3472 = vadd.f32 %v3253, %v3471
        %v3473 = vpop.f32.mrb[0].mxu0
        %3474 = vmatprep.mubr.f32.mxu0 0.0
        %3475 = vmatmul.mubr.f32.gmra.mrb[0].mxu0 %v3376
        %v3476 = vpop.f32.mrb[0].mxu0
        %v3477 = vadd.f32 %v3253, %v3476
        %v3478 = vpop.f32.mrb[0].mxu0
        %3479 = vmatprep.mubr.f32.mxu0 0.0
        %3480 = vmatmul.mubr.f32.gmra.mrb[0].mxu0 %v3378
        %v3481 = vpop.f32.mrb[0].mxu0
        %v3482 = vadd.f32 %v3253, %v3481
        %v3483 = vpop.f32.mrb[0].mxu0
        %3484 = vdwg.mxu0
        %v3485 = vtanh.pop %v3447
        %v3486 = vtanh.pop %v3452
        %v3487 = vtanh.pop %v3457
        %v3488 = vtanh.pop %v3462
        %v3489 = vtanh.pop %v3467
        %v3490 = vtanh.pop %v3472
        %v3491 = vtanh.pop %v3477
        %v3492 = vtanh.pop %v3482
        %vm3493 = vcmask 7168
        %v3494 = vsel %vm3493, %v3485, -inf
        %v3495 = vsel %vm3493, %v3486, -inf
        %v3496 = vsel %vm3493, %v3487, -inf
        %v3497 = vsel %vm3493, %v3488, -inf
        %v3498 = vsel %vm3493, %v3489, -inf
        %v3499 = vmax.f32 %v3494, %v3498
        %v3500 = vsel %vm3493, %v3490, -inf
        %v3501 = vmax.f32 %v3495, %v3500
        %v3502 = vsel %vm3493, %v3491, -inf
        %v3503 = vmax.f32 %v3496, %v3502
        %v3504 = vsel %vm3493, %v3492, -inf
        %v3505 = vmax.f32 %v3497, %v3504
        %v3506 = vmax.f32 %v3499, %v3501
        %v3507 = vmax.f32 %v3503, %v3505
        %v3508 = vmax.f32 %v3506, %v3507
        %v3509 = vsub.f32 %v3485, %v3508
        %v3510 = vsub.f32 %v3486, %v3508
        %v3511 = vsub.f32 %v3487, %v3508
        %v3512 = vsub.f32 %v3488, %v3508
        %v3513 = vsub.f32 %v3489, %v3508
        %v3514 = vsub.f32 %v3490, %v3508
        %v3515 = vsub.f32 %v3491, %v3508
        %v3516 = vsub.f32 %v3492, %v3508
        %v3517 = vmul.f32 %v3509, 1.442695
        %v3518 = vpow.pop %v3517
        %v3519 = vmul.f32 %v3510, 1.442695
        %v3520 = vpow.pop %v3519
        %v3521 = vmul.f32 %v3511, 1.442695
        %v3522 = vpow.pop %v3521
        %v3523 = vmul.f32 %v3512, 1.442695
        %v3524 = vpow.pop %v3523
        %v3525 = vmul.f32 %v3513, 1.442695
        %v3526 = vpow.pop %v3525
        %v3527 = vmul.f32 %v3514, 1.442695
        %v3528 = vpow.pop %v3527
        %v3529 = vmul.f32 %v3515, 1.442695
        %v3530 = vpow.pop %v3529
        %v3531 = vmul.f32 %v3516, 1.442695
        %v3532 = vpow.pop %v3531
        %v3533 = vsel %vm3493, %v3518, 0.0
        %v3534 = vsel %vm3493, %v3520, 0.0
        %v3535 = vadd.f32 %v3533, %v3534
        %v3536 = vsel %vm3493, %v3522, 0.0
        %v3537 = vadd.f32 %v3535, %v3536
        %v3538 = vsel %vm3493, %v3524, 0.0
        %v3539 = vadd.f32 %v3537, %v3538
        %v3540 = vsel %vm3493, %v3526, 0.0
        %v3541 = vadd.f32 %v3539, %v3540
        %v3542 = vsel %vm3493, %v3528, 0.0
        %v3543 = vadd.f32 %v3541, %v3542
        %v3544 = vsel %vm3493, %v3530, 0.0
        %v3545 = vadd.f32 %v3543, %v3544
        %v3546 = vsel %vm3493, %v3532, 0.0
        %v3547 = vadd.f32 %v3545, %v3546
        %v3548 = vrcp.pop %v3547
        %v3549 = vmul.f32 %v3518, %v3548
        %v3550 = vmul.f32 %v3520, %v3548
        %v3551 = vmul.f32 %v3522, %v3548
        %v3552 = vmul.f32 %v3524, %v3548
        %v3553 = vmul.f32 %v3526, %v3548
        %v3554 = vmul.f32 %v3528, %v3548
        %v3555 = vmul.f32 %v3530, %v3548
        %v3556 = vmul.f32 %v3532, %v3548
        %3558 = vset.pattern.permute.xlu0 0
        %3559 = vperm.xlu0 %3558, %v3549
        %v3560 = vpop.permute.xlu0 %3559
        %3563 = vset.pattern.permute.xlu0 0
        %3564 = vperm.xlu0 %3563, %v3550
        %v3565 = vpop.permute.xlu0 %3564
        %3568 = vset.pattern.permute.xlu0 0
        %3569 = vperm.xlu0 %3568, %v3551
        %v3570 = vpop.permute.xlu0 %3569
        %3573 = vset.pattern.permute.xlu0 0
        %3574 = vperm.xlu0 %3573, %v3552
        %v3575 = vpop.permute.xlu0 %3574
        %3578 = vset.pattern.permute.xlu0 0
        %3579 = vperm.xlu0 %3578, %v3553
        %v3580 = vpop.permute.xlu0 %3579
        %3583 = vset.pattern.permute.xlu0 0
        %3584 = vperm.xlu0 %3583, %v3554
        %v3585 = vpop.permute.xlu0 %3584
        %3588 = vset.pattern.permute.xlu0 0
        %3589 = vperm.xlu0 %3588, %v3555
        %v3590 = vpop.permute.xlu0 %3589
        %3593 = vset.pattern.permute.xlu0 0
        %3594 = vperm.xlu0 %3593, %v3556
        %v3595 = vpop.permute.xlu0 %3594
        %v3605 = vmul.f32 %v3560, %v802
        %v3606 = vmul.f32 %v3565, %v3353
        %v3607 = vmul.f32 %v3570, %v3355
        %v3608 = vmul.f32 %v3575, %v3357
        %v3609 = vmul.f32 %v3580, %v3359
        %v3610 = vmul.f32 %v3585, %v3361
        %v3611 = vmul.f32 %v3590, %v3363
        %v3612 = vmul.f32 %v3595, %v3365
        %v3613 = vsel %vm474, %v3605, 0.0
        %v3614 = vsel %vm474, %v3606, 0.0
        %v3615 = vadd.f32 %v3613, %v3614
        %v3616 = vsel %vm474, %v3607, 0.0
        %v3617 = vadd.f32 %v3615, %v3616
        %v3618 = vsel %vm474, %v3608, 0.0
        %v3619 = vadd.f32 %v3617, %v3618
        %v3620 = vsel %vm474, %v3609, 0.0
        %v3621 = vadd.f32 %v3619, %v3620
        %v3622 = vsel %vm474, %v3610, 0.0
        %v3623 = vadd.f32 %v3621, %v3622
        %v3624 = vsel %vm474, %v3611, 0.0
        %v3625 = vadd.f32 %v3623, %v3624
        %v3626 = vsel %vm474, %v3612, 0.0
        %v3627 = vadd.f32 %v3625, %v3626
        %v3629 = vsel %vm474, %v3627, 0
        %3631 = vmatprep.subr.mxu0 0.0
        %3632 = vmatpush1.xpose.msra.mxu0 %v3629
        %3633 = vmatprep.subr.mxu0 0.0
        %3634 = vmatpush1.xpose.msra.mxu0 0.0
        %3635 = vmatprep.subr.mxu0 0.0
        %3636 = vmatpush1.xpose.msra.mxu0 0.0
        %3637 = vmatprep.subr.mxu0 0.0
        %3638 = vmatpush1.xpose.msra.mxu0 0.0
        %3639 = vmatprep.subr.mxu0 0.0
        %3640 = vmatpush1.xpose.msra.mxu0 0.0
        %3641 = vmatprep.subr.mxu0 0.0
        %3642 = vmatpush1.xpose.msra.mxu0 0.0
        %3643 = vmatprep.subr.mxu0 0.0
        %3644 = vmatpush1.xpose.msra.mxu0 0.0
        %3645 = vmatprep.subr.mxu0 0.0
        %3646 = vmatpush1.xpose.msra.mxu0 0.0
        %3647 = vmatprep.subr.mxu0 0.0
        %3648 = vmatpush1.xpose.msra.mxu0 0.0
        %3649 = vmatprep.subr.mxu0 0.0
        %3650 = vmatpush1.xpose.msra.mxu0 0.0
        %3651 = vmatprep.subr.mxu0 0.0
        %3652 = vmatpush1.xpose.msra.mxu0 0.0
        %3653 = vmatprep.subr.mxu0 0.0
        %3654 = vmatpush1.xpose.msra.mxu0 0.0
        %3655 = vmatprep.subr.mxu0 0.0
        %3656 = vmatpush1.xpose.msra.mxu0 0.0
        %3657 = vmatprep.subr.mxu0 0.0
        %3658 = vmatpush1.xpose.msra.mxu0 0.0
        %3659 = vmatprep.subr.mxu0 0.0
        %3660 = vmatpush1.xpose.msra.mxu0 0.0
        %3661 = vmatprep.subr.mxu0 0.0
        %3662 = vmatpush1.xpose.msra.mxu0 0.0
        %3663 = vmatprep.subr.mxu0 0.0
        %3664 = vmatpush1.xpose.msra.mxu0 0.0
        %3665 = vmatprep.subr.mxu0 0.0
        %3666 = vmatpush1.xpose.msra.mxu0 0.0
        %3667 = vmatprep.subr.mxu0 0.0
        %3668 = vmatpush1.xpose.msra.mxu0 0.0
        %3669 = vmatprep.subr.mxu0 0.0
        %3670 = vmatpush1.xpose.msra.mxu0 0.0
        %3671 = vmatprep.subr.mxu0 0.0
        %3672 = vmatpush1.xpose.msra.mxu0 0.0
        %3673 = vmatprep.subr.mxu0 0.0
        %3674 = vmatpush1.xpose.msra.mxu0 0.0
        %3675 = vmatprep.subr.mxu0 0.0
        %3676 = vmatpush1.xpose.msra.mxu0 0.0
        %3677 = vmatprep.subr.mxu0 0.0
        %3678 = vmatpush1.xpose.msra.mxu0 0.0
        %3679 = vmatprep.subr.mxu0 0.0
        %3680 = vmatpush1.xpose.msra.mxu0 0.0
        %3681 = vmatprep.subr.mxu0 0.0
        %3682 = vmatpush1.xpose.msra.mxu0 0.0
        %3683 = vmatprep.subr.mxu0 0.0
        %3684 = vmatpush1.xpose.msra.mxu0 0.0
        %3685 = vmatprep.subr.mxu0 0.0
        %3686 = vmatpush1.xpose.msra.mxu0 0.0
        %3687 = vmatprep.subr.mxu0 0.0
        %3688 = vmatpush1.xpose.msra.mxu0 0.0
        %3689 = vmatprep.subr.mxu0 0.0
        %3690 = vmatpush1.xpose.msra.mxu0 0.0
        %3691 = vmatprep.subr.mxu0 0.0
        %3692 = vmatpush1.xpose.msra.mxu0 0.0
        %3693 = vmatprep.subr.mxu0 0.0
        %3694 = vmatpush1.xpose.msra.mxu0 0.0
        %3695 = vmatprep.mubr.f32.mxu0 0.0
        %3696 = vmatmul.mubr.f32.gmra.mrb[0].mxu0 %v3629
        %v3697 = vpop.f32.mrb[0].mxu0
        %v3698 = vadd.f32 0.0, %v3697
        %v3699 = vpop.f32.mrb[0].mxu0
        %3700 = vdwg.mxu0
        %v3701 = vld [vmem:[%s6] sm:$0xff]
        %v3702 = vmul.f32 %v3698, %v3701
        %vm3703 = vcmask 64512
        %v3705 = vsel %vm3703, %v3702, 0
        %3707 = vmatprep.subr.mxu0 0.0
        %3708 = vmatpush1.msra.mxu0 %v3627
        %3709 = vmatprep.subr.mxu0 0.0
        %3710 = vmatpush1.msra.mxu0 0.0
        %3711 = vmatprep.subr.mxu0 0.0
        %3712 = vmatpush1.msra.mxu0 0.0
        %3713 = vmatprep.subr.mxu0 0.0
        %3714 = vmatpush1.msra.mxu0 0.0
        %3715 = vmatprep.subr.mxu0 0.0
        %3716 = vmatpush1.msra.mxu0 0.0
        %3717 = vmatprep.subr.mxu0 0.0
        %3718 = vmatpush1.msra.mxu0 0.0
        %3719 = vmatprep.subr.mxu0 0.0
        %3720 = vmatpush1.msra.mxu0 0.0
        %3721 = vmatprep.subr.mxu0 0.0
        %3722 = vmatpush1.msra.mxu0 0.0
        %3723 = vmatprep.subr.mxu0 0.0
        %3724 = vmatpush1.msra.mxu0 0.0
        %3725 = vmatprep.subr.mxu0 0.0
        %3726 = vmatpush1.msra.mxu0 0.0
        %3727 = vmatprep.subr.mxu0 0.0
        %3728 = vmatpush1.msra.mxu0 0.0
        %3729 = vmatprep.subr.mxu0 0.0
        %3730 = vmatpush1.msra.mxu0 0.0
        %3731 = vmatprep.subr.mxu0 0.0
        %3732 = vmatpush1.msra.mxu0 0.0
        %3733 = vmatprep.subr.mxu0 0.0
        %3734 = vmatpush1.msra.mxu0 0.0
        %3735 = vmatprep.subr.mxu0 0.0
        %3736 = vmatpush1.msra.mxu0 0.0
        %3737 = vmatprep.subr.mxu0 0.0
        %3738 = vmatpush1.msra.mxu0 0.0
        %3739 = vmatprep.subr.mxu0 0.0
        %3740 = vmatpush1.msra.mxu0 0.0
        %3741 = vmatprep.subr.mxu0 0.0
        %3742 = vmatpush1.msra.mxu0 0.0
        %3743 = vmatprep.subr.mxu0 0.0
        %3744 = vmatpush1.msra.mxu0 0.0
        %3745 = vmatprep.subr.mxu0 0.0
        %3746 = vmatpush1.msra.mxu0 0.0
        %3747 = vmatprep.subr.mxu0 0.0
        %3748 = vmatpush1.msra.mxu0 0.0
        %3749 = vmatprep.subr.mxu0 0.0
        %3750 = vmatpush1.msra.mxu0 0.0
        %3751 = vmatprep.subr.mxu0 0.0
        %3752 = vmatpush1.msra.mxu0 0.0
        %3753 = vmatprep.subr.mxu0 0.0
        %3754 = vmatpush1.msra.mxu0 0.0
        %3755 = vmatprep.subr.mxu0 0.0
        %3756 = vmatpush1.msra.mxu0 0.0
        %3757 = vmatprep.subr.mxu0 0.0
        %3758 = vmatpush1.msra.mxu0 0.0
        %3759 = vmatprep.subr.mxu0 0.0
        %3760 = vmatpush1.msra.mxu0 0.0
        %3761 = vmatprep.subr.mxu0 0.0
        %3762 = vmatpush1.msra.mxu0 0.0
        %3763 = vmatprep.subr.mxu0 0.0
        %3764 = vmatpush1.msra.mxu0 0.0
        %3765 = vmatprep.subr.mxu0 0.0
        %3766 = vmatpush1.msra.mxu0 0.0
        %3767 = vmatprep.subr.mxu0 0.0
        %3768 = vmatpush1.msra.mxu0 0.0
        %3769 = vmatprep.subr.mxu0 0.0
        %3770 = vmatpush1.msra.mxu0 0.0
        %3771 = vmatprep.mubr.f32.mxu0 0.0
        %3772 = vmatmul.mubr.f32.gmra.mrb[0].mxu0 %v3705
        %v3773 = vpop.f32.mrb[0].mxu0
        %v3774 = vadd.f32 0.0, %v3773
        %v3775 = vpop.f32.mrb[0].mxu0
        %3776 = vdwg.mxu0
        %v3777 = vld [vmem:[%s4 + $0x20] sm:$0xff]
        %v3778 = vld [vmem:[%s4 + $0x28] sm:$0xff]
        %v3779 = vld [vmem:[%s4 + $0x30] sm:$0xff]
        %v3780 = vld [vmem:[%s4 + $0x38] sm:$0xff]
        %v3781 = vld [vmem:[%s4 + $0x40] sm:$0xff]
        %v3782 = vld [vmem:[%s4 + $0x48] sm:$0xff]
        %v3783 = vld [vmem:[%s4 + $0x50] sm:$0xff]
        %v3784 = vld [vmem:[%s4 + $0x58] sm:$0xff]
        %v3785 = vld [vmem:[%s4 + $0x61] sm:$0x1]
        %v3787 = vsel %vm474, %v3774, 0
        %3789 = vmatprep.subr.mxu0 0.0
        %3790 = vmatpush1.msra.mxu0 %v3781
        %3791 = vmatprep.subr.mxu0 0.0
        %3792 = vmatpush1.msra.mxu0 %v3782
        %3793 = vmatprep.subr.mxu0 0.0
        %3794 = vmatpush1.msra.mxu0 %v3783
        %3795 = vmatprep.subr.mxu0 0.0
        %3796 = vmatpush1.msra.mxu0 %v3784
        %3797 = vmatprep.subr.mxu0 0.0
        %3798 = vmatpush1.msra.mxu0 0.0
        %3799 = vmatprep.subr.mxu0 0.0
        %3800 = vmatpush1.msra.mxu0 0.0
        %3801 = vmatprep.subr.mxu0 0.0
        %3802 = vmatpush1.msra.mxu0 0.0
        %3803 = vmatprep.subr.mxu0 0.0
        %3804 = vmatpush1.msra.mxu0 0.0
        %3805 = vmatprep.subr.mxu0 0.0
        %3806 = vmatpush1.msra.mxu0 0.0
        %3807 = vmatprep.subr.mxu0 0.0
        %3808 = vmatpush1.msra.mxu0 0.0
        %3809 = vmatprep.subr.mxu0 0.0
        %3810 = vmatpush1.msra.mxu0 0.0
        %3811 = vmatprep.subr.mxu0 0.0
        %3812 = vmatpush1.msra.mxu0 0.0
        %3813 = vmatprep.subr.mxu0 0.0
        %3814 = vmatpush1.msra.mxu0 0.0
        %3815 = vmatprep.subr.mxu0 0.0
        %3816 = vmatpush1.msra.mxu0 0.0
        %3817 = vmatprep.subr.mxu0 0.0
        %3818 = vmatpush1.msra.mxu0 0.0
        %3819 = vmatprep.subr.mxu0 0.0
        %3820 = vmatpush1.msra.mxu0 0.0
        %3821 = vmatprep.subr.mxu0 0.0
        %3822 = vmatpush1.msra.mxu0 0.0
        %3823 = vmatprep.subr.mxu0 0.0
        %3824 = vmatpush1.msra.mxu0 0.0
        %3825 = vmatprep.subr.mxu0 0.0
        %3826 = vmatpush1.msra.mxu0 0.0
        %3827 = vmatprep.subr.mxu0 0.0
        %3828 = vmatpush1.msra.mxu0 0.0
        %3829 = vmatprep.subr.mxu0 0.0
        %3830 = vmatpush1.msra.mxu0 0.0
        %3831 = vmatprep.subr.mxu0 0.0
        %3832 = vmatpush1.msra.mxu0 0.0
        %3833 = vmatprep.subr.mxu0 0.0
        %3834 = vmatpush1.msra.mxu0 0.0
        %3835 = vmatprep.subr.mxu0 0.0
        %3836 = vmatpush1.msra.mxu0 0.0
        %3837 = vmatprep.subr.mxu0 0.0
        %3838 = vmatpush1.msra.mxu0 0.0
        %3839 = vmatprep.subr.mxu0 0.0
        %3840 = vmatpush1.msra.mxu0 0.0
        %3841 = vmatprep.subr.mxu0 0.0
        %3842 = vmatpush1.msra.mxu0 0.0
        %3843 = vmatprep.subr.mxu0 0.0
        %3844 = vmatpush1.msra.mxu0 0.0
        %3845 = vmatprep.subr.mxu0 0.0
        %3846 = vmatpush1.msra.mxu0 0.0
        %3847 = vmatprep.subr.mxu0 0.0
        %3848 = vmatpush1.msra.mxu0 0.0
        %3849 = vmatprep.subr.mxu0 0.0
        %3850 = vmatpush1.msra.mxu0 0.0
        %3851 = vmatprep.subr.mxu0 0.0
        %3852 = vmatpush1.msra.mxu0 0.0
        %3853 = vmatprep.mubr.f32.mxu0 0.0
        %3854 = vmatmul.mubr.f32.gmra.mrb[0].mxu0 %v3787
        %v3855 = vpop.f32.mrb[0].mxu0
        %v3856 = vadd.f32 0.0, %v3855
        %v3857 = vpop.f32.mrb[0].mxu0
        %3858 = vdwg.mxu0
        %3859 = vmatprep.subr.mxu0 0.0
        %3860 = vmatpush1.msra.mxu0 %v3777
        %3861 = vmatprep.subr.mxu0 0.0
        %3862 = vmatpush1.msra.mxu0 %v3778
        %3863 = vmatprep.subr.mxu0 0.0
        %3864 = vmatpush1.msra.mxu0 %v3779
        %3865 = vmatprep.subr.mxu0 0.0
        %3866 = vmatpush1.msra.mxu0 %v3780
        %3867 = vmatprep.subr.mxu0 0.0
        %3868 = vmatpush1.msra.mxu0 0.0
        %3869 = vmatprep.subr.mxu0 0.0
        %3870 = vmatpush1.msra.mxu0 0.0
        %3871 = vmatprep.subr.mxu0 0.0
        %3872 = vmatpush1.msra.mxu0 0.0
        %3873 = vmatprep.subr.mxu0 0.0
        %3874 = vmatpush1.msra.mxu0 0.0
        %3875 = vmatprep.subr.mxu0 0.0
        %3876 = vmatpush1.msra.mxu0 0.0
        %3877 = vmatprep.subr.mxu0 0.0
        %3878 = vmatpush1.msra.mxu0 0.0
        %3879 = vmatprep.subr.mxu0 0.0
        %3880 = vmatpush1.msra.mxu0 0.0
        %3881 = vmatprep.subr.mxu0 0.0
        %3882 = vmatpush1.msra.mxu0 0.0
        %3883 = vmatprep.subr.mxu0 0.0
        %3884 = vmatpush1.msra.mxu0 0.0
        %3885 = vmatprep.subr.mxu0 0.0
        %3886 = vmatpush1.msra.mxu0 0.0
        %3887 = vmatprep.subr.mxu0 0.0
        %3888 = vmatpush1.msra.mxu0 0.0
        %3889 = vmatprep.subr.mxu0 0.0
        %3890 = vmatpush1.msra.mxu0 0.0
        %3891 = vmatprep.subr.mxu0 0.0
        %3892 = vmatpush1.msra.mxu0 0.0
        %3893 = vmatprep.subr.mxu0 0.0
        %3894 = vmatpush1.msra.mxu0 0.0
        %3895 = vmatprep.subr.mxu0 0.0
        %3896 = vmatpush1.msra.mxu0 0.0
        %3897 = vmatprep.subr.mxu0 0.0
        %3898 = vmatpush1.msra.mxu0 0.0
        %3899 = vmatprep.subr.mxu0 0.0
        %3900 = vmatpush1.msra.mxu0 0.0
        %3901 = vmatprep.subr.mxu0 0.0
        %3902 = vmatpush1.msra.mxu0 0.0
        %3903 = vmatprep.subr.mxu0 0.0
        %3904 = vmatpush1.msra.mxu0 0.0
        %3905 = vmatprep.subr.mxu0 0.0
        %3906 = vmatpush1.msra.mxu0 0.0
        %3907 = vmatprep.subr.mxu0 0.0
        %3908 = vmatpush1.msra.mxu0 0.0
        %3909 = vmatprep.subr.mxu0 0.0
        %3910 = vmatpush1.msra.mxu0 0.0
        %3911 = vmatprep.subr.mxu0 0.0
        %3912 = vmatpush1.msra.mxu0 0.0
        %3913 = vmatprep.subr.mxu0 0.0
        %3914 = vmatpush1.msra.mxu0 0.0
        %3915 = vmatprep.subr.mxu0 0.0
        %3916 = vmatpush1.msra.mxu0 0.0
        %3917 = vmatprep.subr.mxu0 0.0
        %3918 = vmatpush1.msra.mxu0 0.0
        %3919 = vmatprep.subr.mxu0 0.0
        %3920 = vmatpush1.msra.mxu0 0.0
        %3921 = vmatprep.subr.mxu0 0.0
        %3922 = vmatpush1.msra.mxu0 0.0
        %3923 = vmatprep.mubr.f32.mxu0 0.0
        %3924 = vmatmul.mubr.f32.gmra.mrb[0].mxu0 %v3629
        %v3925 = vpop.f32.mrb[0].mxu0
        %v3926 = vadd.f32 %v3856, %v3925
        %v3927 = vpop.f32.mrb[0].mxu0
        %3928 = vdwg.mxu0
        %v3929 = vlaneseq
        %v3930 = vshrl.u32 %v3929, 7
        %v3931 = vsub.s32 0, %v3930
        %v3932 = vrot.slane %v3785, %v3931
        %v3933 = vadd.f32 %v3926, %v3932
        %3935 = vset.pattern.permute.xlu0 0
        %3936 = vperm.xlu0 %3935, %v3933
        %v3937 = vpop.permute.xlu0 %3936
        %v3938 = vlaneseq
        %v3939 = vshrl.u32 %v3938, 7
        %v3940 = vsub.s32 %v468, %v3939
        %v3941 = vrot.slane %v3937, %v3940
        %vm3943 = vcmask 57344
        %3944 = vst.msk [vmem:[%s301] sm:$0x1] %vm3943, %v3941
        %v3946 = vsel %vm784, %v3941, %v3941
        %v3947 = vsel %vm787, %v3941, %v3946
        %v3948 = vsel %vm790, %v3941, %v3947
        %v3949 = vsel %vm793, %v3941, %v3948
        %v3950 = vsel %vm796, %v3941, %v3949
        %v3951 = vsel %vm799, %v3941, %v3950
        %vm3953 = vcmp.gt.f32.partialorder %v3937, %v3951
        %v3954 = vsel %vm3953, 1, 0
        %v3955 = vcvt.s32.f32 %v3954
        %v3956 = vsel %vm3703, %v3955, 0.0
        %v3957 = vrot.slane %v3956, 4
        %v3958 = vadd.f32 %v3956, %v3957
        %v3959 = vrot.slane %v3958, 2
        %v3960 = vadd.f32 %v3958, %v3959
        %v3961 = vrot.slane %v3960, 1
        %v3962 = vadd.f32 %v3960, %v3961
        %vm3963 = vcmp.lt.f32.partialorder %v3962, 3.0
        %v3964 = vsel %vm3963, %v3941, 0.0
        %v3965 = vld [vmem:[%s5] sm:$0xff]
        %v3966 = vld [vmem:[%s5 + $0x8] sm:$0x1]
        %v3968 = vsel %vm3703, %v3964, 0
        %3970 = vmatprep.subr.mxu0 0.0
        %3971 = vmatpush1.msra.mxu0 %v3965
        %3972 = vmatprep.subr.mxu0 0.0
        %3973 = vmatpush1.msra.mxu0 0.0
        %3974 = vmatprep.subr.mxu0 0.0
        %3975 = vmatpush1.msra.mxu0 0.0
        %3976 = vmatprep.subr.mxu0 0.0
        %3977 = vmatpush1.msra.mxu0 0.0
        %3978 = vmatprep.subr.mxu0 0.0
        %3979 = vmatpush1.msra.mxu0 0.0
        %3980 = vmatprep.subr.mxu0 0.0
        %3981 = vmatpush1.msra.mxu0 0.0
        %3982 = vmatprep.subr.mxu0 0.0
        %3983 = vmatpush1.msra.mxu0 0.0
        %3984 = vmatprep.subr.mxu0 0.0
        %3985 = vmatpush1.msra.mxu0 0.0
        %3986 = vmatprep.subr.mxu0 0.0
        %3987 = vmatpush1.msra.mxu0 0.0
        %3988 = vmatprep.subr.mxu0 0.0
        %3989 = vmatpush1.msra.mxu0 0.0
        %3990 = vmatprep.subr.mxu0 0.0
        %3991 = vmatpush1.msra.mxu0 0.0
        %3992 = vmatprep.subr.mxu0 0.0
        %3993 = vmatpush1.msra.mxu0 0.0
        %3994 = vmatprep.subr.mxu0 0.0
        %3995 = vmatpush1.msra.mxu0 0.0
        %3996 = vmatprep.subr.mxu0 0.0
        %3997 = vmatpush1.msra.mxu0 0.0
        %3998 = vmatprep.subr.mxu0 0.0
        %3999 = vmatpush1.msra.mxu0 0.0
        %4000 = vmatprep.subr.mxu0 0.0
        %4001 = vmatpush1.msra.mxu0 0.0
        %4002 = vmatprep.subr.mxu0 0.0
        %4003 = vmatpush1.msra.mxu0 0.0
        %4004 = vmatprep.subr.mxu0 0.0
        %4005 = vmatpush1.msra.mxu0 0.0
        %4006 = vmatprep.subr.mxu0 0.0
        %4007 = vmatpush1.msra.mxu0 0.0
        %4008 = vmatprep.subr.mxu0 0.0
        %4009 = vmatpush1.msra.mxu0 0.0
        %4010 = vmatprep.subr.mxu0 0.0
        %4011 = vmatpush1.msra.mxu0 0.0
        %4012 = vmatprep.subr.mxu0 0.0
        %4013 = vmatpush1.msra.mxu0 0.0
        %4014 = vmatprep.subr.mxu0 0.0
        %4015 = vmatpush1.msra.mxu0 0.0
        %4016 = vmatprep.subr.mxu0 0.0
        %4017 = vmatpush1.msra.mxu0 0.0
        %4018 = vmatprep.subr.mxu0 0.0
        %4019 = vmatpush1.msra.mxu0 0.0
        %4020 = vmatprep.subr.mxu0 0.0
        %4021 = vmatpush1.msra.mxu0 0.0
        %4022 = vmatprep.subr.mxu0 0.0
        %4023 = vmatpush1.msra.mxu0 0.0
        %4024 = vmatprep.subr.mxu0 0.0
        %4025 = vmatpush1.msra.mxu0 0.0
        %4026 = vmatprep.subr.mxu0 0.0
        %4027 = vmatpush1.msra.mxu0 0.0
        %4028 = vmatprep.subr.mxu0 0.0
        %4029 = vmatpush1.msra.mxu0 0.0
        %4030 = vmatprep.subr.mxu0 0.0
        %4031 = vmatpush1.msra.mxu0 0.0
        %4032 = vmatprep.subr.mxu0 0.0
        %4033 = vmatpush1.msra.mxu0 0.0
        %4034 = vmatprep.mubr.f32.mxu0 0.0
        %4035 = vmatmul.mubr.f32.gmra.mrb[0].mxu0 %v3968
        %v4036 = vpop.f32.mrb[0].mxu0
        %v4037 = vadd.f32 %v3966, %v4036
        %v4038 = vpop.f32.mrb[0].mxu0
        %4039 = vdwg.mxu0
        %vm4040 = vcmask 16384
        %4041 = vst.msk [vmem:[%s307] sm:$0x1] %vm4040, %v4037
        %s4042 = sand.u32 %s186, 1
        %s4043 = scalar_lea.sflag [#allocation3], %s4042
        %s4044 = sand.u32 %s186, 1
        %s4045 = scalar_lea.vmem [#allocation2], %s4044
        %s4046 = sand.u32 %s212, 1
        %s4047 = scalar_lea.sflag [#allocation5], %s4046
        %s4048 = sand.u32 %s212, 1
        %s4049 = scalar_lea.vmem [#allocation4], %s4048
        // Predicated region
        $region49: #{actor_forward.1} parent=47 // pred_check
          %p4050 = pneg %p196
        $region50: #{actor_forward.1} parent=47 // pred_check_branch
          %4052 = sbr.rel (%p4050) target = $region52
        $region51: #{actor_forward.1} parent=47 // pred_region
          %s4054 = ssub.s32 16, 16
          %4055 = vsyncadd %s4043, %s4054
          %s4056 = smul.addr %s26, 16
          %s4057 = scalar_lea.hbm %s7, %s4056
          %s4059 = sshll.u32 %s4045, 4
          %s4060 = int_to_ptr.vmem [resolvable:$true] %s4059
          %4062 = dma.vmem_to_hbm [thread:$0]  %s4060, 16, %s4057, %s4043
        $region52: #{actor_forward.1} parent=47 // pred_fallthru
          _
        // Predicated region
        $region53: #{actor_forward.1} parent=47 // pred_check
          %p4063 = pneg %p222
        $region54: #{actor_forward.1} parent=47 // pred_check_branch
          %4065 = sbr.rel (%p4063) target = $region56
        $region55: #{actor_forward.1} parent=47 // pred_region
          %s4067 = ssub.s32 16, 16
          %4068 = vsyncadd %s4047, %s4067
          %s4069 = smul.addr %s26, 16
          %s4070 = scalar_lea.hbm %s8, %s4069
          %s4072 = sshll.u32 %s4049, 4
          %s4073 = int_to_ptr.vmem [resolvable:$true] %s4072
          %4075 = dma.vmem_to_hbm [thread:$0]  %s4073, 16, %s4070, %s4047
        $region56: #{actor_forward.1} parent=47 // pred_fallthru
          _
      $region48: #{actor_forward.1} parent=5 // pred_fallthru
        _
      %p4076 = scmp.le.s32.totalorder 2, %s21
      // Predicated region
      $region57: #{actor_forward.1} parent=5 // pred_check
        %p4077 = pneg %p4076
      $region58: #{actor_forward.1} parent=5 // pred_check_branch
        %4079 = sbr.rel (%p4077) target = $region60
      $region59: #{actor_forward.1} parent=5 // pred_region
        %s4080 = ssub.s32 %s21, 2
        // Predicated region
        $region61: #{actor_forward.1} parent=59 // pred_check
          %p4081 = pneg %p202
        $region62: #{actor_forward.1} parent=59 // pred_check_branch
          %4083 = sbr.rel (%p4081) target = $region64
        $region63: #{actor_forward.1} parent=59 // pred_region
          %s4084 = sand.u32 %s187, 1
          %s4085 = scalar_lea.sflag [#allocation3], %s4084
          %s4086 = sand.u32 %s187, 1
          %s4087 = scalar_lea.vmem [#allocation2], %s4086
          %4088 = dma.done %s4085, 16
        $region64: #{actor_forward.1} parent=59 // pred_fallthru
          _
        // Predicated region
        $region65: #{actor_forward.1} parent=59 // pred_check
          %p4089 = pneg %p228
        $region66: #{actor_forward.1} parent=59 // pred_check_branch
          %4091 = sbr.rel (%p4089) target = $region68
        $region67: #{actor_forward.1} parent=59 // pred_region
          %s4092 = sand.u32 %s213, 1
          %s4093 = scalar_lea.sflag [#allocation5], %s4092
          %s4094 = sand.u32 %s213, 1
          %s4095 = scalar_lea.vmem [#allocation4], %s4094
          %4096 = dma.done %s4093, 16
        $region68: #{actor_forward.1} parent=59 // pred_fallthru
          _
      $region60: #{actor_forward.1} parent=5 // pred_fallthru
        _
    $region6: #{actor_forward.1} parent=1 // loop_footer
      %s25 = sadd.s32 1, %s21
    $region7: #{actor_forward.1} parent=1 // loop_footer_branch
      %20 = sbr.rel target = $region3
    $region8: #{actor_forward.1} parent=1 // loop_exit
      _
    %4097 = vsyncpa [#allocation3], 1
    %s4098 = scalar_lea.sflag [#allocation3], 1
    %4099 = vsyncpa %s4098, 1
    %4100 = vsyncpa [#allocation5], 1
    %s4101 = scalar_lea.sflag [#allocation5], 1
    %4102 = vsyncpa %s4101, 1

</llo_original>
